<compile_context>
chip_gen: v5e
topology: v5e:2x2
jax: 0.10.0
libtpu: 0.0.40
codegen_flags: <defaults>
</compile_context>

<pallas_src>
import functools
import math

import jax
import jax.numpy as jnp
from jax.experimental import pallas as pl
from jax.experimental.pallas import tpu as pltpu

_LANE = 128
_SUBLANE = 16          # bf16 native sublane tile
_INV_SQRT2 = 0.7071067811865476


def _round_up(v, m):
    return ((v + m - 1) // m) * m


def _gelu_f32(x):
    # exact (erf-based) GELU in f32, matching torch.nn.functional.gelu default
    x = x.astype(jnp.float32)
    return 0.5 * x * (1.0 + jax.lax.erf(x * _INV_SQRT2))


# ------------------------------ fused kernel --------------------------------

def _conv_block_kernel(*refs, k_taps, dilation, pad, b_tile, halo_rows,
                       seq_len, has_proj):
    # refs: xl (1,H,Ci) bf16, xc (1,B,Ci) bf16, xr (1,H,Ci) bf16,
    #       w1 (K,Ci,Co) bf16, b1 (1,Co) f32, w2 (K,Co,Co) bf16, b2 (1,Co) f32,
    #       [pw (Ci,Co) bf16, pb (1,Co) f32], out (1,B,Co) bf16
    if has_proj:
        (xl_ref, xc_ref, xr_ref, w1_ref, b1_ref, w2_ref, b2_ref,
         pw_ref, pb_ref, o_ref) = refs
    else:
        (xl_ref, xc_ref, xr_ref, w1_ref, b1_ref, w2_ref, b2_ref, o_ref) = refs

    t = pl.program_id(1)
    B, H, d, K, p = b_tile, halo_rows, dilation, k_taps, pad
    c_out_p = w1_ref.shape[-1]

    # Extended input window: row r  <->  time position t*B - H + r.
    x_ext = jnp.concatenate([xl_ref[0], xc_ref[0], xr_ref[0]],
                            axis=0)                              # (B+2H, Ci) bf16

    # Residual path uses the PRE-GELU centre rows only.
    x_center = x_ext[H:H + B, :]                                 # (B, Ci)
    if has_proj:
        res = jnp.dot(x_center, pw_ref[...],
                      preferred_element_type=jnp.float32) + pb_ref[...]
    else:
        res = x_center.astype(jnp.float32)                       # Ci == Co here

    # gelu(x), with rows outside [0, seq_len) forced to exactly 0 so the
    # dilated convs see zero padding (clamped / partial halo blocks never leak
    # into valid outputs).
    pos_x = (jax.lax.broadcasted_iota(jnp.int32, (B + 2 * H, 1), 0)
             + (t * B - H))
    valid_x = jnp.logical_and(pos_x >= 0, pos_x < seq_len)
    xg = jnp.where(valid_x, _gelu_f32(x_ext), 0.0).astype(jnp.bfloat16)

    # ---- conv1 (dilated): per-tap MXU accumulation (no K*C slab) -----------
    h_rows = B + 2 * p
    base = H - 2 * p                                             # >= 0
    h_pre = jnp.dot(xg[base:base + h_rows, :], w1_ref[0],
                    preferred_element_type=jnp.float32)
    for j in range(1, K):
        h_pre = h_pre + jnp.dot(xg[base + j * d: base + j * d + h_rows, :],
                                w1_ref[j],
                                preferred_element_type=jnp.float32)
    h_pre = h_pre + b1_ref[...]

    # h rows outside the real sequence must be exactly zero (conv2 zero-pads).
    pos_h = (jax.lax.broadcasted_iota(jnp.int32, (h_rows, 1), 0)
             + (t * B - p))
    valid_h = jnp.logical_and(pos_h >= 0, pos_h < seq_len)
    h = jnp.where(valid_h, _gelu_f32(h_pre), 0.0).astype(jnp.bfloat16)

    # ---- conv2 (dilated): per-tap MXU accumulation --------------------------
    out = res + b2_ref[...]
    for k in range(K):
        out = out + jnp.dot(h[k * d: k * d + B, :], w2_ref[k],
                            preferred_element_type=jnp.float32)

    o_ref[0] = out.astype(o_ref.dtype)
    del c_out_p  # (kept for clarity)


# --------------------------- wrapper / tiling glue ---------------------------

def conv_block_forward(x, blk, *, l_tile):
    """One fused ConvBlock.  x: (N, L, c_in_padded) bf16, padded channels zero.
    Returns (N, L, c_out_padded) bf16, padded channels zero."""
    N, L, c_in_p = x.shape
    K = blk["k"]
    d = blk["dilation"]
    pad = ((K - 1) * d + 1) // 2
    c_out_p = blk["w1"].shape[-1]
    has_proj = blk["pw"] is not None
    assert blk["w1"].shape[1] == c_in_p
    if not has_proj:
        assert c_in_p == c_out_p   # identity residual requires matching widths

    # Halo strip = 2*pad rows per side, rounded to the bf16 sublane tile.
    H = _round_up(max(2 * pad, 1), _SUBLANE)
    # Time tile: multiple of H (so halo block indices are exact), >= H.
    B = _round_up(max(min(l_tile, _round_up(L, _SUBLANE)), 1), H)
    m = B // H
    T = pl.cdiv(L, B)
    hi = pl.cdiv(L, H) - 1          # last valid halo block index

    kernel = functools.partial(
        _conv_block_kernel, k_taps=K, dilation=d, pad=pad, b_tile=B,
        halo_rows=H, seq_len=L, has_proj=has_proj)

    def xl_map(n, t, m=m, hi=hi):
        return (n, jnp.minimum(jnp.maximum(t * m - 1, 0), hi), 0)

    def xr_map(n, t, m=m, hi=hi):
        return (n, jnp.minimum((t + 1) * m, hi), 0)

    in_specs = [
        pl.BlockSpec((1, H, c_in_p), xl_map),                      # left halo strip
        pl.BlockSpec((1, B, c_in_p), lambda n, t: (n, t, 0)),      # centre tile
        pl.BlockSpec((1, H, c_in_p), xr_map),                      # right halo strip
        pl.BlockSpec((K, c_in_p, c_out_p), lambda n, t: (0, 0, 0)),  # w1 resident
        pl.BlockSpec((1, c_out_p), lambda n, t: (0, 0)),
        pl.BlockSpec((K, c_out_p, c_out_p), lambda n, t: (0, 0, 0)),  # w2 resident
        pl.BlockSpec((1, c_out_p), lambda n, t: (0, 0)),
    ]
    args = [x, x, x, blk["w1"], blk["b1"], blk["w2"], blk["b2"]]
    if has_proj:
        in_specs += [pl.BlockSpec((c_in_p, c_out_p), lambda n, t: (0, 0)),
                     pl.BlockSpec((1, c_out_p), lambda n, t: (0, 0))]
        args += [blk["pw"], blk["pb"]]

    return pl.pallas_call(
        kernel,
        out_shape=jax.ShapeDtypeStruct((N, L, c_out_p), jnp.bfloat16),
        grid=(N, T),
        in_specs=in_specs,
        out_specs=pl.BlockSpec((1, B, c_out_p), lambda n, t: (n, t, 0)),
        compiler_params=pltpu.CompilerParams(
            # Both axes independent; sweep l_tile (512-1024 on v5e/v6e,
            # 256-512 on v7x) and vmem limit per generation.
            dimension_semantics=("parallel", "parallel"),
            vmem_limit_bytes=48 * 1024 * 1024),
    )(*args)


def dilated_conv_encoder_forward(x_ncl, kernel_params, *, l_tile=512):
    """x_ncl: (N, C_in, L) as in PyTorch.  Returns (N, C_out_last, L) f32."""
    x = jnp.transpose(x_ncl, (0, 2, 1))                    # NCL -> NLC
    N, L, c_in = x.shape
    c_in_p = _round_up(c_in, _LANE)
    # One-time channel pad + bf16 cast; padded channels stay exactly zero
    # through every block (zero weight rows/cols).
    x = jnp.pad(x, ((0, 0), (0, 0), (0, c_in_p - c_in))).astype(jnp.bfloat16)
    for blk in kernel_params:
        x = conv_block_forward(x, blk, l_tile=l_tile)
    c_last = kernel_params[-1]["c_out"]
    x = x[:, :, :c_last].astype(jnp.float32)
    return jnp.transpose(x, (0, 2, 1))                     # NLC -> NCL


# ------------------------- parameter construction ---------------------------

def _init_conv_params(key, c_in, c_out, k):
    # torch.nn.Conv1d default init: U(-1/sqrt(c_in*k), 1/sqrt(c_in*k))
    bound = 1.0 / math.sqrt(c_in * k)
    wkey, bkey = jax.random.split(key)
    w = jax.random.uniform(wkey, (k, c_in, c_out), jnp.float32, -bound, bound)
    b = jax.random.uniform(bkey, (c_out,), jnp.float32, -bound, bound)
    return w, b


def _pack_conv(w, b, c_in_p, c_out_p):
    """w: (K, c_in, c_out) f32, b: (c_out,) f32 ->
       (K, c_in_p, c_out_p) bf16 weights, (1, c_out_p) f32 bias.
       Padded rows/cols are zero so padded channels stay exactly zero."""
    K, c_in, c_out = w.shape
    w_p = jnp.zeros((K, c_in_p, c_out_p), jnp.float32).at[:, :c_in, :c_out].set(w)
    b_p = jnp.zeros((1, c_out_p), jnp.float32).at[0, :c_out].set(b)
    return w_p.astype(jnp.bfloat16), b_p


def init_dilated_conv_encoder(key, in_channels, channels, kernel_size):
    """Returns (kernel_params, ref_params): kernel_params are pre-packed
    (channel-padded, bf16) weights; ref_params are the raw f32 weights."""
    kernel_params, ref_params = [], []
    for i, c_out in enumerate(channels):
        c_in = channels[i - 1] if i > 0 else in_channels
        dilation = 2 ** i
        final = i == len(channels) - 1
        key, k1, k2, k3 = jax.random.split(key, 4)
        w1, b1 = _init_conv_params(k1, c_in, c_out, kernel_size)
        w2, b2 = _init_conv_params(k2, c_out, c_out, kernel_size)
        proj = None
        if c_in != c_out or final:
            proj = _init_conv_params(k3, c_in, c_out, 1)
        ref_params.append(dict(w1=w1, b1=b1, w2=w2, b2=b2, proj=proj,
                               dilation=dilation))

        c_in_p = _round_up(c_in, _LANE)
        c_out_p = _round_up(c_out, _LANE)
        w1p, b1p = _pack_conv(w1, b1, c_in_p, c_out_p)
        w2p, b2p = _pack_conv(w2, b2, c_out_p, c_out_p)
        if proj is not None:
            pwp, pbp = _pack_conv(proj[0], proj[1], c_in_p, c_out_p)
            pwp = pwp[0]                                    # (c_in_p, c_out_p)
        else:
            pwp, pbp = None, None
        kernel_params.append(dict(w1=w1p, b1=b1p, w2=w2p, b2=b2p,
                                  pw=pwp, pb=pbp, dilation=dilation,
                                  k=kernel_size, c_out=c_out))
    return kernel_params, ref_params


# --------------------------- pure-JAX reference ------------------------------

def _ref_same_pad_conv(x_nlc, w, b, dilation):
    K = w.shape[0]
    pad = ((K - 1) * dilation + 1) // 2
    out = jax.lax.conv_general_dilated(
        x_nlc, w, window_strides=(1,), padding=((pad, pad),),
        rhs_dilation=(dilation,), dimension_numbers=("NWC", "WIO", "NWC"))
    out = out + b[None, None, :]
    return out[:, : x_nlc.shape[1], :]


def _ref_forward(x_ncl, params):
    x = jnp.transpose(x_ncl, (0, 2, 1))
    for blk in params:
        if blk["proj"] is not None:
            pw, pb = blk["proj"]
            residual = _ref_same_pad_conv(x, pw, pb, 1)
        else:
            residual = x
        h = jax.nn.gelu(x, approximate=False)
        h = _ref_same_pad_conv(h, blk["w1"], blk["b1"], blk["dilation"])
        h = jax.nn.gelu(h, approximate=False)
        h = _ref_same_pad_conv(h, blk["w2"], blk["b2"], blk["dilation"])
        x = h + residual
    return jnp.transpose(x, (0, 2, 1))


if __name__ == "__main__":
    key = jax.random.PRNGKey(0)
    kx, kp = jax.random.split(key)

    # Small shapes consistent with the module: Conv1d takes (N, C, L).
    # L=64 with l_tile=32 exercises multi-tile halos across dilations 1/2/4,
    # plus both the projector and identity-residual paths.
    batch, in_channels, length = 2, 4, 64
    channels = [8, 8, 16]
    kernel_size = 3

    x = jax.random.normal(kx, (batch, in_channels, length), jnp.float32)
    kparams, ref_params = init_dilated_conv_encoder(
        kp, in_channels, channels, kernel_size)

    fwd = jax.jit(lambda inp: dilated_conv_encoder_forward(
        inp, kparams, l_tile=32))
    out = jax.block_until_ready(fwd(x))

    ref = jax.block_until_ready(_ref_forward(x, ref_params))
    assert out.shape == (batch, channels[-1], length), out.shape
    # bf16 MXU inputs + bf16 inter-block activations (f32 accumulation)
    # -> loosened tolerance vs the f32 reference.
    err = float(jnp.max(jnp.abs(out - ref)))
    assert jnp.allclose(out, ref, atol=5e-2, rtol=5e-2), (
        "max abs err %.5f" % err)

    print("KERNEL_OK")
</pallas_src>

<mosaic_0001>
module attributes {stable_mosaic.version = 11 : i64} {
  func.func @_conv_block_kernel(%arg0: i32, %arg1: i32, %arg2: memref<1x16x128xbf16, #tpu.memory_space<vmem>>, %arg3: memref<1x32x128xbf16, #tpu.memory_space<vmem>>, %arg4: memref<1x16x128xbf16, #tpu.memory_space<vmem>>, %arg5: memref<3x128x128xbf16, #tpu.memory_space<vmem>>, %arg6: memref<1x128xf32, #tpu.memory_space<vmem>>, %arg7: memref<3x128x128xbf16, #tpu.memory_space<vmem>>, %arg8: memref<1x128xf32, #tpu.memory_space<vmem>>, %arg9: memref<128x128xbf16, #tpu.memory_space<vmem>>, %arg10: memref<1x128xf32, #tpu.memory_space<vmem>>, %arg11: memref<1x32x128xbf16, #tpu.memory_space<vmem>>) attributes {dimension_semantics = [#tpu.dimension_semantics<parallel>, #tpu.dimension_semantics<parallel>], iteration_bounds = array<i64: 2, 2>, scalar_prefetch = 0 : i64, scratch_operands = 0 : i64, tpu.core_type = #tpu.core_type<tc>, window_params = [{transform_indices = @transform_0, window_bounds = array<i64: 1, 16, 128>}, {transform_indices = @transform_1, window_bounds = array<i64: 1, 32, 128>}, {transform_indices = @transform_2, window_bounds = array<i64: 1, 16, 128>}, {pipeline_mode = #tpu.pipeline_mode<synchronous>, transform_indices = @transform_3, window_bounds = array<i64: 3, 128, 128>}, {pipeline_mode = #tpu.pipeline_mode<synchronous>, transform_indices = @transform_4, window_bounds = array<i64: 1, 128>}, {pipeline_mode = #tpu.pipeline_mode<synchronous>, transform_indices = @transform_5, window_bounds = array<i64: 3, 128, 128>}, {pipeline_mode = #tpu.pipeline_mode<synchronous>, transform_indices = @transform_6, window_bounds = array<i64: 1, 128>}, {pipeline_mode = #tpu.pipeline_mode<synchronous>, transform_indices = @transform_7, window_bounds = array<i64: 128, 128>}, {pipeline_mode = #tpu.pipeline_mode<synchronous>, transform_indices = @transform_8, window_bounds = array<i64: 1, 128>}, {transform_indices = @transform_9, window_bounds = array<i64: 1, 32, 128>}]} {
    %c0 = arith.constant 0 : index
    %c0_0 = arith.constant 0 : index
    %c0_1 = arith.constant 0 : index
    %0 = vector.load %arg2[%c0, %c0_0, %c0_1] : memref<1x16x128xbf16, #tpu.memory_space<vmem>>, vector<1x16x128xbf16>
    %1 = vector.shape_cast %0 : vector<1x16x128xbf16> to vector<16x128xbf16>
    %c0_2 = arith.constant 0 : index
    %c0_3 = arith.constant 0 : index
    %c0_4 = arith.constant 0 : index
    %2 = vector.load %arg3[%c0_2, %c0_3, %c0_4] : memref<1x32x128xbf16, #tpu.memory_space<vmem>>, vector<1x32x128xbf16>
    %3 = vector.shape_cast %2 : vector<1x32x128xbf16> to vector<32x128xbf16>
    %c0_5 = arith.constant 0 : index
    %c0_6 = arith.constant 0 : index
    %c0_7 = arith.constant 0 : index
    %4 = vector.load %arg4[%c0_5, %c0_6, %c0_7] : memref<1x16x128xbf16, #tpu.memory_space<vmem>>, vector<1x16x128xbf16>
    %5 = vector.shape_cast %4 : vector<1x16x128xbf16> to vector<16x128xbf16>
    %6 = tpu.concatenate %1, %3, %5 in 0 : vector<16x128xbf16>, vector<32x128xbf16>, vector<16x128xbf16> -> vector<64x128xbf16>
    %7 = vector.extract_strided_slice %6 {offsets = [16, 0], sizes = [32, 128], strides = [1, 1]} : vector<64x128xbf16> to vector<32x128xbf16>
    %c0_8 = arith.constant 0 : index
    %c0_9 = arith.constant 0 : index
    %8 = vector.load %arg9[%c0_8, %c0_9] : memref<128x128xbf16, #tpu.memory_space<vmem>>, vector<128x128xbf16>
    %cst = arith.constant dense<0.000000e+00> : vector<32x128xf32>
    %9 = tpu.matmul %7, %8, %cst {dimension_numbers = #tpu.dot_dimension_numbers<[1], [0], [0], [1], [0, 0, 1, 1], [], []>} : vector<32x128xbf16>, vector<128x128xbf16>, vector<32x128xf32> -> vector<32x128xf32>
    %c0_10 = arith.constant 0 : index
    %c0_11 = arith.constant 0 : index
    %10 = vector.load %arg10[%c0_10, %c0_11] : memref<1x128xf32, #tpu.memory_space<vmem>>, vector<1x128xf32>
    %11 = vector.broadcast %10 : vector<1x128xf32> to vector<32x128xf32>
    %12 = arith.addf %9, %11 : vector<32x128xf32>
    %13 = tpu.iota {dimensions = array<i32: 0>} : vector<64x1xi32>
    %c32_i32 = arith.constant 32 : i32
    %14 = arith.muli %arg1, %c32_i32 : i32
    %c16_i32 = arith.constant 16 : i32
    %15 = arith.subi %14, %c16_i32 : i32
    %16 = vector.broadcast %15 : i32 to vector<64x1xi32>
    %17 = arith.addi %13, %16 : vector<64x1xi32>
    %c0_i32 = arith.constant 0 : i32
    %18 = vector.broadcast %c0_i32 : i32 to vector<64x1xi32>
    %19 = arith.cmpi sge, %17, %18 : vector<64x1xi32>
    %c64_i32 = arith.constant 64 : i32
    %20 = vector.broadcast %c64_i32 : i32 to vector<64x1xi32>
    %21 = arith.cmpi slt, %17, %20 : vector<64x1xi32>
    %22 = arith.andi %19, %21 : vector<64x1xi1>
    %23 = arith.extf %6 : vector<64x128xbf16> to vector<64x128xf32>
    %cst_12 = arith.constant 5.000000e-01 : f32
    %24 = vector.broadcast %cst_12 : f32 to vector<64x128xf32>
    %25 = arith.mulf %24, %23 : vector<64x128xf32>
    %cst_13 = arith.constant 0.707106769 : f32
    %26 = vector.broadcast %cst_13 : f32 to vector<64x128xf32>
    %27 = arith.mulf %23, %26 : vector<64x128xf32>
    %28 = math.erf %27 : vector<64x128xf32>
    %cst_14 = arith.constant 1.000000e+00 : f32
    %29 = vector.broadcast %cst_14 : f32 to vector<64x128xf32>
    %30 = arith.addf %29, %28 : vector<64x128xf32>
    %31 = arith.mulf %25, %30 : vector<64x128xf32>
    %cst_15 = arith.constant 0.000000e+00 : f32
    %32 = vector.shape_cast %22 : vector<64x1xi1> to vector<64x1xi1>
    %33 = vector.broadcast %32 : vector<64x1xi1> to vector<64x128xi1>
    %34 = vector.broadcast %cst_15 : f32 to vector<64x128xf32>
    %35 = arith.select %33, %31, %34 : vector<64x128xi1>, vector<64x128xf32>
    %36 = arith.truncf %35 : vector<64x128xf32> to vector<64x128xbf16>
    %37 = vector.extract_strided_slice %36 {offsets = [14, 0], sizes = [34, 128], strides = [1, 1]} : vector<64x128xbf16> to vector<34x128xbf16>
    %c0_16 = arith.constant 0 : index
    %c0_17 = arith.constant 0 : index
    %c0_18 = arith.constant 0 : index
    %38 = vector.load %arg5[%c0_16, %c0_17, %c0_18] : memref<3x128x128xbf16, #tpu.memory_space<vmem>>, vector<1x128x128xbf16>
    %39 = vector.shape_cast %38 : vector<1x128x128xbf16> to vector<128x128xbf16>
    %cst_19 = arith.constant dense<0.000000e+00> : vector<34x128xf32>
    %40 = tpu.matmul %37, %39, %cst_19 {dimension_numbers = #tpu.dot_dimension_numbers<[1], [0], [0], [1], [0, 0, 1, 1], [], []>} : vector<34x128xbf16>, vector<128x128xbf16>, vector<34x128xf32> -> vector<34x128xf32>
    %41 = vector.extract_strided_slice %36 {offsets = [15, 0], sizes = [34, 128], strides = [1, 1]} : vector<64x128xbf16> to vector<34x128xbf16>
    %c1 = arith.constant 1 : index
    %c0_20 = arith.constant 0 : index
    %c0_21 = arith.constant 0 : index
    %42 = vector.load %arg5[%c1, %c0_20, %c0_21] : memref<3x128x128xbf16, #tpu.memory_space<vmem>>, vector<1x128x128xbf16>
    %43 = vector.shape_cast %42 : vector<1x128x128xbf16> to vector<128x128xbf16>
    %cst_22 = arith.constant dense<0.000000e+00> : vector<34x128xf32>
    %44 = tpu.matmul %41, %43, %cst_22 {dimension_numbers = #tpu.dot_dimension_numbers<[1], [0], [0], [1], [0, 0, 1, 1], [], []>} : vector<34x128xbf16>, vector<128x128xbf16>, vector<34x128xf32> -> vector<34x128xf32>
    %45 = arith.addf %40, %44 : vector<34x128xf32>
    %46 = vector.extract_strided_slice %36 {offsets = [16, 0], sizes = [34, 128], strides = [1, 1]} : vector<64x128xbf16> to vector<34x128xbf16>
    %c2 = arith.constant 2 : index
    %c0_23 = arith.constant 0 : index
    %c0_24 = arith.constant 0 : index
    %47 = vector.load %arg5[%c2, %c0_23, %c0_24] : memref<3x128x128xbf16, #tpu.memory_space<vmem>>, vector<1x128x128xbf16>
    %48 = vector.shape_cast %47 : vector<1x128x128xbf16> to vector<128x128xbf16>
    %cst_25 = arith.constant dense<0.000000e+00> : vector<34x128xf32>
    %49 = tpu.matmul %46, %48, %cst_25 {dimension_numbers = #tpu.dot_dimension_numbers<[1], [0], [0], [1], [0, 0, 1, 1], [], []>} : vector<34x128xbf16>, vector<128x128xbf16>, vector<34x128xf32> -> vector<34x128xf32>
    %50 = arith.addf %45, %49 : vector<34x128xf32>
    %c0_26 = arith.constant 0 : index
    %c0_27 = arith.constant 0 : index
    %51 = vector.load %arg6[%c0_26, %c0_27] : memref<1x128xf32, #tpu.memory_space<vmem>>, vector<1x128xf32>
    %52 = vector.broadcast %51 : vector<1x128xf32> to vector<34x128xf32>
    %53 = arith.addf %50, %52 : vector<34x128xf32>
    %54 = tpu.iota {dimensions = array<i32: 0>} : vector<34x1xi32>
    %c32_i32_28 = arith.constant 32 : i32
    %55 = arith.muli %arg1, %c32_i32_28 : i32
    %c1_i32 = arith.constant 1 : i32
    %56 = arith.subi %55, %c1_i32 : i32
    %57 = vector.broadcast %56 : i32 to vector<34x1xi32>
    %58 = arith.addi %54, %57 : vector<34x1xi32>
    %c0_i32_29 = arith.constant 0 : i32
    %59 = vector.broadcast %c0_i32_29 : i32 to vector<34x1xi32>
    %60 = arith.cmpi sge, %58, %59 : vector<34x1xi32>
    %c64_i32_30 = arith.constant 64 : i32
    %61 = vector.broadcast %c64_i32_30 : i32 to vector<34x1xi32>
    %62 = arith.cmpi slt, %58, %61 : vector<34x1xi32>
    %63 = arith.andi %60, %62 : vector<34x1xi1>
    %cst_31 = arith.constant 5.000000e-01 : f32
    %64 = vector.broadcast %cst_31 : f32 to vector<34x128xf32>
    %65 = arith.mulf %64, %53 : vector<34x128xf32>
    %cst_32 = arith.constant 0.707106769 : f32
    %66 = vector.broadcast %cst_32 : f32 to vector<34x128xf32>
    %67 = arith.mulf %53, %66 : vector<34x128xf32>
    %68 = math.erf %67 : vector<34x128xf32>
    %cst_33 = arith.constant 1.000000e+00 : f32
    %69 = vector.broadcast %cst_33 : f32 to vector<34x128xf32>
    %70 = arith.addf %69, %68 : vector<34x128xf32>
    %71 = arith.mulf %65, %70 : vector<34x128xf32>
    %cst_34 = arith.constant 0.000000e+00 : f32
    %72 = vector.shape_cast %63 : vector<34x1xi1> to vector<34x1xi1>
    %73 = vector.broadcast %72 : vector<34x1xi1> to vector<34x128xi1>
    %74 = vector.broadcast %cst_34 : f32 to vector<34x128xf32>
    %75 = arith.select %73, %71, %74 : vector<34x128xi1>, vector<34x128xf32>
    %76 = arith.truncf %75 : vector<34x128xf32> to vector<34x128xbf16>
    %c0_35 = arith.constant 0 : index
    %c0_36 = arith.constant 0 : index
    %77 = vector.load %arg8[%c0_35, %c0_36] : memref<1x128xf32, #tpu.memory_space<vmem>>, vector<1x128xf32>
    %78 = vector.broadcast %77 : vector<1x128xf32> to vector<32x128xf32>
    %79 = arith.addf %12, %78 : vector<32x128xf32>
    %80 = vector.extract_strided_slice %76 {offsets = [0, 0], sizes = [32, 128], strides = [1, 1]} : vector<34x128xbf16> to vector<32x128xbf16>
    %c0_37 = arith.constant 0 : index
    %c0_38 = arith.constant 0 : index
    %c0_39 = arith.constant 0 : index
    %81 = vector.load %arg7[%c0_37, %c0_38, %c0_39] : memref<3x128x128xbf16, #tpu.memory_space<vmem>>, vector<1x128x128xbf16>
    %82 = vector.shape_cast %81 : vector<1x128x128xbf16> to vector<128x128xbf16>
    %cst_40 = arith.constant dense<0.000000e+00> : vector<32x128xf32>
    %83 = tpu.matmul %80, %82, %cst_40 {dimension_numbers = #tpu.dot_dimension_numbers<[1], [0], [0], [1], [0, 0, 1, 1], [], []>} : vector<32x128xbf16>, vector<128x128xbf16>, vector<32x128xf32> -> vector<32x128xf32>
    %84 = arith.addf %79, %83 : vector<32x128xf32>
    %85 = vector.extract_strided_slice %76 {offsets = [1, 0], sizes = [32, 128], strides = [1, 1]} : vector<34x128xbf16> to vector<32x128xbf16>
    %c1_41 = arith.constant 1 : index
    %c0_42 = arith.constant 0 : index
    %c0_43 = arith.constant 0 : index
    %86 = vector.load %arg7[%c1_41, %c0_42, %c0_43] : memref<3x128x128xbf16, #tpu.memory_space<vmem>>, vector<1x128x128xbf16>
    %87 = vector.shape_cast %86 : vector<1x128x128xbf16> to vector<128x128xbf16>
    %cst_44 = arith.constant dense<0.000000e+00> : vector<32x128xf32>
    %88 = tpu.matmul %85, %87, %cst_44 {dimension_numbers = #tpu.dot_dimension_numbers<[1], [0], [0], [1], [0, 0, 1, 1], [], []>} : vector<32x128xbf16>, vector<128x128xbf16>, vector<32x128xf32> -> vector<32x128xf32>
    %89 = arith.addf %84, %88 : vector<32x128xf32>
    %90 = vector.extract_strided_slice %76 {offsets = [2, 0], sizes = [32, 128], strides = [1, 1]} : vector<34x128xbf16> to vector<32x128xbf16>
    %c2_45 = arith.constant 2 : index
    %c0_46 = arith.constant 0 : index
    %c0_47 = arith.constant 0 : index
    %91 = vector.load %arg7[%c2_45, %c0_46, %c0_47] : memref<3x128x128xbf16, #tpu.memory_space<vmem>>, vector<1x128x128xbf16>
    %92 = vector.shape_cast %91 : vector<1x128x128xbf16> to vector<128x128xbf16>
    %cst_48 = arith.constant dense<0.000000e+00> : vector<32x128xf32>
    %93 = tpu.matmul %90, %92, %cst_48 {dimension_numbers = #tpu.dot_dimension_numbers<[1], [0], [0], [1], [0, 0, 1, 1], [], []>} : vector<32x128xbf16>, vector<128x128xbf16>, vector<32x128xf32> -> vector<32x128xf32>
    %94 = arith.addf %89, %93 : vector<32x128xf32>
    %95 = arith.truncf %94 : vector<32x128xf32> to vector<32x128xbf16>
    %c0_49 = arith.constant 0 : index
    %c0_50 = arith.constant 0 : index
    %c0_51 = arith.constant 0 : index
    %96 = vector.load %arg11[%c0_49, %c0_50, %c0_51] : memref<1x32x128xbf16, #tpu.memory_space<vmem>>, vector<1x32x128xbf16>
    %97 = vector.shape_cast %96 : vector<1x32x128xbf16> to vector<32x128xbf16>
    %98 = vector.shape_cast %95 : vector<32x128xbf16> to vector<1x32x128xbf16>
    tpu.vector_store %arg11[%c0_49, %c0_50, %c0_51], %98 {strides = array<i32>} : memref<1x32x128xbf16, #tpu.memory_space<vmem>>, vector<1x32x128xbf16>,
    return
  }
  func.func @transform_0(%arg0: i32, %arg1: i32) -> (i32, i32, i32) {
    %c2_i32 = arith.constant 2 : i32
    %0 = arith.muli %arg1, %c2_i32 : i32
    %c1_i32 = arith.constant 1 : i32
    %1 = arith.subi %0, %c1_i32 : i32
    %c0_i32 = arith.constant 0 : i32
    %2 = arith.maxsi %1, %c0_i32 : i32
    %c3_i32 = arith.constant 3 : i32
    %3 = arith.minsi %2, %c3_i32 : i32
    %c0_i32_0 = arith.constant 0 : i32
    %c0_i32_1 = arith.constant 0 : i32
    return %arg0, %3, %c0_i32_0 : i32, i32, i32
  }
  func.func @transform_1(%arg0: i32, %arg1: i32) -> (i32, i32, i32) {
    %c0_i32 = arith.constant 0 : i32
    %c0_i32_0 = arith.constant 0 : i32
    return %arg0, %arg1, %c0_i32 : i32, i32, i32
  }
  func.func @transform_2(%arg0: i32, %arg1: i32) -> (i32, i32, i32) {
    %c1_i32 = arith.constant 1 : i32
    %0 = arith.addi %arg1, %c1_i32 : i32
    %c2_i32 = arith.constant 2 : i32
    %1 = arith.muli %0, %c2_i32 : i32
    %c3_i32 = arith.constant 3 : i32
    %2 = arith.minsi %1, %c3_i32 : i32
    %c0_i32 = arith.constant 0 : i32
    %c0_i32_0 = arith.constant 0 : i32
    return %arg0, %2, %c0_i32 : i32, i32, i32
  }
  func.func @transform_3(%arg0: i32, %arg1: i32) -> (i32, i32, i32) {
    %c0_i32 = arith.constant 0 : i32
    %c0_i32_0 = arith.constant 0 : i32
    %c0_i32_1 = arith.constant 0 : i32
    %c0_i32_2 = arith.constant 0 : i32
    return %c0_i32, %c0_i32_0, %c0_i32_1 : i32, i32, i32
  }
  func.func @transform_4(%arg0: i32, %arg1: i32) -> (i32, i32) {
    %c0_i32 = arith.constant 0 : i32
    %c0_i32_0 = arith.constant 0 : i32
    %c0_i32_1 = arith.constant 0 : i32
    return %c0_i32, %c0_i32_0 : i32, i32
  }
  func.func @transform_5(%arg0: i32, %arg1: i32) -> (i32, i32, i32) {
    %c0_i32 = arith.constant 0 : i32
    %c0_i32_0 = arith.constant 0 : i32
    %c0_i32_1 = arith.constant 0 : i32
    %c0_i32_2 = arith.constant 0 : i32
    return %c0_i32, %c0_i32_0, %c0_i32_1 : i32, i32, i32
  }
  func.func @transform_6(%arg0: i32, %arg1: i32) -> (i32, i32) {
    %c0_i32 = arith.constant 0 : i32
    %c0_i32_0 = arith.constant 0 : i32
    %c0_i32_1 = arith.constant 0 : i32
    return %c0_i32, %c0_i32_0 : i32, i32
  }
  func.func @transform_7(%arg0: i32, %arg1: i32) -> (i32, i32) {
    %c0_i32 = arith.constant 0 : i32
    %c0_i32_0 = arith.constant 0 : i32
    %c0_i32_1 = arith.constant 0 : i32
    return %c0_i32, %c0_i32_0 : i32, i32
  }
  func.func @transform_8(%arg0: i32, %arg1: i32) -> (i32, i32) {
    %c0_i32 = arith.constant 0 : i32
    %c0_i32_0 = arith.constant 0 : i32
    %c0_i32_1 = arith.constant 0 : i32
    return %c0_i32, %c0_i32_0 : i32, i32
  }
  func.func @transform_9(%arg0: i32, %arg1: i32) -> (i32, i32, i32) {
    %c0_i32 = arith.constant 0 : i32
    %c0_i32_0 = arith.constant 0 : i32
    return %arg0, %arg1, %c0_i32 : i32, i32, i32
  }
}

module attributes {stable_mosaic.version = 11 : i64} {
  func.func @_conv_block_kernel(%arg0: i32, %arg1: i32, %arg2: memref<1x16x128xbf16, #tpu.memory_space<vmem>>, %arg3: memref<1x32x128xbf16, #tpu.memory_space<vmem>>, %arg4: memref<1x16x128xbf16, #tpu.memory_space<vmem>>, %arg5: memref<3x128x128xbf16, #tpu.memory_space<vmem>>, %arg6: memref<1x128xf32, #tpu.memory_space<vmem>>, %arg7: memref<3x128x128xbf16, #tpu.memory_space<vmem>>, %arg8: memref<1x128xf32, #tpu.memory_space<vmem>>, %arg9: memref<1x32x128xbf16, #tpu.memory_space<vmem>>) attributes {dimension_semantics = [#tpu.dimension_semantics<parallel>, #tpu.dimension_semantics<parallel>], iteration_bounds = array<i64: 2, 2>, scalar_prefetch = 0 : i64, scratch_operands = 0 : i64, tpu.core_type = #tpu.core_type<tc>, window_params = [{transform_indices = @transform_0, window_bounds = array<i64: 1, 16, 128>}, {transform_indices = @transform_1, window_bounds = array<i64: 1, 32, 128>}, {transform_indices = @transform_2, window_bounds = array<i64: 1, 16, 128>}, {pipeline_mode = #tpu.pipeline_mode<synchronous>, transform_indices = @transform_3, window_bounds = array<i64: 3, 128, 128>}, {pipeline_mode = #tpu.pipeline_mode<synchronous>, transform_indices = @transform_4, window_bounds = array<i64: 1, 128>}, {pipeline_mode = #tpu.pipeline_mode<synchronous>, transform_indices = @transform_5, window_bounds = array<i64: 3, 128, 128>}, {pipeline_mode = #tpu.pipeline_mode<synchronous>, transform_indices = @transform_6, window_bounds = array<i64: 1, 128>}, {transform_indices = @transform_7, window_bounds = array<i64: 1, 32, 128>}]} {
    %c0 = arith.constant 0 : index
    %c0_0 = arith.constant 0 : index
    %c0_1 = arith.constant 0 : index
    %0 = vector.load %arg2[%c0, %c0_0, %c0_1] : memref<1x16x128xbf16, #tpu.memory_space<vmem>>, vector<1x16x128xbf16>
    %1 = vector.shape_cast %0 : vector<1x16x128xbf16> to vector<16x128xbf16>
    %c0_2 = arith.constant 0 : index
    %c0_3 = arith.constant 0 : index
    %c0_4 = arith.constant 0 : index
    %2 = vector.load %arg3[%c0_2, %c0_3, %c0_4] : memref<1x32x128xbf16, #tpu.memory_space<vmem>>, vector<1x32x128xbf16>
    %3 = vector.shape_cast %2 : vector<1x32x128xbf16> to vector<32x128xbf16>
    %c0_5 = arith.constant 0 : index
    %c0_6 = arith.constant 0 : index
    %c0_7 = arith.constant 0 : index
    %4 = vector.load %arg4[%c0_5, %c0_6, %c0_7] : memref<1x16x128xbf16, #tpu.memory_space<vmem>>, vector<1x16x128xbf16>
    %5 = vector.shape_cast %4 : vector<1x16x128xbf16> to vector<16x128xbf16>
    %6 = tpu.concatenate %1, %3, %5 in 0 : vector<16x128xbf16>, vector<32x128xbf16>, vector<16x128xbf16> -> vector<64x128xbf16>
    %7 = vector.extract_strided_slice %6 {offsets = [16, 0], sizes = [32, 128], strides = [1, 1]} : vector<64x128xbf16> to vector<32x128xbf16>
    %8 = arith.extf %7 : vector<32x128xbf16> to vector<32x128xf32>
    %9 = tpu.iota {dimensions = array<i32: 0>} : vector<64x1xi32>
    %c32_i32 = arith.constant 32 : i32
    %10 = arith.muli %arg1, %c32_i32 : i32
    %c16_i32 = arith.constant 16 : i32
    %11 = arith.subi %10, %c16_i32 : i32
    %12 = vector.broadcast %11 : i32 to vector<64x1xi32>
    %13 = arith.addi %9, %12 : vector<64x1xi32>
    %c0_i32 = arith.constant 0 : i32
    %14 = vector.broadcast %c0_i32 : i32 to vector<64x1xi32>
    %15 = arith.cmpi sge, %13, %14 : vector<64x1xi32>
    %c64_i32 = arith.constant 64 : i32
    %16 = vector.broadcast %c64_i32 : i32 to vector<64x1xi32>
    %17 = arith.cmpi slt, %13, %16 : vector<64x1xi32>
    %18 = arith.andi %15, %17 : vector<64x1xi1>
    %19 = arith.extf %6 : vector<64x128xbf16> to vector<64x128xf32>
    %cst = arith.constant 5.000000e-01 : f32
    %20 = vector.broadcast %cst : f32 to vector<64x128xf32>
    %21 = arith.mulf %20, %19 : vector<64x128xf32>
    %cst_8 = arith.constant 0.707106769 : f32
    %22 = vector.broadcast %cst_8 : f32 to vector<64x128xf32>
    %23 = arith.mulf %19, %22 : vector<64x128xf32>
    %24 = math.erf %23 : vector<64x128xf32>
    %cst_9 = arith.constant 1.000000e+00 : f32
    %25 = vector.broadcast %cst_9 : f32 to vector<64x128xf32>
    %26 = arith.addf %25, %24 : vector<64x128xf32>
    %27 = arith.mulf %21, %26 : vector<64x128xf32>
    %cst_10 = arith.constant 0.000000e+00 : f32
    %28 = vector.shape_cast %18 : vector<64x1xi1> to vector<64x1xi1>
    %29 = vector.broadcast %28 : vector<64x1xi1> to vector<64x128xi1>
    %30 = vector.broadcast %cst_10 : f32 to vector<64x128xf32>
    %31 = arith.select %29, %27, %30 : vector<64x128xi1>, vector<64x128xf32>
    %32 = arith.truncf %31 : vector<64x128xf32> to vector<64x128xbf16>
    %33 = vector.extract_strided_slice %32 {offsets = [12, 0], sizes = [36, 128], strides = [1, 1]} : vector<64x128xbf16> to vector<36x128xbf16>
    %c0_11 = arith.constant 0 : index
    %c0_12 = arith.constant 0 : index
    %c0_13 = arith.constant 0 : index
    %34 = vector.load %arg5[%c0_11, %c0_12, %c0_13] : memref<3x128x128xbf16, #tpu.memory_space<vmem>>, vector<1x128x128xbf16>
    %35 = vector.shape_cast %34 : vector<1x128x128xbf16> to vector<128x128xbf16>
    %cst_14 = arith.constant dense<0.000000e+00> : vector<36x128xf32>
    %36 = tpu.matmul %33, %35, %cst_14 {dimension_numbers = #tpu.dot_dimension_numbers<[1], [0], [0], [1], [0, 0, 1, 1], [], []>} : vector<36x128xbf16>, vector<128x128xbf16>, vector<36x128xf32> -> vector<36x128xf32>
    %37 = vector.extract_strided_slice %32 {offsets = [14, 0], sizes = [36, 128], strides = [1, 1]} : vector<64x128xbf16> to vector<36x128xbf16>
    %c1 = arith.constant 1 : index
    %c0_15 = arith.constant 0 : index
    %c0_16 = arith.constant 0 : index
    %38 = vector.load %arg5[%c1, %c0_15, %c0_16] : memref<3x128x128xbf16, #tpu.memory_space<vmem>>, vector<1x128x128xbf16>
    %39 = vector.shape_cast %38 : vector<1x128x128xbf16> to vector<128x128xbf16>
    %cst_17 = arith.constant dense<0.000000e+00> : vector<36x128xf32>
    %40 = tpu.matmul %37, %39, %cst_17 {dimension_numbers = #tpu.dot_dimension_numbers<[1], [0], [0], [1], [0, 0, 1, 1], [], []>} : vector<36x128xbf16>, vector<128x128xbf16>, vector<36x128xf32> -> vector<36x128xf32>
    %41 = arith.addf %36, %40 : vector<36x128xf32>
    %42 = vector.extract_strided_slice %32 {offsets = [16, 0], sizes = [36, 128], strides = [1, 1]} : vector<64x128xbf16> to vector<36x128xbf16>
    %c2 = arith.constant 2 : index
    %c0_18 = arith.constant 0 : index
    %c0_19 = arith.constant 0 : index
    %43 = vector.load %arg5[%c2, %c0_18, %c0_19] : memref<3x128x128xbf16, #tpu.memory_space<vmem>>, vector<1x128x128xbf16>
    %44 = vector.shape_cast %43 : vector<1x128x128xbf16> to vector<128x128xbf16>
    %cst_20 = arith.constant dense<0.000000e+00> : vector<36x128xf32>
    %45 = tpu.matmul %42, %44, %cst_20 {dimension_numbers = #tpu.dot_dimension_numbers<[1], [0], [0], [1], [0, 0, 1, 1], [], []>} : vector<36x128xbf16>, vector<128x128xbf16>, vector<36x128xf32> -> vector<36x128xf32>
    %46 = arith.addf %41, %45 : vector<36x128xf32>
    %c0_21 = arith.constant 0 : index
    %c0_22 = arith.constant 0 : index
    %47 = vector.load %arg6[%c0_21, %c0_22] : memref<1x128xf32, #tpu.memory_space<vmem>>, vector<1x128xf32>
    %48 = vector.broadcast %47 : vector<1x128xf32> to vector<36x128xf32>
    %49 = arith.addf %46, %48 : vector<36x128xf32>
    %50 = tpu.iota {dimensions = array<i32: 0>} : vector<36x1xi32>
    %c32_i32_23 = arith.constant 32 : i32
    %51 = arith.muli %arg1, %c32_i32_23 : i32
    %c2_i32 = arith.constant 2 : i32
    %52 = arith.subi %51, %c2_i32 : i32
    %53 = vector.broadcast %52 : i32 to vector<36x1xi32>
    %54 = arith.addi %50, %53 : vector<36x1xi32>
    %c0_i32_24 = arith.constant 0 : i32
    %55 = vector.broadcast %c0_i32_24 : i32 to vector<36x1xi32>
    %56 = arith.cmpi sge, %54, %55 : vector<36x1xi32>
    %c64_i32_25 = arith.constant 64 : i32
    %57 = vector.broadcast %c64_i32_25 : i32 to vector<36x1xi32>
    %58 = arith.cmpi slt, %54, %57 : vector<36x1xi32>
    %59 = arith.andi %56, %58 : vector<36x1xi1>
    %cst_26 = arith.constant 5.000000e-01 : f32
    %60 = vector.broadcast %cst_26 : f32 to vector<36x128xf32>
    %61 = arith.mulf %60, %49 : vector<36x128xf32>
    %cst_27 = arith.constant 0.707106769 : f32
    %62 = vector.broadcast %cst_27 : f32 to vector<36x128xf32>
    %63 = arith.mulf %49, %62 : vector<36x128xf32>
    %64 = math.erf %63 : vector<36x128xf32>
    %cst_28 = arith.constant 1.000000e+00 : f32
    %65 = vector.broadcast %cst_28 : f32 to vector<36x128xf32>
    %66 = arith.addf %65, %64 : vector<36x128xf32>
    %67 = arith.mulf %61, %66 : vector<36x128xf32>
    %cst_29 = arith.constant 0.000000e+00 : f32
    %68 = vector.shape_cast %59 : vector<36x1xi1> to vector<36x1xi1>
    %69 = vector.broadcast %68 : vector<36x1xi1> to vector<36x128xi1>
    %70 = vector.broadcast %cst_29 : f32 to vector<36x128xf32>
    %71 = arith.select %69, %67, %70 : vector<36x128xi1>, vector<36x128xf32>
    %72 = arith.truncf %71 : vector<36x128xf32> to vector<36x128xbf16>
    %c0_30 = arith.constant 0 : index
    %c0_31 = arith.constant 0 : index
    %73 = vector.load %arg8[%c0_30, %c0_31] : memref<1x128xf32, #tpu.memory_space<vmem>>, vector<1x128xf32>
    %74 = vector.broadcast %73 : vector<1x128xf32> to vector<32x128xf32>
    %75 = arith.addf %8, %74 : vector<32x128xf32>
    %76 = vector.extract_strided_slice %72 {offsets = [0, 0], sizes = [32, 128], strides = [1, 1]} : vector<36x128xbf16> to vector<32x128xbf16>
    %c0_32 = arith.constant 0 : index
    %c0_33 = arith.constant 0 : index
    %c0_34 = arith.constant 0 : index
    %77 = vector.load %arg7[%c0_32, %c0_33, %c0_34] : memref<3x128x128xbf16, #tpu.memory_space<vmem>>, vector<1x128x128xbf16>
    %78 = vector.shape_cast %77 : vector<1x128x128xbf16> to vector<128x128xbf16>
    %cst_35 = arith.constant dense<0.000000e+00> : vector<32x128xf32>
    %79 = tpu.matmul %76, %78, %cst_35 {dimension_numbers = #tpu.dot_dimension_numbers<[1], [0], [0], [1], [0, 0, 1, 1], [], []>} : vector<32x128xbf16>, vector<128x128xbf16>, vector<32x128xf32> -> vector<32x128xf32>
    %80 = arith.addf %75, %79 : vector<32x128xf32>
    %81 = vector.extract_strided_slice %72 {offsets = [2, 0], sizes = [32, 128], strides = [1, 1]} : vector<36x128xbf16> to vector<32x128xbf16>
    %c1_36 = arith.constant 1 : index
    %c0_37 = arith.constant 0 : index
    %c0_38 = arith.constant 0 : index
    %82 = vector.load %arg7[%c1_36, %c0_37, %c0_38] : memref<3x128x128xbf16, #tpu.memory_space<vmem>>, vector<1x128x128xbf16>
    %83 = vector.shape_cast %82 : vector<1x128x128xbf16> to vector<128x128xbf16>
    %cst_39 = arith.constant dense<0.000000e+00> : vector<32x128xf32>
    %84 = tpu.matmul %81, %83, %cst_39 {dimension_numbers = #tpu.dot_dimension_numbers<[1], [0], [0], [1], [0, 0, 1, 1], [], []>} : vector<32x128xbf16>, vector<128x128xbf16>, vector<32x128xf32> -> vector<32x128xf32>
    %85 = arith.addf %80, %84 : vector<32x128xf32>
    %86 = vector.extract_strided_slice %72 {offsets = [4, 0], sizes = [32, 128], strides = [1, 1]} : vector<36x128xbf16> to vector<32x128xbf16>
    %c2_40 = arith.constant 2 : index
    %c0_41 = arith.constant 0 : index
    %c0_42 = arith.constant 0 : index
    %87 = vector.load %arg7[%c2_40, %c0_41, %c0_42] : memref<3x128x128xbf16, #tpu.memory_space<vmem>>, vector<1x128x128xbf16>
    %88 = vector.shape_cast %87 : vector<1x128x128xbf16> to vector<128x128xbf16>
    %cst_43 = arith.constant dense<0.000000e+00> : vector<32x128xf32>
    %89 = tpu.matmul %86, %88, %cst_43 {dimension_numbers = #tpu.dot_dimension_numbers<[1], [0], [0], [1], [0, 0, 1, 1], [], []>} : vector<32x128xbf16>, vector<128x128xbf16>, vector<32x128xf32> -> vector<32x128xf32>
    %90 = arith.addf %85, %89 : vector<32x128xf32>
    %91 = arith.truncf %90 : vector<32x128xf32> to vector<32x128xbf16>
    %c0_44 = arith.constant 0 : index
    %c0_45 = arith.constant 0 : index
    %c0_46 = arith.constant 0 : index
    %92 = vector.load %arg9[%c0_44, %c0_45, %c0_46] : memref<1x32x128xbf16, #tpu.memory_space<vmem>>, vector<1x32x128xbf16>
    %93 = vector.shape_cast %92 : vector<1x32x128xbf16> to vector<32x128xbf16>
    %94 = vector.shape_cast %91 : vector<32x128xbf16> to vector<1x32x128xbf16>
    tpu.vector_store %arg9[%c0_44, %c0_45, %c0_46], %94 {strides = array<i32>} : memref<1x32x128xbf16, #tpu.memory_space<vmem>>, vector<1x32x128xbf16>,
    return
  }
  func.func @transform_0(%arg0: i32, %arg1: i32) -> (i32, i32, i32) {
    %c2_i32 = arith.constant 2 : i32
    %0 = arith.muli %arg1, %c2_i32 : i32
    %c1_i32 = arith.constant 1 : i32
    %1 = arith.subi %0, %c1_i32 : i32
    %c0_i32 = arith.constant 0 : i32
    %2 = arith.maxsi %1, %c0_i32 : i32
    %c3_i32 = arith.constant 3 : i32
    %3 = arith.minsi %2, %c3_i32 : i32
    %c0_i32_0 = arith.constant 0 : i32
    %c0_i32_1 = arith.constant 0 : i32
    return %arg0, %3, %c0_i32_0 : i32, i32, i32
  }
  func.func @transform_1(%arg0: i32, %arg1: i32) -> (i32, i32, i32) {
    %c0_i32 = arith.constant 0 : i32
    %c0_i32_0 = arith.constant 0 : i32
    return %arg0, %arg1, %c0_i32 : i32, i32, i32
  }
  func.func @transform_2(%arg0: i32, %arg1: i32) -> (i32, i32, i32) {
    %c1_i32 = arith.constant 1 : i32
    %0 = arith.addi %arg1, %c1_i32 : i32
    %c2_i32 = arith.constant 2 : i32
    %1 = arith.muli %0, %c2_i32 : i32
    %c3_i32 = arith.constant 3 : i32
    %2 = arith.minsi %1, %c3_i32 : i32
    %c0_i32 = arith.constant 0 : i32
    %c0_i32_0 = arith.constant 0 : i32
    return %arg0, %2, %c0_i32 : i32, i32, i32
  }
  func.func @transform_3(%arg0: i32, %arg1: i32) -> (i32, i32, i32) {
    %c0_i32 = arith.constant 0 : i32
    %c0_i32_0 = arith.constant 0 : i32
    %c0_i32_1 = arith.constant 0 : i32
    %c0_i32_2 = arith.constant 0 : i32
    return %c0_i32, %c0_i32_0, %c0_i32_1 : i32, i32, i32
  }
  func.func @transform_4(%arg0: i32, %arg1: i32) -> (i32, i32) {
    %c0_i32 = arith.constant 0 : i32
    %c0_i32_0 = arith.constant 0 : i32
    %c0_i32_1 = arith.constant 0 : i32
    return %c0_i32, %c0_i32_0 : i32, i32
  }
  func.func @transform_5(%arg0: i32, %arg1: i32) -> (i32, i32, i32) {
    %c0_i32 = arith.constant 0 : i32
    %c0_i32_0 = arith.constant 0 : i32
    %c0_i32_1 = arith.constant 0 : i32
    %c0_i32_2 = arith.constant 0 : i32
    return %c0_i32, %c0_i32_0, %c0_i32_1 : i32, i32, i32
  }
  func.func @transform_6(%arg0: i32, %arg1: i32) -> (i32, i32) {
    %c0_i32 = arith.constant 0 : i32
    %c0_i32_0 = arith.constant 0 : i32
    %c0_i32_1 = arith.constant 0 : i32
    return %c0_i32, %c0_i32_0 : i32, i32
  }
  func.func @transform_7(%arg0: i32, %arg1: i32) -> (i32, i32, i32) {
    %c0_i32 = arith.constant 0 : i32
    %c0_i32_0 = arith.constant 0 : i32
    return %arg0, %arg1, %c0_i32 : i32, i32, i32
  }
}

module attributes {stable_mosaic.version = 11 : i64} {
  func.func @_conv_block_kernel(%arg0: i32, %arg1: i32, %arg2: memref<1x16x128xbf16, #tpu.memory_space<vmem>>, %arg3: memref<1x32x128xbf16, #tpu.memory_space<vmem>>, %arg4: memref<1x16x128xbf16, #tpu.memory_space<vmem>>, %arg5: memref<3x128x128xbf16, #tpu.memory_space<vmem>>, %arg6: memref<1x128xf32, #tpu.memory_space<vmem>>, %arg7: memref<3x128x128xbf16, #tpu.memory_space<vmem>>, %arg8: memref<1x128xf32, #tpu.memory_space<vmem>>, %arg9: memref<128x128xbf16, #tpu.memory_space<vmem>>, %arg10: memref<1x128xf32, #tpu.memory_space<vmem>>, %arg11: memref<1x32x128xbf16, #tpu.memory_space<vmem>>) attributes {dimension_semantics = [#tpu.dimension_semantics<parallel>, #tpu.dimension_semantics<parallel>], iteration_bounds = array<i64: 2, 2>, scalar_prefetch = 0 : i64, scratch_operands = 0 : i64, tpu.core_type = #tpu.core_type<tc>, window_params = [{transform_indices = @transform_0, window_bounds = array<i64: 1, 16, 128>}, {transform_indices = @transform_1, window_bounds = array<i64: 1, 32, 128>}, {transform_indices = @transform_2, window_bounds = array<i64: 1, 16, 128>}, {pipeline_mode = #tpu.pipeline_mode<synchronous>, transform_indices = @transform_3, window_bounds = array<i64: 3, 128, 128>}, {pipeline_mode = #tpu.pipeline_mode<synchronous>, transform_indices = @transform_4, window_bounds = array<i64: 1, 128>}, {pipeline_mode = #tpu.pipeline_mode<synchronous>, transform_indices = @transform_5, window_bounds = array<i64: 3, 128, 128>}, {pipeline_mode = #tpu.pipeline_mode<synchronous>, transform_indices = @transform_6, window_bounds = array<i64: 1, 128>}, {pipeline_mode = #tpu.pipeline_mode<synchronous>, transform_indices = @transform_7, window_bounds = array<i64: 128, 128>}, {pipeline_mode = #tpu.pipeline_mode<synchronous>, transform_indices = @transform_8, window_bounds = array<i64: 1, 128>}, {transform_indices = @transform_9, window_bounds = array<i64: 1, 32, 128>}]} {
    %c0 = arith.constant 0 : index
    %c0_0 = arith.constant 0 : index
    %c0_1 = arith.constant 0 : index
    %0 = vector.load %arg2[%c0, %c0_0, %c0_1] : memref<1x16x128xbf16, #tpu.memory_space<vmem>>, vector<1x16x128xbf16>
    %1 = vector.shape_cast %0 : vector<1x16x128xbf16> to vector<16x128xbf16>
    %c0_2 = arith.constant 0 : index
    %c0_3 = arith.constant 0 : index
    %c0_4 = arith.constant 0 : index
    %2 = vector.load %arg3[%c0_2, %c0_3, %c0_4] : memref<1x32x128xbf16, #tpu.memory_space<vmem>>, vector<1x32x128xbf16>
    %3 = vector.shape_cast %2 : vector<1x32x128xbf16> to vector<32x128xbf16>
    %c0_5 = arith.constant 0 : index
    %c0_6 = arith.constant 0 : index
    %c0_7 = arith.constant 0 : index
    %4 = vector.load %arg4[%c0_5, %c0_6, %c0_7] : memref<1x16x128xbf16, #tpu.memory_space<vmem>>, vector<1x16x128xbf16>
    %5 = vector.shape_cast %4 : vector<1x16x128xbf16> to vector<16x128xbf16>
    %6 = tpu.concatenate %1, %3, %5 in 0 : vector<16x128xbf16>, vector<32x128xbf16>, vector<16x128xbf16> -> vector<64x128xbf16>
    %7 = vector.extract_strided_slice %6 {offsets = [16, 0], sizes = [32, 128], strides = [1, 1]} : vector<64x128xbf16> to vector<32x128xbf16>
    %c0_8 = arith.constant 0 : index
    %c0_9 = arith.constant 0 : index
    %8 = vector.load %arg9[%c0_8, %c0_9] : memref<128x128xbf16, #tpu.memory_space<vmem>>, vector<128x128xbf16>
    %cst = arith.constant dense<0.000000e+00> : vector<32x128xf32>
    %9 = tpu.matmul %7, %8, %cst {dimension_numbers = #tpu.dot_dimension_numbers<[1], [0], [0], [1], [0, 0, 1, 1], [], []>} : vector<32x128xbf16>, vector<128x128xbf16>, vector<32x128xf32> -> vector<32x128xf32>
    %c0_10 = arith.constant 0 : index
    %c0_11 = arith.constant 0 : index
    %10 = vector.load %arg10[%c0_10, %c0_11] : memref<1x128xf32, #tpu.memory_space<vmem>>, vector<1x128xf32>
    %11 = vector.broadcast %10 : vector<1x128xf32> to vector<32x128xf32>
    %12 = arith.addf %9, %11 : vector<32x128xf32>
    %13 = tpu.iota {dimensions = array<i32: 0>} : vector<64x1xi32>
    %c32_i32 = arith.constant 32 : i32
    %14 = arith.muli %arg1, %c32_i32 : i32
    %c16_i32 = arith.constant 16 : i32
    %15 = arith.subi %14, %c16_i32 : i32
    %16 = vector.broadcast %15 : i32 to vector<64x1xi32>
    %17 = arith.addi %13, %16 : vector<64x1xi32>
    %c0_i32 = arith.constant 0 : i32
    %18 = vector.broadcast %c0_i32 : i32 to vector<64x1xi32>
    %19 = arith.cmpi sge, %17, %18 : vector<64x1xi32>
    %c64_i32 = arith.constant 64 : i32
    %20 = vector.broadcast %c64_i32 : i32 to vector<64x1xi32>
    %21 = arith.cmpi slt, %17, %20 : vector<64x1xi32>
    %22 = arith.andi %19, %21 : vector<64x1xi1>
    %23 = arith.extf %6 : vector<64x128xbf16> to vector<64x128xf32>
    %cst_12 = arith.constant 5.000000e-01 : f32
    %24 = vector.broadcast %cst_12 : f32 to vector<64x128xf32>
    %25 = arith.mulf %24, %23 : vector<64x128xf32>
    %cst_13 = arith.constant 0.707106769 : f32
    %26 = vector.broadcast %cst_13 : f32 to vector<64x128xf32>
    %27 = arith.mulf %23, %26 : vector<64x128xf32>
    %28 = math.erf %27 : vector<64x128xf32>
    %cst_14 = arith.constant 1.000000e+00 : f32
    %29 = vector.broadcast %cst_14 : f32 to vector<64x128xf32>
    %30 = arith.addf %29, %28 : vector<64x128xf32>
    %31 = arith.mulf %25, %30 : vector<64x128xf32>
    %cst_15 = arith.constant 0.000000e+00 : f32
    %32 = vector.shape_cast %22 : vector<64x1xi1> to vector<64x1xi1>
    %33 = vector.broadcast %32 : vector<64x1xi1> to vector<64x128xi1>
    %34 = vector.broadcast %cst_15 : f32 to vector<64x128xf32>
    %35 = arith.select %33, %31, %34 : vector<64x128xi1>, vector<64x128xf32>
    %36 = arith.truncf %35 : vector<64x128xf32> to vector<64x128xbf16>
    %37 = vector.extract_strided_slice %36 {offsets = [8, 0], sizes = [40, 128], strides = [1, 1]} : vector<64x128xbf16> to vector<40x128xbf16>
    %c0_16 = arith.constant 0 : index
    %c0_17 = arith.constant 0 : index
    %c0_18 = arith.constant 0 : index
    %38 = vector.load %arg5[%c0_16, %c0_17, %c0_18] : memref<3x128x128xbf16, #tpu.memory_space<vmem>>, vector<1x128x128xbf16>
    %39 = vector.shape_cast %38 : vector<1x128x128xbf16> to vector<128x128xbf16>
    %cst_19 = arith.constant dense<0.000000e+00> : vector<40x128xf32>
    %40 = tpu.matmul %37, %39, %cst_19 {dimension_numbers = #tpu.dot_dimension_numbers<[1], [0], [0], [1], [0, 0, 1, 1], [], []>} : vector<40x128xbf16>, vector<128x128xbf16>, vector<40x128xf32> -> vector<40x128xf32>
    %41 = vector.extract_strided_slice %36 {offsets = [12, 0], sizes = [40, 128], strides = [1, 1]} : vector<64x128xbf16> to vector<40x128xbf16>
    %c1 = arith.constant 1 : index
    %c0_20 = arith.constant 0 : index
    %c0_21 = arith.constant 0 : index
    %42 = vector.load %arg5[%c1, %c0_20, %c0_21] : memref<3x128x128xbf16, #tpu.memory_space<vmem>>, vector<1x128x128xbf16>
    %43 = vector.shape_cast %42 : vector<1x128x128xbf16> to vector<128x128xbf16>
    %cst_22 = arith.constant dense<0.000000e+00> : vector<40x128xf32>
    %44 = tpu.matmul %41, %43, %cst_22 {dimension_numbers = #tpu.dot_dimension_numbers<[1], [0], [0], [1], [0, 0, 1, 1], [], []>} : vector<40x128xbf16>, vector<128x128xbf16>, vector<40x128xf32> -> vector<40x128xf32>
    %45 = arith.addf %40, %44 : vector<40x128xf32>
    %46 = vector.extract_strided_slice %36 {offsets = [16, 0], sizes = [40, 128], strides = [1, 1]} : vector<64x128xbf16> to vector<40x128xbf16>
    %c2 = arith.constant 2 : index
    %c0_23 = arith.constant 0 : index
    %c0_24 = arith.constant 0 : index
    %47 = vector.load %arg5[%c2, %c0_23, %c0_24] : memref<3x128x128xbf16, #tpu.memory_space<vmem>>, vector<1x128x128xbf16>
    %48 = vector.shape_cast %47 : vector<1x128x128xbf16> to vector<128x128xbf16>
    %cst_25 = arith.constant dense<0.000000e+00> : vector<40x128xf32>
    %49 = tpu.matmul %46, %48, %cst_25 {dimension_numbers = #tpu.dot_dimension_numbers<[1], [0], [0], [1], [0, 0, 1, 1], [], []>} : vector<40x128xbf16>, vector<128x128xbf16>, vector<40x128xf32> -> vector<40x128xf32>
    %50 = arith.addf %45, %49 : vector<40x128xf32>
    %c0_26 = arith.constant 0 : index
    %c0_27 = arith.constant 0 : index
    %51 = vector.load %arg6[%c0_26, %c0_27] : memref<1x128xf32, #tpu.memory_space<vmem>>, vector<1x128xf32>
    %52 = vector.broadcast %51 : vector<1x128xf32> to vector<40x128xf32>
    %53 = arith.addf %50, %52 : vector<40x128xf32>
    %54 = tpu.iota {dimensions = array<i32: 0>} : vector<40x1xi32>
    %c32_i32_28 = arith.constant 32 : i32
    %55 = arith.muli %arg1, %c32_i32_28 : i32
    %c4_i32 = arith.constant 4 : i32
    %56 = arith.subi %55, %c4_i32 : i32
    %57 = vector.broadcast %56 : i32 to vector<40x1xi32>
    %58 = arith.addi %54, %57 : vector<40x1xi32>
    %c0_i32_29 = arith.constant 0 : i32
    %59 = vector.broadcast %c0_i32_29 : i32 to vector<40x1xi32>
    %60 = arith.cmpi sge, %58, %59 : vector<40x1xi32>
    %c64_i32_30 = arith.constant 64 : i32
    %61 = vector.broadcast %c64_i32_30 : i32 to vector<40x1xi32>
    %62 = arith.cmpi slt, %58, %61 : vector<40x1xi32>
    %63 = arith.andi %60, %62 : vector<40x1xi1>
    %cst_31 = arith.constant 5.000000e-01 : f32
    %64 = vector.broadcast %cst_31 : f32 to vector<40x128xf32>
    %65 = arith.mulf %64, %53 : vector<40x128xf32>
    %cst_32 = arith.constant 0.707106769 : f32
    %66 = vector.broadcast %cst_32 : f32 to vector<40x128xf32>
    %67 = arith.mulf %53, %66 : vector<40x128xf32>
    %68 = math.erf %67 : vector<40x128xf32>
    %cst_33 = arith.constant 1.000000e+00 : f32
    %69 = vector.broadcast %cst_33 : f32 to vector<40x128xf32>
    %70 = arith.addf %69, %68 : vector<40x128xf32>
    %71 = arith.mulf %65, %70 : vector<40x128xf32>
    %cst_34 = arith.constant 0.000000e+00 : f32
    %72 = vector.shape_cast %63 : vector<40x1xi1> to vector<40x1xi1>
    %73 = vector.broadcast %72 : vector<40x1xi1> to vector<40x128xi1>
    %74 = vector.broadcast %cst_34 : f32 to vector<40x128xf32>
    %75 = arith.select %73, %71, %74 : vector<40x128xi1>, vector<40x128xf32>
    %76 = arith.truncf %75 : vector<40x128xf32> to vector<40x128xbf16>
    %c0_35 = arith.constant 0 : index
    %c0_36 = arith.constant 0 : index
    %77 = vector.load %arg8[%c0_35, %c0_36] : memref<1x128xf32, #tpu.memory_space<vmem>>, vector<1x128xf32>
    %78 = vector.broadcast %77 : vector<1x128xf32> to vector<32x128xf32>
    %79 = arith.addf %12, %78 : vector<32x128xf32>
    %80 = vector.extract_strided_slice %76 {offsets = [0, 0], sizes = [32, 128], strides = [1, 1]} : vector<40x128xbf16> to vector<32x128xbf16>
    %c0_37 = arith.constant 0 : index
    %c0_38 = arith.constant 0 : index
    %c0_39 = arith.constant 0 : index
    %81 = vector.load %arg7[%c0_37, %c0_38, %c0_39] : memref<3x128x128xbf16, #tpu.memory_space<vmem>>, vector<1x128x128xbf16>
    %82 = vector.shape_cast %81 : vector<1x128x128xbf16> to vector<128x128xbf16>
    %cst_40 = arith.constant dense<0.000000e+00> : vector<32x128xf32>
    %83 = tpu.matmul %80, %82, %cst_40 {dimension_numbers = #tpu.dot_dimension_numbers<[1], [0], [0], [1], [0, 0, 1, 1], [], []>} : vector<32x128xbf16>, vector<128x128xbf16>, vector<32x128xf32> -> vector<32x128xf32>
    %84 = arith.addf %79, %83 : vector<32x128xf32>
    %85 = vector.extract_strided_slice %76 {offsets = [4, 0], sizes = [32, 128], strides = [1, 1]} : vector<40x128xbf16> to vector<32x128xbf16>
    %c1_41 = arith.constant 1 : index
    %c0_42 = arith.constant 0 : index
    %c0_43 = arith.constant 0 : index
    %86 = vector.load %arg7[%c1_41, %c0_42, %c0_43] : memref<3x128x128xbf16, #tpu.memory_space<vmem>>, vector<1x128x128xbf16>
    %87 = vector.shape_cast %86 : vector<1x128x128xbf16> to vector<128x128xbf16>
    %cst_44 = arith.constant dense<0.000000e+00> : vector<32x128xf32>
    %88 = tpu.matmul %85, %87, %cst_44 {dimension_numbers = #tpu.dot_dimension_numbers<[1], [0], [0], [1], [0, 0, 1, 1], [], []>} : vector<32x128xbf16>, vector<128x128xbf16>, vector<32x128xf32> -> vector<32x128xf32>
    %89 = arith.addf %84, %88 : vector<32x128xf32>
    %90 = vector.extract_strided_slice %76 {offsets = [8, 0], sizes = [32, 128], strides = [1, 1]} : vector<40x128xbf16> to vector<32x128xbf16>
    %c2_45 = arith.constant 2 : index
    %c0_46 = arith.constant 0 : index
    %c0_47 = arith.constant 0 : index
    %91 = vector.load %arg7[%c2_45, %c0_46, %c0_47] : memref<3x128x128xbf16, #tpu.memory_space<vmem>>, vector<1x128x128xbf16>
    %92 = vector.shape_cast %91 : vector<1x128x128xbf16> to vector<128x128xbf16>
    %cst_48 = arith.constant dense<0.000000e+00> : vector<32x128xf32>
    %93 = tpu.matmul %90, %92, %cst_48 {dimension_numbers = #tpu.dot_dimension_numbers<[1], [0], [0], [1], [0, 0, 1, 1], [], []>} : vector<32x128xbf16>, vector<128x128xbf16>, vector<32x128xf32> -> vector<32x128xf32>
    %94 = arith.addf %89, %93 : vector<32x128xf32>
    %95 = arith.truncf %94 : vector<32x128xf32> to vector<32x128xbf16>
    %c0_49 = arith.constant 0 : index
    %c0_50 = arith.constant 0 : index
    %c0_51 = arith.constant 0 : index
    %96 = vector.load %arg11[%c0_49, %c0_50, %c0_51] : memref<1x32x128xbf16, #tpu.memory_space<vmem>>, vector<1x32x128xbf16>
    %97 = vector.shape_cast %96 : vector<1x32x128xbf16> to vector<32x128xbf16>
    %98 = vector.shape_cast %95 : vector<32x128xbf16> to vector<1x32x128xbf16>
    tpu.vector_store %arg11[%c0_49, %c0_50, %c0_51], %98 {strides = array<i32>} : memref<1x32x128xbf16, #tpu.memory_space<vmem>>, vector<1x32x128xbf16>,
    return
  }
  func.func @transform_0(%arg0: i32, %arg1: i32) -> (i32, i32, i32) {
    %c2_i32 = arith.constant 2 : i32
    %0 = arith.muli %arg1, %c2_i32 : i32
    %c1_i32 = arith.constant 1 : i32
    %1 = arith.subi %0, %c1_i32 : i32
    %c0_i32 = arith.constant 0 : i32
    %2 = arith.maxsi %1, %c0_i32 : i32
    %c3_i32 = arith.constant 3 : i32
    %3 = arith.minsi %2, %c3_i32 : i32
    %c0_i32_0 = arith.constant 0 : i32
    %c0_i32_1 = arith.constant 0 : i32
    return %arg0, %3, %c0_i32_0 : i32, i32, i32
  }
  func.func @transform_1(%arg0: i32, %arg1: i32) -> (i32, i32, i32) {
    %c0_i32 = arith.constant 0 : i32
    %c0_i32_0 = arith.constant 0 : i32
    return %arg0, %arg1, %c0_i32 : i32, i32, i32
  }
  func.func @transform_2(%arg0: i32, %arg1: i32) -> (i32, i32, i32) {
    %c1_i32 = arith.constant 1 : i32
    %0 = arith.addi %arg1, %c1_i32 : i32
    %c2_i32 = arith.constant 2 : i32
    %1 = arith.muli %0, %c2_i32 : i32
    %c3_i32 = arith.constant 3 : i32
    %2 = arith.minsi %1, %c3_i32 : i32
    %c0_i32 = arith.constant 0 : i32
    %c0_i32_0 = arith.constant 0 : i32
    return %arg0, %2, %c0_i32 : i32, i32, i32
  }
  func.func @transform_3(%arg0: i32, %arg1: i32) -> (i32, i32, i32) {
    %c0_i32 = arith.constant 0 : i32
    %c0_i32_0 = arith.constant 0 : i32
    %c0_i32_1 = arith.constant 0 : i32
    %c0_i32_2 = arith.constant 0 : i32
    return %c0_i32, %c0_i32_0, %c0_i32_1 : i32, i32, i32
  }
  func.func @transform_4(%arg0: i32, %arg1: i32) -> (i32, i32) {
    %c0_i32 = arith.constant 0 : i32
    %c0_i32_0 = arith.constant 0 : i32
    %c0_i32_1 = arith.constant 0 : i32
    return %c0_i32, %c0_i32_0 : i32, i32
  }
  func.func @transform_5(%arg0: i32, %arg1: i32) -> (i32, i32, i32) {
    %c0_i32 = arith.constant 0 : i32
    %c0_i32_0 = arith.constant 0 : i32
    %c0_i32_1 = arith.constant 0 : i32
    %c0_i32_2 = arith.constant 0 : i32
    return %c0_i32, %c0_i32_0, %c0_i32_1 : i32, i32, i32
  }
  func.func @transform_6(%arg0: i32, %arg1: i32) -> (i32, i32) {
    %c0_i32 = arith.constant 0 : i32
    %c0_i32_0 = arith.constant 0 : i32
    %c0_i32_1 = arith.constant 0 : i32
    return %c0_i32, %c0_i32_0 : i32, i32
  }
  func.func @transform_7(%arg0: i32, %arg1: i32) -> (i32, i32) {
    %c0_i32 = arith.constant 0 : i32
    %c0_i32_0 = arith.constant 0 : i32
    %c0_i32_1 = arith.constant 0 : i32
    return %c0_i32, %c0_i32_0 : i32, i32
  }
  func.func @transform_8(%arg0: i32, %arg1: i32) -> (i32, i32) {
    %c0_i32 = arith.constant 0 : i32
    %c0_i32_0 = arith.constant 0 : i32
    %c0_i32_1 = arith.constant 0 : i32
    return %c0_i32, %c0_i32_0 : i32, i32
  }
  func.func @transform_9(%arg0: i32, %arg1: i32) -> (i32, i32, i32) {
    %c0_i32 = arith.constant 0 : i32
    %c0_i32_0 = arith.constant 0 : i32
    return %arg0, %arg1, %c0_i32 : i32, i32, i32
  }
}

</mosaic_0001>

<llo_original>
// kernel: _lambda_.4
$region0: #{_lambda_.4}
  #allocation0 [shape = 'u32[]', space=smem, size = 0x4, offset = 0x4, fixed_abs, tag = 'smem constant byte address 0x4 - core index']
  #allocation1 [shape = 'u32[72,128]{1,0:T(1,128)}', space=vmem, size = 0x9000, scoped, tag = 'internal scratch']
  %s0 = inlined_call_operand.vmem [shape: bf16[2,64,128], index: 0, kind: input, shape index: {}, may-alias: {0,1,2}]
  %s1 = inlined_call_operand.vmem [shape: bf16[2,64,128], index: 1, kind: input, shape index: {}, may-alias: {0,1,2}]
  %s2 = inlined_call_operand.vmem [shape: bf16[2,64,128], index: 2, kind: input, shape index: {}, may-alias: {0,1,2}]
  %s3 = inlined_call_operand.hbm [shape: bf16[3,128,128], index: 3, kind: input, shape index: {}]
  %s4 = inlined_call_operand.vmem [shape: f32[1,128], index: 4, kind: input, shape index: {}]
  %s5 = inlined_call_operand.hbm [shape: bf16[3,128,128], index: 5, kind: input, shape index: {}]
  %s6 = inlined_call_operand.vmem [shape: f32[1,128], index: 6, kind: input, shape index: {}]
  %s7 = inlined_call_operand.vmem [shape: bf16[2,64,128], index: 7, kind: output, shape index: {}]
  %s8 = sld [smem:[#allocation0]]
  $region69: #{_lambda_.4} parent=0
    _
  %s10 = ssub.s32 1, %s8
  %s11 = scalar_select 0, %s10, %s8
  $region1: #{_lambda_.4} parent=0
    #allocation2 [shape = 'u8[98304]{0}', space=vmem, size = 0x18000, scoped, tag = 'input window, operand 3, single buffered']
    #allocation3 [shape = 's32[2]{0}', space=sflag, size = 0x8, scoped, tag = 'scoped memory for _lambda_.4']
    #allocation4 [shape = 'u8[98304]{0}', space=vmem, size = 0x18000, scoped, tag = 'input window, operand 5, single buffered']
    #allocation5 [shape = 's32[1]{0}', space=sflag, size = 0x4, scoped, tag = 'scoped memory for _lambda_.4']
    %12 = vsyncpa [#allocation3], 0
    %13 = vsyncpa [#allocation5], 0
    loop: start=0, step=1, limit=6
    $region2: #{_lambda_.4} parent=1 // loop_pre_header
      _
    $region3: #{_lambda_.4} parent=1 // loop_header
      %s15 = sphi 0, %s19
      %p16 = scmp.ge.s32.totalorder %s15, 6
      %s22 = sphi 0, %s34
      %s23 = sphi 0, %s30
      %s24 = sphi 0, %s22
      %s25 = sphi 0, %s23
      %s26 = sphi 0, %s24
      %s27 = sphi 0, %s25
      %s51 = sphi 0, %s53
      %s54 = sphi 0, %s51
      %s55 = sphi 0, %s54
      %s71 = sphi 0, %s55
      %s79 = sphi 0, %s81
      %s82 = sphi 0, %s79
      %s83 = sphi 0, %s82
      %s99 = sphi 0, %s83
      %s115 = sphi 0, %s117
      %s118 = sphi 0, %s115
      %s119 = sphi 0, %s118
      %s135 = sphi 0, %s119
      %s139 = sphi 0, %s139
      %s141 = sphi 0, %s139
      %s142 = sphi 0, %s141
      %s156 = sphi 0, %s142
      %s160 = sphi 0, %s160
      %s162 = sphi 0, %s160
      %s163 = sphi 0, %s162
      %s177 = sphi 0, %s163
      %s181 = sphi 0, %s181
      %s183 = sphi 0, %s181
      %s184 = sphi 0, %s183
      %s198 = sphi 0, %s184
      %s202 = sphi 0, %s202
      %s204 = sphi 0, %s202
      %s205 = sphi 0, %s204
      %s219 = sphi 0, %s205
      %s227 = sphi 0, %s229
      %s230 = sphi 0, %s227
      %s231 = sphi 0, %s230
      %s247 = sphi 0, %s231
    $region4: #{_lambda_.4} parent=1 // loop_header_branch
      %18 = sbr.rel (%p16) target = $region8
    $region5: #{_lambda_.4} parent=1 // loop_body
      %s20 = ssub.s32 %s15, 1
      %s21 = ssub.s32 %s15, 2
      %s28 = sadd.s32 1, %s23
      %p29 = scmp.ge.s32.totalorder %s28, 2
      %s30 = scalar_select %p29, 0, %s28
      %s31 = sadd.s32 1, %s22
      %s32 = scalar_select %p29, %s31, %s22
      %p33 = scmp.ge.s32.totalorder %s32, 2
      %s34 = scalar_select %p33, 0, %s32
      %s35 = smul.u32 %s23, 2
      %s36 = ssub.s32 %s35, 1
      %p37 = scmp.gt.s32.totalorder %s36, 0
      %s38 = scalar_select %p37, %s36, 0
      %p39 = scmp.lt.s32.totalorder %s38, 3
      %s40 = scalar_select %p39, %s38, 3
      %s41 = smul.u32 %s30, 2
      %s42 = ssub.s32 %s41, 1
      %p43 = scmp.gt.s32.totalorder %s42, 0
      %s44 = scalar_select %p43, %s42, 0
      %p45 = scmp.lt.s32.totalorder %s44, 3
      %s46 = scalar_select %p45, %s44, 3
      %s47 = ssub.s32 %s22, %s34
      %s48 = ssub.s32 %s40, %s46
      %s49 = sor.u32 %s47, %s48
      %p50 = scmp.eq.s32.totalorder %s49, 0
      %s52 = sadd.s32 %s51, 1
      %s53 = scalar_select %p50, %s51, %s52
      %p56 = pneg %p50
      %p57 = scmp.eq.s32.totalorder %s15, 3
      %p58 = por %p56, %p57
      %p59 = scmp.ne.s32.totalorder %s51, %s54
      %p60 = scmp.eq.s32.totalorder %s15, 0
      %p61 = por %p59, %p60
      %p62 = scmp.ne.s32.totalorder %s51, %s54
      %p63 = scmp.eq.s32.totalorder %s20, 3
      %p64 = por %p62, %p63
      %p65 = scmp.ne.s32.totalorder %s54, %s55
      %p66 = scmp.eq.s32.totalorder %s20, 0
      %p67 = por %p65, %p66
      %p68 = scmp.ne.s32.totalorder %s54, %s55
      %p69 = scmp.eq.s32.totalorder %s21, 3
      %p70 = por %p68, %p69
      %p72 = scmp.ne.s32.totalorder %s55, %s71
      %p73 = scmp.eq.s32.totalorder %s21, 0
      %p74 = por %p72, %p73
      %s75 = ssub.s32 %s22, %s34
      %s76 = ssub.s32 %s23, %s30
      %s77 = sor.u32 %s75, %s76
      %p78 = scmp.eq.s32.totalorder %s77, 0
      %s80 = sadd.s32 %s79, 1
      %s81 = scalar_select %p78, %s79, %s80
      %p84 = pneg %p78
      %p85 = scmp.eq.s32.totalorder %s15, 3
      %p86 = por %p84, %p85
      %p87 = scmp.ne.s32.totalorder %s79, %s82
      %p88 = scmp.eq.s32.totalorder %s15, 0
      %p89 = por %p87, %p88
      %p90 = scmp.ne.s32.totalorder %s79, %s82
      %p91 = scmp.eq.s32.totalorder %s20, 3
      %p92 = por %p90, %p91
      %p93 = scmp.ne.s32.totalorder %s82, %s83
      %p94 = scmp.eq.s32.totalorder %s20, 0
      %p95 = por %p93, %p94
      %p96 = scmp.ne.s32.totalorder %s82, %s83
      %p97 = scmp.eq.s32.totalorder %s21, 3
      %p98 = por %p96, %p97
      %p100 = scmp.ne.s32.totalorder %s83, %s99
      %p101 = scmp.eq.s32.totalorder %s21, 0
      %p102 = por %p100, %p101
      %s103 = sadd.s32 %s23, 1
      %s104 = smul.u32 %s103, 2
      %p105 = scmp.lt.s32.totalorder %s104, 3
      %s106 = scalar_select %p105, %s104, 3
      %s107 = sadd.s32 %s30, 1
      %s108 = smul.u32 %s107, 2
      %p109 = scmp.lt.s32.totalorder %s108, 3
      %s110 = scalar_select %p109, %s108, 3
      %s111 = ssub.s32 %s22, %s34
      %s112 = ssub.s32 %s106, %s110
      %s113 = sor.u32 %s111, %s112
      %p114 = scmp.eq.s32.totalorder %s113, 0
      %s116 = sadd.s32 %s115, 1
      %s117 = scalar_select %p114, %s115, %s116
      %p120 = pneg %p114
      %p121 = scmp.eq.s32.totalorder %s15, 3
      %p122 = por %p120, %p121
      %p123 = scmp.ne.s32.totalorder %s115, %s118
      %p124 = scmp.eq.s32.totalorder %s15, 0
      %p125 = por %p123, %p124
      %p126 = scmp.ne.s32.totalorder %s115, %s118
      %p127 = scmp.eq.s32.totalorder %s20, 3
      %p128 = por %p126, %p127
      %p129 = scmp.ne.s32.totalorder %s118, %s119
      %p130 = scmp.eq.s32.totalorder %s20, 0
      %p131 = por %p129, %p130
      %p132 = scmp.ne.s32.totalorder %s118, %s119
      %p133 = scmp.eq.s32.totalorder %s21, 3
      %p134 = por %p132, %p133
      %p136 = scmp.ne.s32.totalorder %s119, %s135
      %p137 = scmp.eq.s32.totalorder %s21, 0
      %p138 = por %p136, %p137
      %s140 = sadd.s32 %s139, 1
      %p143 = scmp.eq.s32.totalorder %s15, 3
      %p144 = scmp.ne.s32.totalorder %s139, %s141
      %p145 = scmp.eq.s32.totalorder %s15, 0
      %p146 = por %p144, %p145
      %p147 = scmp.ne.s32.totalorder %s139, %s141
      %p148 = scmp.eq.s32.totalorder %s20, 3
      %p149 = por %p147, %p148
      %p150 = scmp.ne.s32.totalorder %s141, %s142
      %p151 = scmp.eq.s32.totalorder %s20, 0
      %p152 = por %p150, %p151
      %p153 = scmp.ne.s32.totalorder %s141, %s142
      %p154 = scmp.eq.s32.totalorder %s21, 3
      %p155 = por %p153, %p154
      %p157 = scmp.ne.s32.totalorder %s142, %s156
      %p158 = scmp.eq.s32.totalorder %s21, 0
      %p159 = por %p157, %p158
      %s161 = sadd.s32 %s160, 1
      %p164 = scmp.eq.s32.totalorder %s15, 3
      %p165 = scmp.ne.s32.totalorder %s160, %s162
      %p166 = scmp.eq.s32.totalorder %s15, 0
      %p167 = por %p165, %p166
      %p168 = scmp.ne.s32.totalorder %s160, %s162
      %p169 = scmp.eq.s32.totalorder %s20, 3
      %p170 = por %p168, %p169
      %p171 = scmp.ne.s32.totalorder %s162, %s163
      %p172 = scmp.eq.s32.totalorder %s20, 0
      %p173 = por %p171, %p172
      %p174 = scmp.ne.s32.totalorder %s162, %s163
      %p175 = scmp.eq.s32.totalorder %s21, 3
      %p176 = por %p174, %p175
      %p178 = scmp.ne.s32.totalorder %s163, %s177
      %p179 = scmp.eq.s32.totalorder %s21, 0
      %p180 = por %p178, %p179
      %s182 = sadd.s32 %s181, 1
      %p185 = scmp.eq.s32.totalorder %s15, 3
      %p186 = scmp.ne.s32.totalorder %s181, %s183
      %p187 = scmp.eq.s32.totalorder %s15, 0
      %p188 = por %p186, %p187
      %p189 = scmp.ne.s32.totalorder %s181, %s183
      %p190 = scmp.eq.s32.totalorder %s20, 3
      %p191 = por %p189, %p190
      %p192 = scmp.ne.s32.totalorder %s183, %s184
      %p193 = scmp.eq.s32.totalorder %s20, 0
      %p194 = por %p192, %p193
      %p195 = scmp.ne.s32.totalorder %s183, %s184
      %p196 = scmp.eq.s32.totalorder %s21, 3
      %p197 = por %p195, %p196
      %p199 = scmp.ne.s32.totalorder %s184, %s198
      %p200 = scmp.eq.s32.totalorder %s21, 0
      %p201 = por %p199, %p200
      %s203 = sadd.s32 %s202, 1
      %p206 = scmp.eq.s32.totalorder %s15, 3
      %p207 = scmp.ne.s32.totalorder %s202, %s204
      %p208 = scmp.eq.s32.totalorder %s15, 0
      %p209 = por %p207, %p208
      %p210 = scmp.ne.s32.totalorder %s202, %s204
      %p211 = scmp.eq.s32.totalorder %s20, 3
      %p212 = por %p210, %p211
      %p213 = scmp.ne.s32.totalorder %s204, %s205
      %p214 = scmp.eq.s32.totalorder %s20, 0
      %p215 = por %p213, %p214
      %p216 = scmp.ne.s32.totalorder %s204, %s205
      %p217 = scmp.eq.s32.totalorder %s21, 3
      %p218 = por %p216, %p217
      %p220 = scmp.ne.s32.totalorder %s205, %s219
      %p221 = scmp.eq.s32.totalorder %s21, 0
      %p222 = por %p220, %p221
      %s223 = ssub.s32 %s22, %s34
      %s224 = ssub.s32 %s23, %s30
      %s225 = sor.u32 %s223, %s224
      %p226 = scmp.eq.s32.totalorder %s225, 0
      %s228 = sadd.s32 %s227, 1
      %s229 = scalar_select %p226, %s227, %s228
      %p232 = pneg %p226
      %p233 = scmp.eq.s32.totalorder %s15, 3
      %p234 = por %p232, %p233
      %p235 = scmp.ne.s32.totalorder %s227, %s230
      %p236 = scmp.eq.s32.totalorder %s15, 0
      %p237 = por %p235, %p236
      %p238 = scmp.ne.s32.totalorder %s227, %s230
      %p239 = scmp.eq.s32.totalorder %s20, 3
      %p240 = por %p238, %p239
      %p241 = scmp.ne.s32.totalorder %s230, %s231
      %p242 = scmp.eq.s32.totalorder %s20, 0
      %p243 = por %p241, %p242
      %p244 = scmp.ne.s32.totalorder %s230, %s231
      %p245 = scmp.eq.s32.totalorder %s21, 3
      %p246 = por %p244, %p245
      %p248 = scmp.ne.s32.totalorder %s231, %s247
      %p249 = scmp.eq.s32.totalorder %s21, 0
      %p250 = por %p248, %p249
      %p251 = scmp.le.s32.totalorder 1, %s15
      %p252 = scmp.lt.s32.totalorder %s15, 5
      %p253 = pnand %p251, %p252
      %p254 = pneg %p253
      // Predicated region
      $region9: #{_lambda_.4} parent=5 // pred_check
        _
      $region10: #{_lambda_.4} parent=5 // pred_check_branch
        %256 = sbr.rel (%p253) target = $region12
      $region11: #{_lambda_.4} parent=5 // pred_region
        %s257 = ssub.s32 %s15, 1
        // Predicated region
        $region13: #{_lambda_.4} parent=11 // pred_check
          %p258 = pneg %p152
        $region14: #{_lambda_.4} parent=11 // pred_check_branch
          %260 = sbr.rel (%p258) target = $region16
        $region15: #{_lambda_.4} parent=11 // pred_region
          %262 = vsyncadd [#allocation3], 0
          %s263 = sshll.u32 %s3, 4
          %s264 = int_to_ptr.hbm [resolvable:$true] %s263
          %s265 = sshll.u32 [#allocation2], 4
          %s266 = int_to_ptr.vmem [resolvable:$true] %s265
          %271 = dma.hbm_to_vmem [thread:$0]  %s264, 3072, %s266, [#allocation3], 64, 64, 4
        $region16: #{_lambda_.4} parent=11 // pred_fallthru
          _
        // Predicated region
        $region17: #{_lambda_.4} parent=11 // pred_check
          %p272 = pneg %p173
        $region18: #{_lambda_.4} parent=11 // pred_check_branch
          %274 = sbr.rel (%p272) target = $region20
        $region19: #{_lambda_.4} parent=11 // pred_region
          _
        $region20: #{_lambda_.4} parent=11 // pred_fallthru
          _
        // Predicated region
        $region21: #{_lambda_.4} parent=11 // pred_check
          %p275 = pneg %p194
        $region22: #{_lambda_.4} parent=11 // pred_check_branch
          %277 = sbr.rel (%p275) target = $region24
        $region23: #{_lambda_.4} parent=11 // pred_region
          %279 = vsyncadd [#allocation5], 0
          %s280 = sshll.u32 %s5, 4
          %s281 = int_to_ptr.hbm [resolvable:$true] %s280
          %s282 = sshll.u32 [#allocation4], 4
          %s283 = int_to_ptr.vmem [resolvable:$true] %s282
          %288 = dma.hbm_to_vmem [thread:$0]  %s281, 3072, %s283, [#allocation5], 64, 64, 4
        $region24: #{_lambda_.4} parent=11 // pred_fallthru
          _
        // Predicated region
        $region25: #{_lambda_.4} parent=11 // pred_check
          %p289 = pneg %p215
        $region26: #{_lambda_.4} parent=11 // pred_check_branch
          %291 = sbr.rel (%p289) target = $region28
        $region27: #{_lambda_.4} parent=11 // pred_region
          _
        $region28: #{_lambda_.4} parent=11 // pred_fallthru
          _
      $region12: #{_lambda_.4} parent=5 // pred_fallthru
        _
      %p292 = scmp.lt.s32.totalorder %s15, 4
      // Predicated region
      $region29: #{_lambda_.4} parent=5 // pred_check
        %p293 = pneg %p292
      $region30: #{_lambda_.4} parent=5 // pred_check_branch
        %295 = sbr.rel (%p293) target = $region32
      $region31: #{_lambda_.4} parent=5 // pred_region
        // Predicated region
        $region33: #{_lambda_.4} parent=31 // pred_check
          %p296 = pneg %p61
        $region34: #{_lambda_.4} parent=31 // pred_check_branch
          %298 = sbr.rel (%p296) target = $region36
        $region35: #{_lambda_.4} parent=31 // pred_region
          %s299 = smul.u32 %s23, 2
          %s300 = ssub.s32 %s299, 1
          %p301 = scmp.gt.s32.totalorder %s300, 0
          %s302 = scalar_select %p301, %s300, 0
          %p303 = scmp.lt.s32.totalorder %s302, 3
          %s304 = scalar_select %p303, %s302, 3
          %s305 = smul.u32 2, %s304
          %p306 = scmp.lt.s32.totalorder %s22, 1
          %s307 = scalar_select %p306, %s22, 1
          %p308 = scmp.lt.s32.totalorder %s305, 7
          %s309 = scalar_select %p308, %s305, 7
          %s310 = smul.addr %s307, 8
          %s311 = sadd.s32 %s309, %s310
          %s312 = smul.addr %s311, 4
          %s313 = scalar_lea.vmem %s0, %s312
          %s314 = smul.u32 %s23, 2
          %s315 = ssub.s32 %s314, 1
          %p316 = scmp.gt.s32.totalorder %s315, 0
          %s317 = scalar_select %p316, %s315, 0
          %p318 = scmp.lt.s32.totalorder %s317, 3
          %s319 = scalar_select %p318, %s317, 3
          %s320 = smul.u32 2, %s319
        $region36: #{_lambda_.4} parent=31 // pred_fallthru
          _
        // Predicated region
        $region37: #{_lambda_.4} parent=31 // pred_check
          %p321 = pneg %p89
        $region38: #{_lambda_.4} parent=31 // pred_check_branch
          %323 = sbr.rel (%p321) target = $region40
        $region39: #{_lambda_.4} parent=31 // pred_region
          %s324 = smul.u32 4, %s23
          %p325 = scmp.lt.s32.totalorder %s22, 1
          %s326 = scalar_select %p325, %s22, 1
          %p327 = scmp.lt.s32.totalorder %s324, 7
          %s328 = scalar_select %p327, %s324, 7
          %s329 = smul.addr %s326, 8
          %s330 = sadd.s32 %s328, %s329
          %s331 = smul.addr %s330, 4
          %s332 = scalar_lea.vmem %s1, %s331
          %s333 = smul.u32 4, %s23
        $region40: #{_lambda_.4} parent=31 // pred_fallthru
          _
        // Predicated region
        $region41: #{_lambda_.4} parent=31 // pred_check
          %p334 = pneg %p125
        $region42: #{_lambda_.4} parent=31 // pred_check_branch
          %336 = sbr.rel (%p334) target = $region44
        $region43: #{_lambda_.4} parent=31 // pred_region
          %s337 = sadd.s32 %s23, 1
          %s338 = smul.u32 %s337, 2
          %p339 = scmp.lt.s32.totalorder %s338, 3
          %s340 = scalar_select %p339, %s338, 3
          %s341 = smul.u32 2, %s340
          %p342 = scmp.lt.s32.totalorder %s22, 1
          %s343 = scalar_select %p342, %s22, 1
          %p344 = scmp.lt.s32.totalorder %s341, 7
          %s345 = scalar_select %p344, %s341, 7
          %s346 = smul.addr %s343, 8
          %s347 = sadd.s32 %s345, %s346
          %s348 = smul.addr %s347, 4
          %s349 = scalar_lea.vmem %s2, %s348
          %s350 = sadd.s32 %s23, 1
          %s351 = smul.u32 %s350, 2
          %p352 = scmp.lt.s32.totalorder %s351, 3
          %s353 = scalar_select %p352, %s351, 3
          %s354 = smul.u32 2, %s353
        $region44: #{_lambda_.4} parent=31 // pred_fallthru
          _
      $region32: #{_lambda_.4} parent=5 // pred_fallthru
        _
      %p355 = scmp.le.s32.totalorder 1, %s15
      %p356 = scmp.lt.s32.totalorder %s15, 5
      %p357 = pnand %p355, %p356
      %p358 = pneg %p357
      // Predicated region
      $region45: #{_lambda_.4} parent=5 // pred_check
        _
      $region46: #{_lambda_.4} parent=5 // pred_check_branch
        %360 = sbr.rel (%p357) target = $region48
      $region47: #{_lambda_.4} parent=5 // pred_region
        %s361 = ssub.s32 %s15, 1
        // Predicated region
        $region49: #{_lambda_.4} parent=47 // pred_check
          %p362 = pneg %p152
        $region50: #{_lambda_.4} parent=47 // pred_check_branch
          %364 = sbr.rel (%p362) target = $region52
        $region51: #{_lambda_.4} parent=47 // pred_region
          %366 = dma.done [#allocation3], 3072
        $region52: #{_lambda_.4} parent=47 // pred_fallthru
          _
        // Predicated region
        $region53: #{_lambda_.4} parent=47 // pred_check
          %p367 = pneg %p194
        $region54: #{_lambda_.4} parent=47 // pred_check_branch
          %369 = sbr.rel (%p367) target = $region56
        $region55: #{_lambda_.4} parent=47 // pred_region
          %371 = dma.done [#allocation5], 3072
        $region56: #{_lambda_.4} parent=47 // pred_fallthru
          _
        %s372 = smul.u32 %s25, 2
        %s373 = ssub.s32 %s372, 1
        %p374 = scmp.gt.s32.totalorder %s373, 0
        %s375 = scalar_select %p374, %s373, 0
        %p376 = scmp.lt.s32.totalorder %s375, 3
        %s377 = scalar_select %p376, %s375, 3
        %s378 = smul.u32 2, %s377
        %p379 = scmp.lt.s32.totalorder %s24, 1
        %s380 = scalar_select %p379, %s24, 1
        %p381 = scmp.lt.s32.totalorder %s378, 7
        %s382 = scalar_select %p381, %s378, 7
        %s383 = smul.addr %s380, 8
        %s384 = sadd.s32 %s382, %s383
        %s385 = smul.addr %s384, 4
        %s386 = scalar_lea.vmem %s0, %s385
        %p387 = pneg %p67
        %p388 = pneg %p64
        %s389 = smul.u32 4, %s25
        %p390 = scmp.lt.s32.totalorder %s24, 1
        %s391 = scalar_select %p390, %s24, 1
        %p392 = scmp.lt.s32.totalorder %s389, 7
        %s393 = scalar_select %p392, %s389, 7
        %s394 = smul.addr %s391, 8
        %s395 = sadd.s32 %s393, %s394
        %s396 = smul.addr %s395, 4
        %s397 = scalar_lea.vmem %s1, %s396
        %p398 = pneg %p95
        %p399 = pneg %p92
        %s400 = sadd.s32 %s25, 1
        %s401 = smul.u32 %s400, 2
        %p402 = scmp.lt.s32.totalorder %s401, 3
        %s403 = scalar_select %p402, %s401, 3
        %s404 = smul.u32 2, %s403
        %p405 = scmp.lt.s32.totalorder %s24, 1
        %s406 = scalar_select %p405, %s24, 1
        %p407 = scmp.lt.s32.totalorder %s404, 7
        %s408 = scalar_select %p407, %s404, 7
        %s409 = smul.addr %s406, 8
        %s410 = sadd.s32 %s408, %s409
        %s411 = smul.addr %s410, 4
        %s412 = scalar_lea.vmem %s2, %s411
        %p413 = pneg %p131
        %p414 = pneg %p128
        %p415 = pneg %p152
        %p416 = pneg %p149
        %p417 = pneg %p173
        %p418 = pneg %p170
        %p419 = pneg %p194
        %p420 = pneg %p191
        %p421 = pneg %p215
        %p422 = pneg %p212
        %p423 = pneg %p243
        %p424 = pneg %p240
        %s425 = smul.u32 4, %s25
        %p426 = scmp.lt.s32.totalorder %s24, 1
        %s427 = scalar_select %p426, %s24, 1
        %p428 = scmp.lt.s32.totalorder %s425, 7
        %s429 = scalar_select %p428, %s425, 7
        %s430 = smul.addr %s427, 8
        %s431 = sadd.s32 %s429, %s430
        %s432 = smul.addr %s431, 4
        %s433 = scalar_lea.vmem %s7, %s432
        %s434 = smul.u32 %s25, 2
        %s435 = ssub.s32 %s434, 1
        %p436 = scmp.gt.s32.totalorder %s435, 0
        %s437 = scalar_select %p436, %s435, 0
        %p438 = scmp.lt.s32.totalorder %s437, 3
        %s439 = scalar_select %p438, %s437, 3
        %s440 = smul.u32 2, %s439
        %p441 = scmp.lt.s32.totalorder %s24, 1
        %s442 = scalar_select %p441, %s24, 1
        %p443 = scmp.lt.s32.totalorder %s440, 7
        %s444 = scalar_select %p443, %s440, 7
        %s445 = smul.addr %s442, 8
        %s446 = sadd.s32 %s444, %s445
        %s447 = smul.addr %s446, 4
        %s448 = scalar_lea.vmem %s0, %s447
        %s449 = smul.u32 %s25, 2
        %s450 = ssub.s32 %s449, 1
        %p451 = scmp.gt.s32.totalorder %s450, 0
        %s452 = scalar_select %p451, %s450, 0
        %p453 = scmp.lt.s32.totalorder %s452, 3
        %s454 = scalar_select %p453, %s452, 3
        %s455 = smul.u32 2, %s454
        %s456 = smul.u32 4, %s25
        %p457 = scmp.lt.s32.totalorder %s24, 1
        %s458 = scalar_select %p457, %s24, 1
        %p459 = scmp.lt.s32.totalorder %s456, 7
        %s460 = scalar_select %p459, %s456, 7
        %s461 = smul.addr %s458, 8
        %s462 = sadd.s32 %s460, %s461
        %s463 = smul.addr %s462, 4
        %s464 = scalar_lea.vmem %s1, %s463
        %s465 = smul.u32 4, %s25
        %s466 = sadd.s32 %s25, 1
        %s467 = smul.u32 %s466, 2
        %p468 = scmp.lt.s32.totalorder %s467, 3
        %s469 = scalar_select %p468, %s467, 3
        %s470 = smul.u32 2, %s469
        %p471 = scmp.lt.s32.totalorder %s24, 1
        %s472 = scalar_select %p471, %s24, 1
        %p473 = scmp.lt.s32.totalorder %s470, 7
        %s474 = scalar_select %p473, %s470, 7
        %s475 = smul.addr %s472, 8
        %s476 = sadd.s32 %s474, %s475
        %s477 = smul.addr %s476, 4
        %s478 = scalar_lea.vmem %s2, %s477
        %s479 = sadd.s32 %s25, 1
        %s480 = smul.u32 %s479, 2
        %p481 = scmp.lt.s32.totalorder %s480, 3
        %s482 = scalar_select %p481, %s480, 3
        %s483 = smul.u32 2, %s482
        %s484 = smul.u32 4, %s25
        %p485 = scmp.lt.s32.totalorder %s24, 1
        %s486 = scalar_select %p485, %s24, 1
        %p487 = scmp.lt.s32.totalorder %s484, 7
        %s488 = scalar_select %p487, %s484, 7
        %s489 = smul.addr %s486, 8
        %s490 = sadd.s32 %s488, %s489
        %s491 = smul.addr %s490, 4
        %s492 = scalar_lea.vmem %s7, %s491
        %s493 = smul.u32 4, %s25
        %v494 = vld [vmem:[%s448] sm:$0xf]
        %v495 = vld [vmem:[%s448 + $0x4] sm:$0xf]
        %v496 = vld [vmem:[%s464] sm:$0xf]
        %v497 = vld [vmem:[%s464 + $0x4] sm:$0xf]
        %v498 = vld [vmem:[%s464 + $0x8] sm:$0xf]
        %v499 = vld [vmem:[%s464 + $0xc] sm:$0xf]
        %v500 = vld [vmem:[%s478] sm:$0xf]
        %v501 = vld [vmem:[%s478 + $0x4] sm:$0xf]
        %v504 = vunpack.c.l.b16 %v494
        %v505 = vunpack.c.l.b16 %v495
        %v506 = vpack.c.b16 %v505, %v504
        %v512 = vunpack.c.l.b16 %v496
        %v513 = vunpack.c.l.b16 %v497
        %v514 = vunpack.c.l.b16 %v498
        %v515 = vunpack.c.l.b16 %v499
        %v516 = vpack.c.b16 %v513, %v512
        %v517 = vpack.c.b16 %v515, %v514
        %v522 = vunpack.c.l.b16 %v500
        %v523 = vunpack.c.l.b16 %v501
        %v524 = vpack.c.b16 %v523, %v522
        %v526 = vunpack.c.l.bf16 %v516
        %v527 = vunpack.c.h.bf16 %v516
        %v528 = vunpack.c.l.bf16 %v517
        %v529 = vunpack.c.h.bf16 %v517
        %v530 = vlaneseq
        %v531 = vshrl.u32 %v530, 7
        %v532 = vadd.s32 %v531, 8
        %v533 = vadd.s32 %v531, 16
        %v534 = vadd.s32 %v531, 24
        %v535 = vadd.s32 %v531, 32
        %v536 = vadd.s32 %v531, 40
        %v537 = vadd.s32 %v531, 48
        %s538 = smul.u32 %s25, 32
        %s539 = ssub.s32 %s538, 16
        %v540 = vstv %s539
        %v541 = vadd.s32 %v532, %v540
        %v542 = vadd.s32 %v533, %v540
        %v543 = vadd.s32 %v534, %v540
        %v544 = vadd.s32 %v535, %v540
        %v545 = vadd.s32 %v536, %v540
        %v546 = vadd.s32 %v537, %v540
        %vm547 = vcmp.ge.s32.totalorder %v541, 0
        %vm548 = vcmp.ge.s32.totalorder %v542, 0
        %vm549 = vcmp.ge.s32.totalorder %v543, 0
        %vm550 = vcmp.ge.s32.totalorder %v544, 0
        %vm551 = vcmp.ge.s32.totalorder %v545, 0
        %vm552 = vcmp.ge.s32.totalorder %v546, 0
        %vm553 = vcmp.lt.s32.totalorder %v541, 64
        %vm554 = vcmp.lt.s32.totalorder %v542, 64
        %vm555 = vcmp.lt.s32.totalorder %v543, 64
        %vm556 = vcmp.lt.s32.totalorder %v544, 64
        %vm557 = vcmp.lt.s32.totalorder %v545, 64
        %vm558 = vcmp.lt.s32.totalorder %v546, 64
        %vm559 = vmand %vm547, %vm553
        %vm560 = vmand %vm548, %vm554
        %vm561 = vmand %vm549, %vm555
        %vm562 = vmand %vm550, %vm556
        %vm563 = vmand %vm551, %vm557
        %vm564 = vmand %vm552, %vm558
        %v565 = vunpack.c.h.bf16 %v506
        %v566 = vunpack.c.l.bf16 %v524
        %v567 = vmul.f32 %v565, 0.5
        %v568 = vmul.f32 %v526, 0.5
        %v569 = vmul.f32 %v527, 0.5
        %v570 = vmul.f32 %v528, 0.5
        %v571 = vmul.f32 %v529, 0.5
        %v572 = vmul.f32 %v566, 0.5
        %v573 = vmul.f32 %v565, 0.70710677
        %v574 = vmul.f32 %v526, 0.70710677
        %v575 = vmul.f32 %v527, 0.70710677
        %v576 = vmul.f32 %v528, 0.70710677
        %v577 = vmul.f32 %v529, 0.70710677
        %v578 = vmul.f32 %v566, 0.70710677
        %v579 = vmul.f32 %v573, %v573
        %v580 = vmin.f32 16.0, %v579
        %v581 = vmul.f32 %v580, 2.1237322e-06
        %v582 = vadd.f32 %v581, 0.00028619796
        %v583 = vmul.f32 %v580, %v582
        %v584 = vadd.f32 %v583, 0.0036580483
        %v585 = vmul.f32 %v580, %v584
        %v586 = vadd.f32 %v585, 0.05243302
        %v587 = vmul.f32 %v580, %v586
        %v588 = vadd.f32 %v587, 0.18741608
        %v589 = vmul.f32 %v580, %v588
        %v590 = vadd.f32 %v589, 1.1283791
        %v591 = vmul.f32 %v573, %v590
        %v592 = vmul.f32 %v580, 3.8918573e-05
        %v593 = vadd.f32 %v592, 0.001143296
        %v594 = vmul.f32 %v580, %v593
        %v595 = vadd.f32 %v594, 0.014752088
        %v596 = vmul.f32 %v580, %v595
        %v597 = vadd.f32 %v596, 0.112945676
        %v598 = vmul.f32 %v580, %v597
        %v599 = vadd.f32 %v598, 0.4994258
        %v600 = vmul.f32 %v580, %v599
        %v601 = vadd.f32 %v600, 1.0
        %v602 = vrcp.pop %v601
        %v603 = vmul.f32 %v601, %v602
        %v604 = vsub.f32 1.0, %v603
        %v605 = vmul.f32 %v602, %v604
        %v606 = vadd.f32 %v602, %v605
        %vm607 = vweird.f32 %v601
        %vm608 = vweird.f32 %v602
        %vm609 = vmor %vm607, %vm608
        %v610 = vsel %vm609, %v602, %v606
        %v611 = vand.u32 2147483647, %v601
        %vm612 = vcmp.eq.f32.partialorder %v611, 8.507059e+37
        %v613 = vand.u32 %v601, 2147483648
        %v614 = vor.u32 1.1754944e-38, %v613
        %v615 = vsel %vm612, %v614, %v610
        %v616 = vmul.f32 %v591, %v615
        %v617 = vmin.f32 %v616, 1.0
        %v618 = vmax.f32 %v617, -1.0
        %v619 = vmul.f32 %v574, %v574
        %v620 = vmin.f32 16.0, %v619
        %v621 = vmul.f32 %v620, 2.1237322e-06
        %v622 = vadd.f32 %v621, 0.00028619796
        %v623 = vmul.f32 %v620, %v622
        %v624 = vadd.f32 %v623, 0.0036580483
        %v625 = vmul.f32 %v620, %v624
        %v626 = vadd.f32 %v625, 0.05243302
        %v627 = vmul.f32 %v620, %v626
        %v628 = vadd.f32 %v627, 0.18741608
        %v629 = vmul.f32 %v620, %v628
        %v630 = vadd.f32 %v629, 1.1283791
        %v631 = vmul.f32 %v574, %v630
        %v632 = vmul.f32 %v620, 3.8918573e-05
        %v633 = vadd.f32 %v632, 0.001143296
        %v634 = vmul.f32 %v620, %v633
        %v635 = vadd.f32 %v634, 0.014752088
        %v636 = vmul.f32 %v620, %v635
        %v637 = vadd.f32 %v636, 0.112945676
        %v638 = vmul.f32 %v620, %v637
        %v639 = vadd.f32 %v638, 0.4994258
        %v640 = vmul.f32 %v620, %v639
        %v641 = vadd.f32 %v640, 1.0
        %v642 = vrcp.pop %v641
        %v643 = vmul.f32 %v641, %v642
        %v644 = vsub.f32 1.0, %v643
        %v645 = vmul.f32 %v642, %v644
        %v646 = vadd.f32 %v642, %v645
        %vm647 = vweird.f32 %v641
        %vm648 = vweird.f32 %v642
        %vm649 = vmor %vm647, %vm648
        %v650 = vsel %vm649, %v642, %v646
        %v651 = vand.u32 2147483647, %v641
        %vm652 = vcmp.eq.f32.partialorder %v651, 8.507059e+37
        %v653 = vand.u32 %v641, 2147483648
        %v654 = vor.u32 1.1754944e-38, %v653
        %v655 = vsel %vm652, %v654, %v650
        %v656 = vmul.f32 %v631, %v655
        %v657 = vmin.f32 %v656, 1.0
        %v658 = vmax.f32 %v657, -1.0
        %v659 = vmul.f32 %v575, %v575
        %v660 = vmin.f32 16.0, %v659
        %v661 = vmul.f32 %v660, 2.1237322e-06
        %v662 = vadd.f32 %v661, 0.00028619796
        %v663 = vmul.f32 %v660, %v662
        %v664 = vadd.f32 %v663, 0.0036580483
        %v665 = vmul.f32 %v660, %v664
        %v666 = vadd.f32 %v665, 0.05243302
        %v667 = vmul.f32 %v660, %v666
        %v668 = vadd.f32 %v667, 0.18741608
        %v669 = vmul.f32 %v660, %v668
        %v670 = vadd.f32 %v669, 1.1283791
        %v671 = vmul.f32 %v575, %v670
        %v672 = vmul.f32 %v660, 3.8918573e-05
        %v673 = vadd.f32 %v672, 0.001143296
        %v674 = vmul.f32 %v660, %v673
        %v675 = vadd.f32 %v674, 0.014752088
        %v676 = vmul.f32 %v660, %v675
        %v677 = vadd.f32 %v676, 0.112945676
        %v678 = vmul.f32 %v660, %v677
        %v679 = vadd.f32 %v678, 0.4994258
        %v680 = vmul.f32 %v660, %v679
        %v681 = vadd.f32 %v680, 1.0
        %v682 = vrcp.pop %v681
        %v683 = vmul.f32 %v681, %v682
        %v684 = vsub.f32 1.0, %v683
        %v685 = vmul.f32 %v682, %v684
        %v686 = vadd.f32 %v682, %v685
        %vm687 = vweird.f32 %v681
        %vm688 = vweird.f32 %v682
        %vm689 = vmor %vm687, %vm688
        %v690 = vsel %vm689, %v682, %v686
        %v691 = vand.u32 2147483647, %v681
        %vm692 = vcmp.eq.f32.partialorder %v691, 8.507059e+37
        %v693 = vand.u32 %v681, 2147483648
        %v694 = vor.u32 1.1754944e-38, %v693
        %v695 = vsel %vm692, %v694, %v690
        %v696 = vmul.f32 %v671, %v695
        %v697 = vmin.f32 %v696, 1.0
        %v698 = vmax.f32 %v697, -1.0
        %v699 = vmul.f32 %v576, %v576
        %v700 = vmin.f32 16.0, %v699
        %v701 = vmul.f32 %v700, 2.1237322e-06
        %v702 = vadd.f32 %v701, 0.00028619796
        %v703 = vmul.f32 %v700, %v702
        %v704 = vadd.f32 %v703, 0.0036580483
        %v705 = vmul.f32 %v700, %v704
        %v706 = vadd.f32 %v705, 0.05243302
        %v707 = vmul.f32 %v700, %v706
        %v708 = vadd.f32 %v707, 0.18741608
        %v709 = vmul.f32 %v700, %v708
        %v710 = vadd.f32 %v709, 1.1283791
        %v711 = vmul.f32 %v576, %v710
        %v712 = vmul.f32 %v700, 3.8918573e-05
        %v713 = vadd.f32 %v712, 0.001143296
        %v714 = vmul.f32 %v700, %v713
        %v715 = vadd.f32 %v714, 0.014752088
        %v716 = vmul.f32 %v700, %v715
        %v717 = vadd.f32 %v716, 0.112945676
        %v718 = vmul.f32 %v700, %v717
        %v719 = vadd.f32 %v718, 0.4994258
        %v720 = vmul.f32 %v700, %v719
        %v721 = vadd.f32 %v720, 1.0
        %v722 = vrcp.pop %v721
        %v723 = vmul.f32 %v721, %v722
        %v724 = vsub.f32 1.0, %v723
        %v725 = vmul.f32 %v722, %v724
        %v726 = vadd.f32 %v722, %v725
        %vm727 = vweird.f32 %v721
        %vm728 = vweird.f32 %v722
        %vm729 = vmor %vm727, %vm728
        %v730 = vsel %vm729, %v722, %v726
        %v731 = vand.u32 2147483647, %v721
        %vm732 = vcmp.eq.f32.partialorder %v731, 8.507059e+37
        %v733 = vand.u32 %v721, 2147483648
        %v734 = vor.u32 1.1754944e-38, %v733
        %v735 = vsel %vm732, %v734, %v730
        %v736 = vmul.f32 %v711, %v735
        %v737 = vmin.f32 %v736, 1.0
        %v738 = vmax.f32 %v737, -1.0
        %v739 = vmul.f32 %v577, %v577
        %v740 = vmin.f32 16.0, %v739
        %v741 = vmul.f32 %v740, 2.1237322e-06
        %v742 = vadd.f32 %v741, 0.00028619796
        %v743 = vmul.f32 %v740, %v742
        %v744 = vadd.f32 %v743, 0.0036580483
        %v745 = vmul.f32 %v740, %v744
        %v746 = vadd.f32 %v745, 0.05243302
        %v747 = vmul.f32 %v740, %v746
        %v748 = vadd.f32 %v747, 0.18741608
        %v749 = vmul.f32 %v740, %v748
        %v750 = vadd.f32 %v749, 1.1283791
        %v751 = vmul.f32 %v577, %v750
        %v752 = vmul.f32 %v740, 3.8918573e-05
        %v753 = vadd.f32 %v752, 0.001143296
        %v754 = vmul.f32 %v740, %v753
        %v755 = vadd.f32 %v754, 0.014752088
        %v756 = vmul.f32 %v740, %v755
        %v757 = vadd.f32 %v756, 0.112945676
        %v758 = vmul.f32 %v740, %v757
        %v759 = vadd.f32 %v758, 0.4994258
        %v760 = vmul.f32 %v740, %v759
        %v761 = vadd.f32 %v760, 1.0
        %v762 = vrcp.pop %v761
        %v763 = vmul.f32 %v761, %v762
        %v764 = vsub.f32 1.0, %v763
        %v765 = vmul.f32 %v762, %v764
        %v766 = vadd.f32 %v762, %v765
        %vm767 = vweird.f32 %v761
        %vm768 = vweird.f32 %v762
        %vm769 = vmor %vm767, %vm768
        %v770 = vsel %vm769, %v762, %v766
        %v771 = vand.u32 2147483647, %v761
        %vm772 = vcmp.eq.f32.partialorder %v771, 8.507059e+37
        %v773 = vand.u32 %v761, 2147483648
        %v774 = vor.u32 1.1754944e-38, %v773
        %v775 = vsel %vm772, %v774, %v770
        %v776 = vmul.f32 %v751, %v775
        %v777 = vmin.f32 %v776, 1.0
        %v778 = vmax.f32 %v777, -1.0
        %v779 = vmul.f32 %v578, %v578
        %v780 = vmin.f32 16.0, %v779
        %v781 = vmul.f32 %v780, 2.1237322e-06
        %v782 = vadd.f32 %v781, 0.00028619796
        %v783 = vmul.f32 %v780, %v782
        %v784 = vadd.f32 %v783, 0.0036580483
        %v785 = vmul.f32 %v780, %v784
        %v786 = vadd.f32 %v785, 0.05243302
        %v787 = vmul.f32 %v780, %v786
        %v788 = vadd.f32 %v787, 0.18741608
        %v789 = vmul.f32 %v780, %v788
        %v790 = vadd.f32 %v789, 1.1283791
        %v791 = vmul.f32 %v578, %v790
        %v792 = vmul.f32 %v780, 3.8918573e-05
        %v793 = vadd.f32 %v792, 0.001143296
        %v794 = vmul.f32 %v780, %v793
        %v795 = vadd.f32 %v794, 0.014752088
        %v796 = vmul.f32 %v780, %v795
        %v797 = vadd.f32 %v796, 0.112945676
        %v798 = vmul.f32 %v780, %v797
        %v799 = vadd.f32 %v798, 0.4994258
        %v800 = vmul.f32 %v780, %v799
        %v801 = vadd.f32 %v800, 1.0
        %v802 = vrcp.pop %v801
        %v803 = vmul.f32 %v801, %v802
        %v804 = vsub.f32 1.0, %v803
        %v805 = vmul.f32 %v802, %v804
        %v806 = vadd.f32 %v802, %v805
        %vm807 = vweird.f32 %v801
        %vm808 = vweird.f32 %v802
        %vm809 = vmor %vm807, %vm808
        %v810 = vsel %vm809, %v802, %v806
        %v811 = vand.u32 2147483647, %v801
        %vm812 = vcmp.eq.f32.partialorder %v811, 8.507059e+37
        %v813 = vand.u32 %v801, 2147483648
        %v814 = vor.u32 1.1754944e-38, %v813
        %v815 = vsel %vm812, %v814, %v810
        %v816 = vmul.f32 %v791, %v815
        %v817 = vmin.f32 %v816, 1.0
        %v818 = vmax.f32 %v817, -1.0
        %v819 = vadd.f32 %v618, 1.0
        %v820 = vadd.f32 %v658, 1.0
        %v821 = vadd.f32 %v698, 1.0
        %v822 = vadd.f32 %v738, 1.0
        %v823 = vadd.f32 %v778, 1.0
        %v824 = vadd.f32 %v818, 1.0
        %v825 = vmul.f32 %v567, %v819
        %v826 = vmul.f32 %v568, %v820
        %v827 = vmul.f32 %v569, %v821
        %v828 = vmul.f32 %v570, %v822
        %v829 = vmul.f32 %v571, %v823
        %v830 = vmul.f32 %v572, %v824
        %v831 = vsel %vm559, 1, 0
        %v832 = vsel %vm560, 1, 0
        %v833 = vsel %vm561, 1, 0
        %v834 = vsel %vm562, 1, 0
        %v835 = vsel %vm563, 1, 0
        %v836 = vsel %vm564, 1, 0
        %vm837 = vcmp.eq.s32.totalorder %v831, 1
        %vm838 = vcmp.eq.s32.totalorder %v832, 1
        %vm839 = vcmp.eq.s32.totalorder %v833, 1
        %vm840 = vcmp.eq.s32.totalorder %v834, 1
        %vm841 = vcmp.eq.s32.totalorder %v835, 1
        %vm842 = vcmp.eq.s32.totalorder %v836, 1
        %v843 = vsel %vm837, %v825, 0.0
        %v844 = vsel %vm838, %v826, 0.0
        %v845 = vsel %vm839, %v827, 0.0
        %v846 = vsel %vm840, %v828, 0.0
        %v847 = vsel %vm841, %v829, 0.0
        %v848 = vsel %vm842, %v830, 0.0
        %v849 = vpack.c.bf16 %v843, %v843
        %v850 = vpack.c.bf16 %v844, %v844
        %v851 = vpack.c.bf16 %v845, %v845
        %v852 = vpack.c.bf16 %v846, %v846
        %v853 = vpack.c.bf16 %v847, %v847
        %v854 = vpack.c.bf16 %v848, %v848
        %v855 = vld [vmem:[#allocation2] sm:$0xf]
        %v856 = vld [vmem:[#allocation2 + $0x4] sm:$0xf]
        %v857 = vld [vmem:[#allocation2 + $0x8] sm:$0xf]
        %v858 = vld [vmem:[#allocation2 + $0xc] sm:$0xf]
        %v859 = vld [vmem:[#allocation2 + $0x10] sm:$0xf]
        %v860 = vld [vmem:[#allocation2 + $0x14] sm:$0xf]
        %v861 = vld [vmem:[#allocation2 + $0x18] sm:$0xf]
        %v862 = vld [vmem:[#allocation2 + $0x1c] sm:$0xf]
        %v863 = vld [vmem:[#allocation2 + $0x20] sm:$0xf]
        %v864 = vld [vmem:[#allocation2 + $0x24] sm:$0xf]
        %v865 = vld [vmem:[#allocation2 + $0x28] sm:$0xf]
        %v866 = vld [vmem:[#allocation2 + $0x2c] sm:$0xf]
        %v867 = vld [vmem:[#allocation2 + $0x30] sm:$0xf]
        %v868 = vld [vmem:[#allocation2 + $0x34] sm:$0xf]
        %v869 = vld [vmem:[#allocation2 + $0x38] sm:$0xf]
        %v870 = vld [vmem:[#allocation2 + $0x3c] sm:$0xf]
        %s871 = scalar_lea.vmem [#allocation2], 64
        %v872 = vld [vmem:[%s871] sm:$0xf]
        %v873 = vld [vmem:[%s871 + $0x4] sm:$0xf]
        %v874 = vld [vmem:[%s871 + $0x8] sm:$0xf]
        %v875 = vld [vmem:[%s871 + $0xc] sm:$0xf]
        %v876 = vld [vmem:[%s871 + $0x10] sm:$0xf]
        %v877 = vld [vmem:[%s871 + $0x14] sm:$0xf]
        %v878 = vld [vmem:[%s871 + $0x18] sm:$0xf]
        %v879 = vld [vmem:[%s871 + $0x1c] sm:$0xf]
        %v880 = vld [vmem:[%s871 + $0x20] sm:$0xf]
        %v881 = vld [vmem:[%s871 + $0x24] sm:$0xf]
        %v882 = vld [vmem:[%s871 + $0x28] sm:$0xf]
        %v883 = vld [vmem:[%s871 + $0x2c] sm:$0xf]
        %v884 = vld [vmem:[%s871 + $0x30] sm:$0xf]
        %v885 = vld [vmem:[%s871 + $0x34] sm:$0xf]
        %v886 = vld [vmem:[%s871 + $0x38] sm:$0xf]
        %v887 = vld [vmem:[%s871 + $0x3c] sm:$0xf]
        %v894 = vunpack.c.l.b16 %v849
        %v895 = vunpack.c.l.b16 %v850
        %v896 = vunpack.c.l.b16 %v851
        %v897 = vunpack.c.l.b16 %v852
        %v898 = vunpack.c.l.b16 %v853
        %v899 = vunpack.c.l.b16 %v854
        %v900 = vpack.c.b16 %v895, %v894
        %v901 = vpack.c.b16 %v897, %v896
        %v902 = vpack.c.b16 %v899, %v898
        %vm903 = vcmask 1044480
        %v904 = vrot.slane %v900, 3
        %v905 = vrot.slane %v901, 3
        %v906 = vsel %vm903, %v904, %v905
        %v907 = vrot.slane %v902, 3
        %v908 = vsel %vm903, %v905, %v907
        %v928 = vunpack.c.l.b16 %v872
        %v929 = vunpack.c.l.b16 %v873
        %v930 = vunpack.c.l.b16 %v874
        %v931 = vunpack.c.l.b16 %v875
        %v932 = vunpack.c.l.b16 %v876
        %v933 = vunpack.c.l.b16 %v877
        %v934 = vunpack.c.l.b16 %v878
        %v935 = vunpack.c.l.b16 %v879
        %v936 = vunpack.c.l.b16 %v880
        %v937 = vunpack.c.l.b16 %v881
        %v938 = vunpack.c.l.b16 %v882
        %v939 = vunpack.c.l.b16 %v883
        %v940 = vunpack.c.l.b16 %v884
        %v941 = vunpack.c.l.b16 %v885
        %v942 = vunpack.c.l.b16 %v886
        %v943 = vunpack.c.l.b16 %v887
        %v944 = vpack.c.b16 %v929, %v928
        %v945 = vpack.c.b16 %v931, %v930
        %v946 = vpack.c.b16 %v933, %v932
        %v947 = vpack.c.b16 %v935, %v934
        %v948 = vpack.c.b16 %v937, %v936
        %v949 = vpack.c.b16 %v939, %v938
        %v950 = vpack.c.b16 %v941, %v940
        %v951 = vpack.c.b16 %v943, %v942
        %960 = vmatpush.bf16.msra.mxu0 %v951
        %961 = vmatpush.bf16.msra.mxu0 %v950
        %962 = vmatpush.bf16.msra.mxu0 %v949
        %963 = vmatpush.bf16.msra.mxu0 %v948
        %964 = vmatpush.bf16.msra.mxu0 %v947
        %965 = vmatpush.bf16.msra.mxu0 %v946
        %966 = vmatpush.bf16.msra.mxu0 %v945
        %967 = vmatpush.bf16.msra.mxu0 %v944
        %968 = vmatmul.bf16.gmra.mxu0 %v906
        %v969 = vpop.f32.mrf.mxu0
        %v970 = vadd.f32 0.0, %v969
        %v971 = vpop.f32.mrf.mxu0
        %v972 = vadd.f32 0.0, %v971
        %973 = vmatmul.bf16.gmra.mxu0 %v908
        %v974 = vpop.f32.mrf.mxu0
        %v975 = vadd.f32 0.0, %v974
        %v976 = vpop.f32.mrf.mxu0
        %v977 = vadd.f32 0.0, %v976
        %978 = vmatmul.bf16.gmra.mxu0 %v907
        %v979 = vpop.f32.mrf.mxu0
        %v980 = vadd.f32 0.0, %v979
        %v981 = vpop.f32.mrf.mxu0
        %982 = vdwg.mxu0
        %v983 = vpack.c.b16 %v898, %v898
        %vm984 = vcmask 1045504
        %v985 = vrot.slane %v900, 2
        %v986 = vrot.slane %v901, 2
        %v987 = vsel %vm984, %v985, %v986
        %v988 = vrot.slane %v983, 2
        %v989 = vsel %vm984, %v986, %v988
        %v1009 = vunpack.c.l.b16 %v855
        %v1010 = vunpack.c.l.b16 %v856
        %v1011 = vunpack.c.l.b16 %v857
        %v1012 = vunpack.c.l.b16 %v858
        %v1013 = vunpack.c.l.b16 %v859
        %v1014 = vunpack.c.l.b16 %v860
        %v1015 = vunpack.c.l.b16 %v861
        %v1016 = vunpack.c.l.b16 %v862
        %v1017 = vunpack.c.l.b16 %v863
        %v1018 = vunpack.c.l.b16 %v864
        %v1019 = vunpack.c.l.b16 %v865
        %v1020 = vunpack.c.l.b16 %v866
        %v1021 = vunpack.c.l.b16 %v867
        %v1022 = vunpack.c.l.b16 %v868
        %v1023 = vunpack.c.l.b16 %v869
        %v1024 = vunpack.c.l.b16 %v870
        %v1025 = vpack.c.b16 %v1010, %v1009
        %v1026 = vpack.c.b16 %v1012, %v1011
        %v1027 = vpack.c.b16 %v1014, %v1013
        %v1028 = vpack.c.b16 %v1016, %v1015
        %v1029 = vpack.c.b16 %v1018, %v1017
        %v1030 = vpack.c.b16 %v1020, %v1019
        %v1031 = vpack.c.b16 %v1022, %v1021
        %v1032 = vpack.c.b16 %v1024, %v1023
        %1041 = vmatpush.bf16.msra.mxu0 %v1032
        %1042 = vmatpush.bf16.msra.mxu0 %v1031
        %1043 = vmatpush.bf16.msra.mxu0 %v1030
        %1044 = vmatpush.bf16.msra.mxu0 %v1029
        %1045 = vmatpush.bf16.msra.mxu0 %v1028
        %1046 = vmatpush.bf16.msra.mxu0 %v1027
        %1047 = vmatpush.bf16.msra.mxu0 %v1026
        %1048 = vmatpush.bf16.msra.mxu0 %v1025
        %1049 = vmatmul.bf16.gmra.mxu0 %v987
        %v1050 = vpop.f32.mrf.mxu0
        %v1051 = vadd.f32 %v970, %v1050
        %v1052 = vpop.f32.mrf.mxu0
        %v1053 = vadd.f32 %v972, %v1052
        %1054 = vmatmul.bf16.gmra.mxu0 %v989
        %v1055 = vpop.f32.mrf.mxu0
        %v1056 = vadd.f32 %v975, %v1055
        %v1057 = vpop.f32.mrf.mxu0
        %v1058 = vadd.f32 %v977, %v1057
        %1059 = vmatmul.bf16.gmra.mxu0 %v988
        %v1060 = vpop.f32.mrf.mxu0
        %v1061 = vadd.f32 %v980, %v1060
        %v1062 = vpop.f32.mrf.mxu0
        %1063 = vdwg.mxu0
        %s1064 = scalar_lea.vmem [#allocation2], 128
        %v1065 = vld [vmem:[%s1064] sm:$0xf]
        %v1066 = vld [vmem:[%s1064 + $0x4] sm:$0xf]
        %v1067 = vld [vmem:[%s1064 + $0x8] sm:$0xf]
        %v1068 = vld [vmem:[%s1064 + $0xc] sm:$0xf]
        %v1069 = vld [vmem:[%s1064 + $0x10] sm:$0xf]
        %v1070 = vld [vmem:[%s1064 + $0x14] sm:$0xf]
        %v1071 = vld [vmem:[%s1064 + $0x18] sm:$0xf]
        %v1072 = vld [vmem:[%s1064 + $0x1c] sm:$0xf]
        %v1073 = vld [vmem:[%s1064 + $0x20] sm:$0xf]
        %v1074 = vld [vmem:[%s1064 + $0x24] sm:$0xf]
        %v1075 = vld [vmem:[%s1064 + $0x28] sm:$0xf]
        %v1076 = vld [vmem:[%s1064 + $0x2c] sm:$0xf]
        %v1077 = vld [vmem:[%s1064 + $0x30] sm:$0xf]
        %v1078 = vld [vmem:[%s1064 + $0x34] sm:$0xf]
        %v1079 = vld [vmem:[%s1064 + $0x38] sm:$0xf]
        %v1080 = vld [vmem:[%s1064 + $0x3c] sm:$0xf]
        %v1081 = vpack.c.b16 %v896, %v895
        %v1082 = vpack.c.b16 %v898, %v897
        %v1083 = vpack.c.b16 %v899, %v899
        %v1103 = vunpack.c.l.b16 %v1065
        %v1104 = vunpack.c.l.b16 %v1066
        %v1105 = vunpack.c.l.b16 %v1067
        %v1106 = vunpack.c.l.b16 %v1068
        %v1107 = vunpack.c.l.b16 %v1069
        %v1108 = vunpack.c.l.b16 %v1070
        %v1109 = vunpack.c.l.b16 %v1071
        %v1110 = vunpack.c.l.b16 %v1072
        %v1111 = vunpack.c.l.b16 %v1073
        %v1112 = vunpack.c.l.b16 %v1074
        %v1113 = vunpack.c.l.b16 %v1075
        %v1114 = vunpack.c.l.b16 %v1076
        %v1115 = vunpack.c.l.b16 %v1077
        %v1116 = vunpack.c.l.b16 %v1078
        %v1117 = vunpack.c.l.b16 %v1079
        %v1118 = vunpack.c.l.b16 %v1080
        %v1119 = vpack.c.b16 %v1104, %v1103
        %v1120 = vpack.c.b16 %v1106, %v1105
        %v1121 = vpack.c.b16 %v1108, %v1107
        %v1122 = vpack.c.b16 %v1110, %v1109
        %v1123 = vpack.c.b16 %v1112, %v1111
        %v1124 = vpack.c.b16 %v1114, %v1113
        %v1125 = vpack.c.b16 %v1116, %v1115
        %v1126 = vpack.c.b16 %v1118, %v1117
        %1135 = vmatpush.bf16.msra.mxu0 %v1126
        %1136 = vmatpush.bf16.msra.mxu0 %v1125
        %1137 = vmatpush.bf16.msra.mxu0 %v1124
        %1138 = vmatpush.bf16.msra.mxu0 %v1123
        %1139 = vmatpush.bf16.msra.mxu0 %v1122
        %1140 = vmatpush.bf16.msra.mxu0 %v1121
        %1141 = vmatpush.bf16.msra.mxu0 %v1120
        %1142 = vmatpush.bf16.msra.mxu0 %v1119
        %1143 = vmatmul.bf16.gmra.mxu0 %v1081
        %v1144 = vpop.f32.mrf.mxu0
        %v1145 = vadd.f32 0.0, %v1144
        %v1146 = vpop.f32.mrf.mxu0
        %v1147 = vadd.f32 0.0, %v1146
        %1148 = vmatmul.bf16.gmra.mxu0 %v1082
        %v1149 = vpop.f32.mrf.mxu0
        %v1150 = vadd.f32 0.0, %v1149
        %v1151 = vpop.f32.mrf.mxu0
        %v1152 = vadd.f32 0.0, %v1151
        %1153 = vmatmul.bf16.gmra.mxu0 %v1083
        %v1154 = vpop.f32.mrf.mxu0
        %v1155 = vadd.f32 0.0, %v1154
        %v1156 = vpop.f32.mrf.mxu0
        %1157 = vdwg.mxu0
        %v1158 = vadd.f32 %v1051, %v1145
        %v1159 = vadd.f32 %v1053, %v1147
        %v1160 = vadd.f32 %v1056, %v1150
        %v1161 = vadd.f32 %v1058, %v1152
        %v1162 = vadd.f32 %v1061, %v1155
        %v1163 = vld [vmem:[%s4] sm:$0x1]
        %v1165 = vperm.slane %v1163, 0
        %v1167 = vadd.f32 %v1158, %v1165
        %v1168 = vadd.f32 %v1159, %v1165
        %v1169 = vadd.f32 %v1160, %v1165
        %v1170 = vadd.f32 %v1161, %v1165
        %v1171 = vadd.f32 %v1162, %v1165
        %s1172 = ssub.s32 %s538, 2
        %v1173 = vstv %s1172
        %v1174 = vadd.s32 %v531, %v1173
        %v1175 = vadd.s32 %v532, %v1173
        %v1176 = vadd.s32 %v533, %v1173
        %v1177 = vadd.s32 %v534, %v1173
        %v1178 = vadd.s32 %v535, %v1173
        %vm1179 = vcmp.ge.s32.totalorder %v1174, 0
        %vm1180 = vcmp.ge.s32.totalorder %v1175, 0
        %vm1181 = vcmp.ge.s32.totalorder %v1176, 0
        %vm1182 = vcmp.ge.s32.totalorder %v1177, 0
        %vm1183 = vcmp.ge.s32.totalorder %v1178, 0
        %vm1184 = vcmp.lt.s32.totalorder %v1174, 64
        %vm1185 = vcmp.lt.s32.totalorder %v1175, 64
        %vm1186 = vcmp.lt.s32.totalorder %v1176, 64
        %vm1187 = vcmp.lt.s32.totalorder %v1177, 64
        %vm1188 = vcmp.lt.s32.totalorder %v1178, 64
        %vm1189 = vmand %vm1179, %vm1184
        %vm1190 = vmand %vm1180, %vm1185
        %vm1191 = vmand %vm1181, %vm1186
        %vm1192 = vmand %vm1182, %vm1187
        %vm1193 = vmand %vm1183, %vm1188
        %v1194 = vmul.f32 %v1167, 0.5
        %v1195 = vmul.f32 %v1168, 0.5
        %v1196 = vmul.f32 %v1169, 0.5
        %v1197 = vmul.f32 %v1170, 0.5
        %v1198 = vmul.f32 %v1171, 0.5
        %v1199 = vmul.f32 %v1167, 0.70710677
        %v1200 = vmul.f32 %v1168, 0.70710677
        %v1201 = vmul.f32 %v1169, 0.70710677
        %v1202 = vmul.f32 %v1170, 0.70710677
        %v1203 = vmul.f32 %v1171, 0.70710677
        %v1204 = vmul.f32 %v1199, %v1199
        %v1205 = vmin.f32 16.0, %v1204
        %v1206 = vmul.f32 %v1205, 2.1237322e-06
        %v1207 = vadd.f32 %v1206, 0.00028619796
        %v1208 = vmul.f32 %v1205, %v1207
        %v1209 = vadd.f32 %v1208, 0.0036580483
        %v1210 = vmul.f32 %v1205, %v1209
        %v1211 = vadd.f32 %v1210, 0.05243302
        %v1212 = vmul.f32 %v1205, %v1211
        %v1213 = vadd.f32 %v1212, 0.18741608
        %v1214 = vmul.f32 %v1205, %v1213
        %v1215 = vadd.f32 %v1214, 1.1283791
        %v1216 = vmul.f32 %v1199, %v1215
        %v1217 = vmul.f32 %v1205, 3.8918573e-05
        %v1218 = vadd.f32 %v1217, 0.001143296
        %v1219 = vmul.f32 %v1205, %v1218
        %v1220 = vadd.f32 %v1219, 0.014752088
        %v1221 = vmul.f32 %v1205, %v1220
        %v1222 = vadd.f32 %v1221, 0.112945676
        %v1223 = vmul.f32 %v1205, %v1222
        %v1224 = vadd.f32 %v1223, 0.4994258
        %v1225 = vmul.f32 %v1205, %v1224
        %v1226 = vadd.f32 %v1225, 1.0
        %v1227 = vrcp.pop %v1226
        %v1228 = vmul.f32 %v1226, %v1227
        %v1229 = vsub.f32 1.0, %v1228
        %v1230 = vmul.f32 %v1227, %v1229
        %v1231 = vadd.f32 %v1227, %v1230
        %vm1232 = vweird.f32 %v1226
        %vm1233 = vweird.f32 %v1227
        %vm1234 = vmor %vm1232, %vm1233
        %v1235 = vsel %vm1234, %v1227, %v1231
        %v1236 = vand.u32 2147483647, %v1226
        %vm1237 = vcmp.eq.f32.partialorder %v1236, 8.507059e+37
        %v1238 = vand.u32 %v1226, 2147483648
        %v1239 = vor.u32 1.1754944e-38, %v1238
        %v1240 = vsel %vm1237, %v1239, %v1235
        %v1241 = vmul.f32 %v1216, %v1240
        %v1242 = vmin.f32 %v1241, 1.0
        %v1243 = vmax.f32 %v1242, -1.0
        %v1244 = vmul.f32 %v1200, %v1200
        %v1245 = vmin.f32 16.0, %v1244
        %v1246 = vmul.f32 %v1245, 2.1237322e-06
        %v1247 = vadd.f32 %v1246, 0.00028619796
        %v1248 = vmul.f32 %v1245, %v1247
        %v1249 = vadd.f32 %v1248, 0.0036580483
        %v1250 = vmul.f32 %v1245, %v1249
        %v1251 = vadd.f32 %v1250, 0.05243302
        %v1252 = vmul.f32 %v1245, %v1251
        %v1253 = vadd.f32 %v1252, 0.18741608
        %v1254 = vmul.f32 %v1245, %v1253
        %v1255 = vadd.f32 %v1254, 1.1283791
        %v1256 = vmul.f32 %v1200, %v1255
        %v1257 = vmul.f32 %v1245, 3.8918573e-05
        %v1258 = vadd.f32 %v1257, 0.001143296
        %v1259 = vmul.f32 %v1245, %v1258
        %v1260 = vadd.f32 %v1259, 0.014752088
        %v1261 = vmul.f32 %v1245, %v1260
        %v1262 = vadd.f32 %v1261, 0.112945676
        %v1263 = vmul.f32 %v1245, %v1262
        %v1264 = vadd.f32 %v1263, 0.4994258
        %v1265 = vmul.f32 %v1245, %v1264
        %v1266 = vadd.f32 %v1265, 1.0
        %v1267 = vrcp.pop %v1266
        %v1268 = vmul.f32 %v1266, %v1267
        %v1269 = vsub.f32 1.0, %v1268
        %v1270 = vmul.f32 %v1267, %v1269
        %v1271 = vadd.f32 %v1267, %v1270
        %vm1272 = vweird.f32 %v1266
        %vm1273 = vweird.f32 %v1267
        %vm1274 = vmor %vm1272, %vm1273
        %v1275 = vsel %vm1274, %v1267, %v1271
        %v1276 = vand.u32 2147483647, %v1266
        %vm1277 = vcmp.eq.f32.partialorder %v1276, 8.507059e+37
        %v1278 = vand.u32 %v1266, 2147483648
        %v1279 = vor.u32 1.1754944e-38, %v1278
        %v1280 = vsel %vm1277, %v1279, %v1275
        %v1281 = vmul.f32 %v1256, %v1280
        %v1282 = vmin.f32 %v1281, 1.0
        %v1283 = vmax.f32 %v1282, -1.0
        %v1284 = vmul.f32 %v1201, %v1201
        %v1285 = vmin.f32 16.0, %v1284
        %v1286 = vmul.f32 %v1285, 2.1237322e-06
        %v1287 = vadd.f32 %v1286, 0.00028619796
        %v1288 = vmul.f32 %v1285, %v1287
        %v1289 = vadd.f32 %v1288, 0.0036580483
        %v1290 = vmul.f32 %v1285, %v1289
        %v1291 = vadd.f32 %v1290, 0.05243302
        %v1292 = vmul.f32 %v1285, %v1291
        %v1293 = vadd.f32 %v1292, 0.18741608
        %v1294 = vmul.f32 %v1285, %v1293
        %v1295 = vadd.f32 %v1294, 1.1283791
        %v1296 = vmul.f32 %v1201, %v1295
        %v1297 = vmul.f32 %v1285, 3.8918573e-05
        %v1298 = vadd.f32 %v1297, 0.001143296
        %v1299 = vmul.f32 %v1285, %v1298
        %v1300 = vadd.f32 %v1299, 0.014752088
        %v1301 = vmul.f32 %v1285, %v1300
        %v1302 = vadd.f32 %v1301, 0.112945676
        %v1303 = vmul.f32 %v1285, %v1302
        %v1304 = vadd.f32 %v1303, 0.4994258
        %v1305 = vmul.f32 %v1285, %v1304
        %v1306 = vadd.f32 %v1305, 1.0
        %v1307 = vrcp.pop %v1306
        %v1308 = vmul.f32 %v1306, %v1307
        %v1309 = vsub.f32 1.0, %v1308
        %v1310 = vmul.f32 %v1307, %v1309
        %v1311 = vadd.f32 %v1307, %v1310
        %vm1312 = vweird.f32 %v1306
        %vm1313 = vweird.f32 %v1307
        %vm1314 = vmor %vm1312, %vm1313
        %v1315 = vsel %vm1314, %v1307, %v1311
        %v1316 = vand.u32 2147483647, %v1306
        %vm1317 = vcmp.eq.f32.partialorder %v1316, 8.507059e+37
        %v1318 = vand.u32 %v1306, 2147483648
        %v1319 = vor.u32 1.1754944e-38, %v1318
        %v1320 = vsel %vm1317, %v1319, %v1315
        %v1321 = vmul.f32 %v1296, %v1320
        %v1322 = vmin.f32 %v1321, 1.0
        %v1323 = vmax.f32 %v1322, -1.0
        %v1324 = vmul.f32 %v1202, %v1202
        %v1325 = vmin.f32 16.0, %v1324
        %v1326 = vmul.f32 %v1325, 2.1237322e-06
        %v1327 = vadd.f32 %v1326, 0.00028619796
        %v1328 = vmul.f32 %v1325, %v1327
        %v1329 = vadd.f32 %v1328, 0.0036580483
        %v1330 = vmul.f32 %v1325, %v1329
        %v1331 = vadd.f32 %v1330, 0.05243302
        %v1332 = vmul.f32 %v1325, %v1331
        %v1333 = vadd.f32 %v1332, 0.18741608
        %v1334 = vmul.f32 %v1325, %v1333
        %v1335 = vadd.f32 %v1334, 1.1283791
        %v1336 = vmul.f32 %v1202, %v1335
        %v1337 = vmul.f32 %v1325, 3.8918573e-05
        %v1338 = vadd.f32 %v1337, 0.001143296
        %v1339 = vmul.f32 %v1325, %v1338
        %v1340 = vadd.f32 %v1339, 0.014752088
        %v1341 = vmul.f32 %v1325, %v1340
        %v1342 = vadd.f32 %v1341, 0.112945676
        %v1343 = vmul.f32 %v1325, %v1342
        %v1344 = vadd.f32 %v1343, 0.4994258
        %v1345 = vmul.f32 %v1325, %v1344
        %v1346 = vadd.f32 %v1345, 1.0
        %v1347 = vrcp.pop %v1346
        %v1348 = vmul.f32 %v1346, %v1347
        %v1349 = vsub.f32 1.0, %v1348
        %v1350 = vmul.f32 %v1347, %v1349
        %v1351 = vadd.f32 %v1347, %v1350
        %vm1352 = vweird.f32 %v1346
        %vm1353 = vweird.f32 %v1347
        %vm1354 = vmor %vm1352, %vm1353
        %v1355 = vsel %vm1354, %v1347, %v1351
        %v1356 = vand.u32 2147483647, %v1346
        %vm1357 = vcmp.eq.f32.partialorder %v1356, 8.507059e+37
        %v1358 = vand.u32 %v1346, 2147483648
        %v1359 = vor.u32 1.1754944e-38, %v1358
        %v1360 = vsel %vm1357, %v1359, %v1355
        %v1361 = vmul.f32 %v1336, %v1360
        %v1362 = vmin.f32 %v1361, 1.0
        %v1363 = vmax.f32 %v1362, -1.0
        %v1364 = vmul.f32 %v1203, %v1203
        %v1365 = vmin.f32 16.0, %v1364
        %v1366 = vmul.f32 %v1365, 2.1237322e-06
        %v1367 = vadd.f32 %v1366, 0.00028619796
        %v1368 = vmul.f32 %v1365, %v1367
        %v1369 = vadd.f32 %v1368, 0.0036580483
        %v1370 = vmul.f32 %v1365, %v1369
        %v1371 = vadd.f32 %v1370, 0.05243302
        %v1372 = vmul.f32 %v1365, %v1371
        %v1373 = vadd.f32 %v1372, 0.18741608
        %v1374 = vmul.f32 %v1365, %v1373
        %v1375 = vadd.f32 %v1374, 1.1283791
        %v1376 = vmul.f32 %v1203, %v1375
        %v1377 = vmul.f32 %v1365, 3.8918573e-05
        %v1378 = vadd.f32 %v1377, 0.001143296
        %v1379 = vmul.f32 %v1365, %v1378
        %v1380 = vadd.f32 %v1379, 0.014752088
        %v1381 = vmul.f32 %v1365, %v1380
        %v1382 = vadd.f32 %v1381, 0.112945676
        %v1383 = vmul.f32 %v1365, %v1382
        %v1384 = vadd.f32 %v1383, 0.4994258
        %v1385 = vmul.f32 %v1365, %v1384
        %v1386 = vadd.f32 %v1385, 1.0
        %v1387 = vrcp.pop %v1386
        %v1388 = vmul.f32 %v1386, %v1387
        %v1389 = vsub.f32 1.0, %v1388
        %v1390 = vmul.f32 %v1387, %v1389
        %v1391 = vadd.f32 %v1387, %v1390
        %vm1392 = vweird.f32 %v1386
        %vm1393 = vweird.f32 %v1387
        %vm1394 = vmor %vm1392, %vm1393
        %v1395 = vsel %vm1394, %v1387, %v1391
        %v1396 = vand.u32 2147483647, %v1386
        %vm1397 = vcmp.eq.f32.partialorder %v1396, 8.507059e+37
        %v1398 = vand.u32 %v1386, 2147483648
        %v1399 = vor.u32 1.1754944e-38, %v1398
        %v1400 = vsel %vm1397, %v1399, %v1395
        %v1401 = vmul.f32 %v1376, %v1400
        %v1402 = vmin.f32 %v1401, 1.0
        %v1403 = vmax.f32 %v1402, -1.0
        %v1404 = vadd.f32 %v1243, 1.0
        %v1405 = vadd.f32 %v1283, 1.0
        %v1406 = vadd.f32 %v1323, 1.0
        %v1407 = vadd.f32 %v1363, 1.0
        %v1408 = vadd.f32 %v1403, 1.0
        %v1409 = vmul.f32 %v1194, %v1404
        %v1410 = vmul.f32 %v1195, %v1405
        %v1411 = vmul.f32 %v1196, %v1406
        %v1412 = vmul.f32 %v1197, %v1407
        %v1413 = vmul.f32 %v1198, %v1408
        %v1414 = vsel %vm1189, 1, 0
        %v1415 = vsel %vm1190, 1, 0
        %v1416 = vsel %vm1191, 1, 0
        %v1417 = vsel %vm1192, 1, 0
        %v1418 = vsel %vm1193, 1, 0
        %vm1419 = vcmp.eq.s32.totalorder %v1414, 1
        %vm1420 = vcmp.eq.s32.totalorder %v1415, 1
        %vm1421 = vcmp.eq.s32.totalorder %v1416, 1
        %vm1422 = vcmp.eq.s32.totalorder %v1417, 1
        %vm1423 = vcmp.eq.s32.totalorder %v1418, 1
        %v1424 = vsel %vm1419, %v1409, 0.0
        %v1425 = vsel %vm1420, %v1410, 0.0
        %v1426 = vsel %vm1421, %v1411, 0.0
        %v1427 = vsel %vm1422, %v1412, 0.0
        %v1428 = vsel %vm1423, %v1413, 0.0
        %v1429 = vpack.c.bf16 %v1424, %v1424
        %v1430 = vpack.c.bf16 %v1425, %v1425
        %v1431 = vpack.c.bf16 %v1426, %v1426
        %v1432 = vpack.c.bf16 %v1427, %v1427
        %v1433 = vpack.c.bf16 %v1428, %v1428
        %v1434 = vld [vmem:[%s6] sm:$0x1]
        %v1436 = vperm.slane %v1434, 0
        %v1438 = vadd.f32 %v526, %v1436
        %v1439 = vadd.f32 %v527, %v1436
        %v1440 = vadd.f32 %v528, %v1436
        %v1441 = vadd.f32 %v529, %v1436
        %v1442 = vld [vmem:[#allocation4] sm:$0xf]
        %v1443 = vld [vmem:[#allocation4 + $0x4] sm:$0xf]
        %v1444 = vld [vmem:[#allocation4 + $0x8] sm:$0xf]
        %v1445 = vld [vmem:[#allocation4 + $0xc] sm:$0xf]
        %v1446 = vld [vmem:[#allocation4 + $0x10] sm:$0xf]
        %v1447 = vld [vmem:[#allocation4 + $0x14] sm:$0xf]
        %v1448 = vld [vmem:[#allocation4 + $0x18] sm:$0xf]
        %v1449 = vld [vmem:[#allocation4 + $0x1c] sm:$0xf]
        %v1450 = vld [vmem:[#allocation4 + $0x20] sm:$0xf]
        %v1451 = vld [vmem:[#allocation4 + $0x24] sm:$0xf]
        %v1452 = vld [vmem:[#allocation4 + $0x28] sm:$0xf]
        %v1453 = vld [vmem:[#allocation4 + $0x2c] sm:$0xf]
        %v1454 = vld [vmem:[#allocation4 + $0x30] sm:$0xf]
        %v1455 = vld [vmem:[#allocation4 + $0x34] sm:$0xf]
        %v1456 = vld [vmem:[#allocation4 + $0x38] sm:$0xf]
        %v1457 = vld [vmem:[#allocation4 + $0x3c] sm:$0xf]
        %v1462 = vunpack.c.l.b16 %v1429
        %v1463 = vunpack.c.l.b16 %v1430
        %v1464 = vunpack.c.l.b16 %v1431
        %v1465 = vunpack.c.l.b16 %v1432
        %v1466 = vpack.c.b16 %v1463, %v1462
        %v1467 = vpack.c.b16 %v1465, %v1464
        %v1486 = vunpack.c.l.b16 %v1442
        %v1487 = vunpack.c.l.b16 %v1443
        %v1488 = vunpack.c.l.b16 %v1444
        %v1489 = vunpack.c.l.b16 %v1445
        %v1490 = vunpack.c.l.b16 %v1446
        %v1491 = vunpack.c.l.b16 %v1447
        %v1492 = vunpack.c.l.b16 %v1448
        %v1493 = vunpack.c.l.b16 %v1449
        %v1494 = vunpack.c.l.b16 %v1450
        %v1495 = vunpack.c.l.b16 %v1451
        %v1496 = vunpack.c.l.b16 %v1452
        %v1497 = vunpack.c.l.b16 %v1453
        %v1498 = vunpack.c.l.b16 %v1454
        %v1499 = vunpack.c.l.b16 %v1455
        %v1500 = vunpack.c.l.b16 %v1456
        %v1501 = vunpack.c.l.b16 %v1457
        %v1502 = vpack.c.b16 %v1487, %v1486
        %v1503 = vpack.c.b16 %v1489, %v1488
        %v1504 = vpack.c.b16 %v1491, %v1490
        %v1505 = vpack.c.b16 %v1493, %v1492
        %v1506 = vpack.c.b16 %v1495, %v1494
        %v1507 = vpack.c.b16 %v1497, %v1496
        %v1508 = vpack.c.b16 %v1499, %v1498
        %v1509 = vpack.c.b16 %v1501, %v1500
        %1518 = vmatpush.bf16.msra.mxu0 %v1509
        %1519 = vmatpush.bf16.msra.mxu0 %v1508
        %1520 = vmatpush.bf16.msra.mxu0 %v1507
        %1521 = vmatpush.bf16.msra.mxu0 %v1506
        %1522 = vmatpush.bf16.msra.mxu0 %v1505
        %1523 = vmatpush.bf16.msra.mxu0 %v1504
        %1524 = vmatpush.bf16.msra.mxu0 %v1503
        %1525 = vmatpush.bf16.msra.mxu0 %v1502
        %1526 = vmatmul.bf16.gmra.mxu0 %v1466
        %v1527 = vpop.f32.mrf.mxu0
        %v1528 = vadd.f32 0.0, %v1527
        %v1529 = vpop.f32.mrf.mxu0
        %v1530 = vadd.f32 0.0, %v1529
        %1531 = vmatmul.bf16.gmra.mxu0 %v1467
        %v1532 = vpop.f32.mrf.mxu0
        %v1533 = vadd.f32 0.0, %v1532
        %v1534 = vpop.f32.mrf.mxu0
        %v1535 = vadd.f32 0.0, %v1534
        %1536 = vdwg.mxu0
        %v1537 = vadd.f32 %v1438, %v1528
        %v1538 = vadd.f32 %v1439, %v1530
        %v1539 = vadd.f32 %v1440, %v1533
        %v1540 = vadd.f32 %v1441, %v1535
        %s1541 = scalar_lea.vmem [#allocation4], 64
        %v1542 = vld [vmem:[%s1541] sm:$0xf]
        %v1543 = vld [vmem:[%s1541 + $0x4] sm:$0xf]
        %v1544 = vld [vmem:[%s1541 + $0x8] sm:$0xf]
        %v1545 = vld [vmem:[%s1541 + $0xc] sm:$0xf]
        %v1546 = vld [vmem:[%s1541 + $0x10] sm:$0xf]
        %v1547 = vld [vmem:[%s1541 + $0x14] sm:$0xf]
        %v1548 = vld [vmem:[%s1541 + $0x18] sm:$0xf]
        %v1549 = vld [vmem:[%s1541 + $0x1c] sm:$0xf]
        %v1550 = vld [vmem:[%s1541 + $0x20] sm:$0xf]
        %v1551 = vld [vmem:[%s1541 + $0x24] sm:$0xf]
        %v1552 = vld [vmem:[%s1541 + $0x28] sm:$0xf]
        %v1553 = vld [vmem:[%s1541 + $0x2c] sm:$0xf]
        %v1554 = vld [vmem:[%s1541 + $0x30] sm:$0xf]
        %v1555 = vld [vmem:[%s1541 + $0x34] sm:$0xf]
        %v1556 = vld [vmem:[%s1541 + $0x38] sm:$0xf]
        %v1557 = vld [vmem:[%s1541 + $0x3c] sm:$0xf]
        %v1559 = vunpack.c.l.b16 %v1433
        %v1560 = vpack.c.b16 %v1559, %v1559
        %vm1561 = vcmask 1046528
        %v1562 = vrot.slane %v1466, 1
        %v1563 = vrot.slane %v1467, 1
        %v1564 = vsel %vm1561, %v1562, %v1563
        %v1565 = vrot.slane %v1560, 1
        %v1566 = vsel %vm1561, %v1563, %v1565
        %v1585 = vunpack.c.l.b16 %v1542
        %v1586 = vunpack.c.l.b16 %v1543
        %v1587 = vunpack.c.l.b16 %v1544
        %v1588 = vunpack.c.l.b16 %v1545
        %v1589 = vunpack.c.l.b16 %v1546
        %v1590 = vunpack.c.l.b16 %v1547
        %v1591 = vunpack.c.l.b16 %v1548
        %v1592 = vunpack.c.l.b16 %v1549
        %v1593 = vunpack.c.l.b16 %v1550
        %v1594 = vunpack.c.l.b16 %v1551
        %v1595 = vunpack.c.l.b16 %v1552
        %v1596 = vunpack.c.l.b16 %v1553
        %v1597 = vunpack.c.l.b16 %v1554
        %v1598 = vunpack.c.l.b16 %v1555
        %v1599 = vunpack.c.l.b16 %v1556
        %v1600 = vunpack.c.l.b16 %v1557
        %v1601 = vpack.c.b16 %v1586, %v1585
        %v1602 = vpack.c.b16 %v1588, %v1587
        %v1603 = vpack.c.b16 %v1590, %v1589
        %v1604 = vpack.c.b16 %v1592, %v1591
        %v1605 = vpack.c.b16 %v1594, %v1593
        %v1606 = vpack.c.b16 %v1596, %v1595
        %v1607 = vpack.c.b16 %v1598, %v1597
        %v1608 = vpack.c.b16 %v1600, %v1599
        %1617 = vmatpush.bf16.msra.mxu0 %v1608
        %1618 = vmatpush.bf16.msra.mxu0 %v1607
        %1619 = vmatpush.bf16.msra.mxu0 %v1606
        %1620 = vmatpush.bf16.msra.mxu0 %v1605
        %1621 = vmatpush.bf16.msra.mxu0 %v1604
        %1622 = vmatpush.bf16.msra.mxu0 %v1603
        %1623 = vmatpush.bf16.msra.mxu0 %v1602
        %1624 = vmatpush.bf16.msra.mxu0 %v1601
        %1625 = vmatmul.bf16.gmra.mxu0 %v1564
        %v1626 = vpop.f32.mrf.mxu0
        %v1627 = vadd.f32 0.0, %v1626
        %v1628 = vpop.f32.mrf.mxu0
        %v1629 = vadd.f32 0.0, %v1628
        %1630 = vmatmul.bf16.gmra.mxu0 %v1566
        %v1631 = vpop.f32.mrf.mxu0
        %v1632 = vadd.f32 0.0, %v1631
        %v1633 = vpop.f32.mrf.mxu0
        %v1634 = vadd.f32 0.0, %v1633
        %1635 = vdwg.mxu0
        %v1636 = vadd.f32 %v1537, %v1627
        %v1637 = vadd.f32 %v1538, %v1629
        %v1638 = vadd.f32 %v1539, %v1632
        %v1639 = vadd.f32 %v1540, %v1634
        %s1640 = scalar_lea.vmem [#allocation4], 128
        %v1641 = vld [vmem:[%s1640] sm:$0xf]
        %v1642 = vld [vmem:[%s1640 + $0x4] sm:$0xf]
        %v1643 = vld [vmem:[%s1640 + $0x8] sm:$0xf]
        %v1644 = vld [vmem:[%s1640 + $0xc] sm:$0xf]
        %v1645 = vld [vmem:[%s1640 + $0x10] sm:$0xf]
        %v1646 = vld [vmem:[%s1640 + $0x14] sm:$0xf]
        %v1647 = vld [vmem:[%s1640 + $0x18] sm:$0xf]
        %v1648 = vld [vmem:[%s1640 + $0x1c] sm:$0xf]
        %v1649 = vld [vmem:[%s1640 + $0x20] sm:$0xf]
        %v1650 = vld [vmem:[%s1640 + $0x24] sm:$0xf]
        %v1651 = vld [vmem:[%s1640 + $0x28] sm:$0xf]
        %v1652 = vld [vmem:[%s1640 + $0x2c] sm:$0xf]
        %v1653 = vld [vmem:[%s1640 + $0x30] sm:$0xf]
        %v1654 = vld [vmem:[%s1640 + $0x34] sm:$0xf]
        %v1655 = vld [vmem:[%s1640 + $0x38] sm:$0xf]
        %v1656 = vld [vmem:[%s1640 + $0x3c] sm:$0xf]
        %v1657 = vrot.slane %v1466, 2
        %v1658 = vrot.slane %v1467, 2
        %v1659 = vsel %vm984, %v1657, %v1658
        %v1660 = vrot.slane %v1560, 2
        %v1661 = vsel %vm984, %v1658, %v1660
        %v1680 = vunpack.c.l.b16 %v1641
        %v1681 = vunpack.c.l.b16 %v1642
        %v1682 = vunpack.c.l.b16 %v1643
        %v1683 = vunpack.c.l.b16 %v1644
        %v1684 = vunpack.c.l.b16 %v1645
        %v1685 = vunpack.c.l.b16 %v1646
        %v1686 = vunpack.c.l.b16 %v1647
        %v1687 = vunpack.c.l.b16 %v1648
        %v1688 = vunpack.c.l.b16 %v1649
        %v1689 = vunpack.c.l.b16 %v1650
        %v1690 = vunpack.c.l.b16 %v1651
        %v1691 = vunpack.c.l.b16 %v1652
        %v1692 = vunpack.c.l.b16 %v1653
        %v1693 = vunpack.c.l.b16 %v1654
        %v1694 = vunpack.c.l.b16 %v1655
        %v1695 = vunpack.c.l.b16 %v1656
        %v1696 = vpack.c.b16 %v1681, %v1680
        %v1697 = vpack.c.b16 %v1683, %v1682
        %v1698 = vpack.c.b16 %v1685, %v1684
        %v1699 = vpack.c.b16 %v1687, %v1686
        %v1700 = vpack.c.b16 %v1689, %v1688
        %v1701 = vpack.c.b16 %v1691, %v1690
        %v1702 = vpack.c.b16 %v1693, %v1692
        %v1703 = vpack.c.b16 %v1695, %v1694
        %1712 = vmatpush.bf16.msra.mxu0 %v1703
        %1713 = vmatpush.bf16.msra.mxu0 %v1702
        %1714 = vmatpush.bf16.msra.mxu0 %v1701
        %1715 = vmatpush.bf16.msra.mxu0 %v1700
        %1716 = vmatpush.bf16.msra.mxu0 %v1699
        %1717 = vmatpush.bf16.msra.mxu0 %v1698
        %1718 = vmatpush.bf16.msra.mxu0 %v1697
        %1719 = vmatpush.bf16.msra.mxu0 %v1696
        %1720 = vmatmul.bf16.gmra.mxu0 %v1659
        %v1721 = vpop.f32.mrf.mxu0
        %v1722 = vadd.f32 0.0, %v1721
        %v1723 = vpop.f32.mrf.mxu0
        %v1724 = vadd.f32 0.0, %v1723
        %1725 = vmatmul.bf16.gmra.mxu0 %v1661
        %v1726 = vpop.f32.mrf.mxu0
        %v1727 = vadd.f32 0.0, %v1726
        %v1728 = vpop.f32.mrf.mxu0
        %v1729 = vadd.f32 0.0, %v1728
        %1730 = vdwg.mxu0
        %v1731 = vadd.f32 %v1636, %v1722
        %v1732 = vadd.f32 %v1637, %v1724
        %v1733 = vadd.f32 %v1638, %v1727
        %v1734 = vadd.f32 %v1639, %v1729
        %v1735 = vpack.c.bf16 %v1731, %v1731
        %v1736 = vpack.c.bf16 %v1732, %v1732
        %v1737 = vpack.c.bf16 %v1733, %v1733
        %v1738 = vpack.c.bf16 %v1734, %v1734
        %1739 = vst [vmem:[%s492] sm:$0xf] %v1735
        %1740 = vst [vmem:[%s492 + $0x4] sm:$0xf] %v1736
        %1741 = vst [vmem:[%s492 + $0x8] sm:$0xf] %v1737
        %1742 = vst [vmem:[%s492 + $0xc] sm:$0xf] %v1738
        %s1743 = smul.u32 4, %s25
        %p1744 = scmp.lt.s32.totalorder %s24, 1
        %s1745 = scalar_select %p1744, %s24, 1
        %p1746 = scmp.lt.s32.totalorder %s1743, 7
        %s1747 = scalar_select %p1746, %s1743, 7
        %s1748 = smul.addr %s1745, 8
        %s1749 = sadd.s32 %s1747, %s1748
        %s1750 = smul.addr %s1749, 4
        %s1751 = scalar_lea.vmem %s7, %s1750
        // Predicated region
        $region57: #{_lambda_.4} parent=47 // pred_check
          %p1752 = pneg %p240
        $region58: #{_lambda_.4} parent=47 // pred_check_branch
          %1754 = sbr.rel (%p1752) target = $region60
        $region59: #{_lambda_.4} parent=47 // pred_region
          %s1755 = smul.u32 4, %s25
        $region60: #{_lambda_.4} parent=47 // pred_fallthru
          _
      $region48: #{_lambda_.4} parent=5 // pred_fallthru
        _
      %p1756 = scmp.le.s32.totalorder 2, %s15
      // Predicated region
      $region61: #{_lambda_.4} parent=5 // pred_check
        %p1757 = pneg %p1756
      $region62: #{_lambda_.4} parent=5 // pred_check_branch
        %1759 = sbr.rel (%p1757) target = $region64
      $region63: #{_lambda_.4} parent=5 // pred_region
        %s1760 = ssub.s32 %s15, 2
        // Predicated region
        $region65: #{_lambda_.4} parent=63 // pred_check
          %p1761 = pneg %p246
        $region66: #{_lambda_.4} parent=63 // pred_check_branch
          %1763 = sbr.rel (%p1761) target = $region68
        $region67: #{_lambda_.4} parent=63 // pred_region
          %s1764 = smul.u32 4, %s27
          %p1765 = scmp.lt.s32.totalorder %s26, 1
          %s1766 = scalar_select %p1765, %s26, 1
          %p1767 = scmp.lt.s32.totalorder %s1764, 7
          %s1768 = scalar_select %p1767, %s1764, 7
          %s1769 = smul.addr %s1766, 8
          %s1770 = sadd.s32 %s1768, %s1769
          %s1771 = smul.addr %s1770, 4
          %s1772 = scalar_lea.vmem %s7, %s1771
        $region68: #{_lambda_.4} parent=63 // pred_fallthru
          _
      $region64: #{_lambda_.4} parent=5 // pred_fallthru
        _
    $region6: #{_lambda_.4} parent=1 // loop_footer
      %s19 = sadd.s32 1, %s15
    $region7: #{_lambda_.4} parent=1 // loop_footer_branch
      %14 = sbr.rel target = $region3
    $region8: #{_lambda_.4} parent=1 // loop_exit
      _
    %1773 = vsyncpa [#allocation3], 1
    %s1774 = scalar_lea.sflag [#allocation3], 1
    %1775 = vsyncpa %s1774, 1
    %1776 = vsyncpa [#allocation5], 1

// kernel: _lambda_.3
$region0: #{_lambda_.3}
  #allocation0 [shape = 'u32[]', space=smem, size = 0x4, offset = 0x4, fixed_abs, tag = 'smem constant byte address 0x4 - core index']
  #allocation1 [shape = 'u32[72,128]{1,0:T(1,128)}', space=vmem, size = 0x9000, scoped, tag = 'internal scratch']
  %s0 = inlined_call_operand.vmem [shape: bf16[2,64,128], index: 0, kind: input, shape index: {}, may-alias: {0,1,2}]
  %s1 = inlined_call_operand.vmem [shape: bf16[2,64,128], index: 1, kind: input, shape index: {}, may-alias: {0,1,2}]
  %s2 = inlined_call_operand.vmem [shape: bf16[2,64,128], index: 2, kind: input, shape index: {}, may-alias: {0,1,2}]
  %s3 = inlined_call_operand.hbm [shape: bf16[3,128,128], index: 3, kind: input, shape index: {}]
  %s4 = inlined_call_operand.vmem [shape: f32[1,128], index: 4, kind: input, shape index: {}]
  %s5 = inlined_call_operand.hbm [shape: bf16[3,128,128], index: 5, kind: input, shape index: {}]
  %s6 = inlined_call_operand.vmem [shape: f32[1,128], index: 6, kind: input, shape index: {}]
  %s7 = inlined_call_operand.hbm [shape: bf16[128,128], index: 7, kind: input, shape index: {}]
  %s8 = inlined_call_operand.vmem [shape: f32[1,128], index: 8, kind: input, shape index: {}]
  %s9 = inlined_call_operand.vmem [shape: bf16[2,64,128], index: 9, kind: output, shape index: {}]
  %s10 = sld [smem:[#allocation0]]
  $region81: #{_lambda_.3} parent=0
    _
  %s12 = ssub.s32 1, %s10
  %s13 = scalar_select 0, %s12, %s10
  $region1: #{_lambda_.3} parent=0
    #allocation2 [shape = 'u8[98304]{0}', space=vmem, size = 0x18000, scoped, tag = 'input window, operand 3, single buffered']
    #allocation3 [shape = 's32[2]{0}', space=sflag, size = 0x8, scoped, tag = 'scoped memory for _lambda_.3']
    #allocation4 [shape = 'u8[98304]{0}', space=vmem, size = 0x18000, scoped, tag = 'input window, operand 5, single buffered']
    #allocation5 [shape = 's32[1]{0}', space=sflag, size = 0x4, scoped, tag = 'scoped memory for _lambda_.3']
    #allocation6 [shape = 'u8[32768]{0}', space=vmem, size = 0x8000, scoped, tag = 'input window, operand 7, single buffered']
    %14 = vsyncpa [#allocation3], 0
    %15 = vsyncpa [#allocation5], 0
    loop: start=0, step=1, limit=6
    $region2: #{_lambda_.3} parent=1 // loop_pre_header
      _
    $region3: #{_lambda_.3} parent=1 // loop_header
      %s17 = sphi 0, %s21
      %p18 = scmp.ge.s32.totalorder %s17, 6
      %s24 = sphi 0, %s36
      %s25 = sphi 0, %s32
      %s26 = sphi 0, %s24
      %s27 = sphi 0, %s25
      %s28 = sphi 0, %s26
      %s29 = sphi 0, %s27
      %s53 = sphi 0, %s55
      %s56 = sphi 0, %s53
      %s57 = sphi 0, %s56
      %s73 = sphi 0, %s57
      %s81 = sphi 0, %s83
      %s84 = sphi 0, %s81
      %s85 = sphi 0, %s84
      %s101 = sphi 0, %s85
      %s117 = sphi 0, %s119
      %s120 = sphi 0, %s117
      %s121 = sphi 0, %s120
      %s137 = sphi 0, %s121
      %s141 = sphi 0, %s141
      %s143 = sphi 0, %s141
      %s144 = sphi 0, %s143
      %s158 = sphi 0, %s144
      %s162 = sphi 0, %s162
      %s164 = sphi 0, %s162
      %s165 = sphi 0, %s164
      %s179 = sphi 0, %s165
      %s183 = sphi 0, %s183
      %s185 = sphi 0, %s183
      %s186 = sphi 0, %s185
      %s200 = sphi 0, %s186
      %s204 = sphi 0, %s204
      %s206 = sphi 0, %s204
      %s207 = sphi 0, %s206
      %s221 = sphi 0, %s207
      %s225 = sphi 0, %s225
      %s227 = sphi 0, %s225
      %s228 = sphi 0, %s227
      %s242 = sphi 0, %s228
      %s246 = sphi 0, %s246
      %s248 = sphi 0, %s246
      %s249 = sphi 0, %s248
      %s263 = sphi 0, %s249
      %s271 = sphi 0, %s273
      %s274 = sphi 0, %s271
      %s275 = sphi 0, %s274
      %s291 = sphi 0, %s275
    $region4: #{_lambda_.3} parent=1 // loop_header_branch
      %20 = sbr.rel (%p18) target = $region8
    $region5: #{_lambda_.3} parent=1 // loop_body
      %s22 = ssub.s32 %s17, 1
      %s23 = ssub.s32 %s17, 2
      %s30 = sadd.s32 1, %s25
      %p31 = scmp.ge.s32.totalorder %s30, 2
      %s32 = scalar_select %p31, 0, %s30
      %s33 = sadd.s32 1, %s24
      %s34 = scalar_select %p31, %s33, %s24
      %p35 = scmp.ge.s32.totalorder %s34, 2
      %s36 = scalar_select %p35, 0, %s34
      %s37 = smul.u32 %s25, 2
      %s38 = ssub.s32 %s37, 1
      %p39 = scmp.gt.s32.totalorder %s38, 0
      %s40 = scalar_select %p39, %s38, 0
      %p41 = scmp.lt.s32.totalorder %s40, 3
      %s42 = scalar_select %p41, %s40, 3
      %s43 = smul.u32 %s32, 2
      %s44 = ssub.s32 %s43, 1
      %p45 = scmp.gt.s32.totalorder %s44, 0
      %s46 = scalar_select %p45, %s44, 0
      %p47 = scmp.lt.s32.totalorder %s46, 3
      %s48 = scalar_select %p47, %s46, 3
      %s49 = ssub.s32 %s24, %s36
      %s50 = ssub.s32 %s42, %s48
      %s51 = sor.u32 %s49, %s50
      %p52 = scmp.eq.s32.totalorder %s51, 0
      %s54 = sadd.s32 %s53, 1
      %s55 = scalar_select %p52, %s53, %s54
      %p58 = pneg %p52
      %p59 = scmp.eq.s32.totalorder %s17, 3
      %p60 = por %p58, %p59
      %p61 = scmp.ne.s32.totalorder %s53, %s56
      %p62 = scmp.eq.s32.totalorder %s17, 0
      %p63 = por %p61, %p62
      %p64 = scmp.ne.s32.totalorder %s53, %s56
      %p65 = scmp.eq.s32.totalorder %s22, 3
      %p66 = por %p64, %p65
      %p67 = scmp.ne.s32.totalorder %s56, %s57
      %p68 = scmp.eq.s32.totalorder %s22, 0
      %p69 = por %p67, %p68
      %p70 = scmp.ne.s32.totalorder %s56, %s57
      %p71 = scmp.eq.s32.totalorder %s23, 3
      %p72 = por %p70, %p71
      %p74 = scmp.ne.s32.totalorder %s57, %s73
      %p75 = scmp.eq.s32.totalorder %s23, 0
      %p76 = por %p74, %p75
      %s77 = ssub.s32 %s24, %s36
      %s78 = ssub.s32 %s25, %s32
      %s79 = sor.u32 %s77, %s78
      %p80 = scmp.eq.s32.totalorder %s79, 0
      %s82 = sadd.s32 %s81, 1
      %s83 = scalar_select %p80, %s81, %s82
      %p86 = pneg %p80
      %p87 = scmp.eq.s32.totalorder %s17, 3
      %p88 = por %p86, %p87
      %p89 = scmp.ne.s32.totalorder %s81, %s84
      %p90 = scmp.eq.s32.totalorder %s17, 0
      %p91 = por %p89, %p90
      %p92 = scmp.ne.s32.totalorder %s81, %s84
      %p93 = scmp.eq.s32.totalorder %s22, 3
      %p94 = por %p92, %p93
      %p95 = scmp.ne.s32.totalorder %s84, %s85
      %p96 = scmp.eq.s32.totalorder %s22, 0
      %p97 = por %p95, %p96
      %p98 = scmp.ne.s32.totalorder %s84, %s85
      %p99 = scmp.eq.s32.totalorder %s23, 3
      %p100 = por %p98, %p99
      %p102 = scmp.ne.s32.totalorder %s85, %s101
      %p103 = scmp.eq.s32.totalorder %s23, 0
      %p104 = por %p102, %p103
      %s105 = sadd.s32 %s25, 1
      %s106 = smul.u32 %s105, 2
      %p107 = scmp.lt.s32.totalorder %s106, 3
      %s108 = scalar_select %p107, %s106, 3
      %s109 = sadd.s32 %s32, 1
      %s110 = smul.u32 %s109, 2
      %p111 = scmp.lt.s32.totalorder %s110, 3
      %s112 = scalar_select %p111, %s110, 3
      %s113 = ssub.s32 %s24, %s36
      %s114 = ssub.s32 %s108, %s112
      %s115 = sor.u32 %s113, %s114
      %p116 = scmp.eq.s32.totalorder %s115, 0
      %s118 = sadd.s32 %s117, 1
      %s119 = scalar_select %p116, %s117, %s118
      %p122 = pneg %p116
      %p123 = scmp.eq.s32.totalorder %s17, 3
      %p124 = por %p122, %p123
      %p125 = scmp.ne.s32.totalorder %s117, %s120
      %p126 = scmp.eq.s32.totalorder %s17, 0
      %p127 = por %p125, %p126
      %p128 = scmp.ne.s32.totalorder %s117, %s120
      %p129 = scmp.eq.s32.totalorder %s22, 3
      %p130 = por %p128, %p129
      %p131 = scmp.ne.s32.totalorder %s120, %s121
      %p132 = scmp.eq.s32.totalorder %s22, 0
      %p133 = por %p131, %p132
      %p134 = scmp.ne.s32.totalorder %s120, %s121
      %p135 = scmp.eq.s32.totalorder %s23, 3
      %p136 = por %p134, %p135
      %p138 = scmp.ne.s32.totalorder %s121, %s137
      %p139 = scmp.eq.s32.totalorder %s23, 0
      %p140 = por %p138, %p139
      %s142 = sadd.s32 %s141, 1
      %p145 = scmp.eq.s32.totalorder %s17, 3
      %p146 = scmp.ne.s32.totalorder %s141, %s143
      %p147 = scmp.eq.s32.totalorder %s17, 0
      %p148 = por %p146, %p147
      %p149 = scmp.ne.s32.totalorder %s141, %s143
      %p150 = scmp.eq.s32.totalorder %s22, 3
      %p151 = por %p149, %p150
      %p152 = scmp.ne.s32.totalorder %s143, %s144
      %p153 = scmp.eq.s32.totalorder %s22, 0
      %p154 = por %p152, %p153
      %p155 = scmp.ne.s32.totalorder %s143, %s144
      %p156 = scmp.eq.s32.totalorder %s23, 3
      %p157 = por %p155, %p156
      %p159 = scmp.ne.s32.totalorder %s144, %s158
      %p160 = scmp.eq.s32.totalorder %s23, 0
      %p161 = por %p159, %p160
      %s163 = sadd.s32 %s162, 1
      %p166 = scmp.eq.s32.totalorder %s17, 3
      %p167 = scmp.ne.s32.totalorder %s162, %s164
      %p168 = scmp.eq.s32.totalorder %s17, 0
      %p169 = por %p167, %p168
      %p170 = scmp.ne.s32.totalorder %s162, %s164
      %p171 = scmp.eq.s32.totalorder %s22, 3
      %p172 = por %p170, %p171
      %p173 = scmp.ne.s32.totalorder %s164, %s165
      %p174 = scmp.eq.s32.totalorder %s22, 0
      %p175 = por %p173, %p174
      %p176 = scmp.ne.s32.totalorder %s164, %s165
      %p177 = scmp.eq.s32.totalorder %s23, 3
      %p178 = por %p176, %p177
      %p180 = scmp.ne.s32.totalorder %s165, %s179
      %p181 = scmp.eq.s32.totalorder %s23, 0
      %p182 = por %p180, %p181
      %s184 = sadd.s32 %s183, 1
      %p187 = scmp.eq.s32.totalorder %s17, 3
      %p188 = scmp.ne.s32.totalorder %s183, %s185
      %p189 = scmp.eq.s32.totalorder %s17, 0
      %p190 = por %p188, %p189
      %p191 = scmp.ne.s32.totalorder %s183, %s185
      %p192 = scmp.eq.s32.totalorder %s22, 3
      %p193 = por %p191, %p192
      %p194 = scmp.ne.s32.totalorder %s185, %s186
      %p195 = scmp.eq.s32.totalorder %s22, 0
      %p196 = por %p194, %p195
      %p197 = scmp.ne.s32.totalorder %s185, %s186
      %p198 = scmp.eq.s32.totalorder %s23, 3
      %p199 = por %p197, %p198
      %p201 = scmp.ne.s32.totalorder %s186, %s200
      %p202 = scmp.eq.s32.totalorder %s23, 0
      %p203 = por %p201, %p202
      %s205 = sadd.s32 %s204, 1
      %p208 = scmp.eq.s32.totalorder %s17, 3
      %p209 = scmp.ne.s32.totalorder %s204, %s206
      %p210 = scmp.eq.s32.totalorder %s17, 0
      %p211 = por %p209, %p210
      %p212 = scmp.ne.s32.totalorder %s204, %s206
      %p213 = scmp.eq.s32.totalorder %s22, 3
      %p214 = por %p212, %p213
      %p215 = scmp.ne.s32.totalorder %s206, %s207
      %p216 = scmp.eq.s32.totalorder %s22, 0
      %p217 = por %p215, %p216
      %p218 = scmp.ne.s32.totalorder %s206, %s207
      %p219 = scmp.eq.s32.totalorder %s23, 3
      %p220 = por %p218, %p219
      %p222 = scmp.ne.s32.totalorder %s207, %s221
      %p223 = scmp.eq.s32.totalorder %s23, 0
      %p224 = por %p222, %p223
      %s226 = sadd.s32 %s225, 1
      %p229 = scmp.eq.s32.totalorder %s17, 3
      %p230 = scmp.ne.s32.totalorder %s225, %s227
      %p231 = scmp.eq.s32.totalorder %s17, 0
      %p232 = por %p230, %p231
      %p233 = scmp.ne.s32.totalorder %s225, %s227
      %p234 = scmp.eq.s32.totalorder %s22, 3
      %p235 = por %p233, %p234
      %p236 = scmp.ne.s32.totalorder %s227, %s228
      %p237 = scmp.eq.s32.totalorder %s22, 0
      %p238 = por %p236, %p237
      %p239 = scmp.ne.s32.totalorder %s227, %s228
      %p240 = scmp.eq.s32.totalorder %s23, 3
      %p241 = por %p239, %p240
      %p243 = scmp.ne.s32.totalorder %s228, %s242
      %p244 = scmp.eq.s32.totalorder %s23, 0
      %p245 = por %p243, %p244
      %s247 = sadd.s32 %s246, 1
      %p250 = scmp.eq.s32.totalorder %s17, 3
      %p251 = scmp.ne.s32.totalorder %s246, %s248
      %p252 = scmp.eq.s32.totalorder %s17, 0
      %p253 = por %p251, %p252
      %p254 = scmp.ne.s32.totalorder %s246, %s248
      %p255 = scmp.eq.s32.totalorder %s22, 3
      %p256 = por %p254, %p255
      %p257 = scmp.ne.s32.totalorder %s248, %s249
      %p258 = scmp.eq.s32.totalorder %s22, 0
      %p259 = por %p257, %p258
      %p260 = scmp.ne.s32.totalorder %s248, %s249
      %p261 = scmp.eq.s32.totalorder %s23, 3
      %p262 = por %p260, %p261
      %p264 = scmp.ne.s32.totalorder %s249, %s263
      %p265 = scmp.eq.s32.totalorder %s23, 0
      %p266 = por %p264, %p265
      %s267 = ssub.s32 %s24, %s36
      %s268 = ssub.s32 %s25, %s32
      %s269 = sor.u32 %s267, %s268
      %p270 = scmp.eq.s32.totalorder %s269, 0
      %s272 = sadd.s32 %s271, 1
      %s273 = scalar_select %p270, %s271, %s272
      %p276 = pneg %p270
      %p277 = scmp.eq.s32.totalorder %s17, 3
      %p278 = por %p276, %p277
      %p279 = scmp.ne.s32.totalorder %s271, %s274
      %p280 = scmp.eq.s32.totalorder %s17, 0
      %p281 = por %p279, %p280
      %p282 = scmp.ne.s32.totalorder %s271, %s274
      %p283 = scmp.eq.s32.totalorder %s22, 3
      %p284 = por %p282, %p283
      %p285 = scmp.ne.s32.totalorder %s274, %s275
      %p286 = scmp.eq.s32.totalorder %s22, 0
      %p287 = por %p285, %p286
      %p288 = scmp.ne.s32.totalorder %s274, %s275
      %p289 = scmp.eq.s32.totalorder %s23, 3
      %p290 = por %p288, %p289
      %p292 = scmp.ne.s32.totalorder %s275, %s291
      %p293 = scmp.eq.s32.totalorder %s23, 0
      %p294 = por %p292, %p293
      %p295 = scmp.le.s32.totalorder 1, %s17
      %p296 = scmp.lt.s32.totalorder %s17, 5
      %p297 = pnand %p295, %p296
      %p298 = pneg %p297
      // Predicated region
      $region9: #{_lambda_.3} parent=5 // pred_check
        _
      $region10: #{_lambda_.3} parent=5 // pred_check_branch
        %300 = sbr.rel (%p297) target = $region12
      $region11: #{_lambda_.3} parent=5 // pred_region
        %s301 = ssub.s32 %s17, 1
        // Predicated region
        $region13: #{_lambda_.3} parent=11 // pred_check
          %p302 = pneg %p154
        $region14: #{_lambda_.3} parent=11 // pred_check_branch
          %304 = sbr.rel (%p302) target = $region16
        $region15: #{_lambda_.3} parent=11 // pred_region
          %306 = vsyncadd [#allocation3], 0
          %s307 = sshll.u32 %s3, 4
          %s308 = int_to_ptr.hbm [resolvable:$true] %s307
          %s309 = sshll.u32 [#allocation2], 4
          %s310 = int_to_ptr.vmem [resolvable:$true] %s309
          %315 = dma.hbm_to_vmem [thread:$0]  %s308, 3072, %s310, [#allocation3], 64, 64, 4
        $region16: #{_lambda_.3} parent=11 // pred_fallthru
          _
        // Predicated region
        $region17: #{_lambda_.3} parent=11 // pred_check
          %p316 = pneg %p175
        $region18: #{_lambda_.3} parent=11 // pred_check_branch
          %318 = sbr.rel (%p316) target = $region20
        $region19: #{_lambda_.3} parent=11 // pred_region
          _
        $region20: #{_lambda_.3} parent=11 // pred_fallthru
          _
        // Predicated region
        $region21: #{_lambda_.3} parent=11 // pred_check
          %p319 = pneg %p196
        $region22: #{_lambda_.3} parent=11 // pred_check_branch
          %321 = sbr.rel (%p319) target = $region24
        $region23: #{_lambda_.3} parent=11 // pred_region
          %323 = vsyncadd [#allocation5], 0
          %s324 = sshll.u32 %s5, 4
          %s325 = int_to_ptr.hbm [resolvable:$true] %s324
          %s326 = sshll.u32 [#allocation4], 4
          %s327 = int_to_ptr.vmem [resolvable:$true] %s326
          %332 = dma.hbm_to_vmem [thread:$0]  %s325, 3072, %s327, [#allocation5], 64, 64, 4
        $region24: #{_lambda_.3} parent=11 // pred_fallthru
          _
        // Predicated region
        $region25: #{_lambda_.3} parent=11 // pred_check
          %p333 = pneg %p217
        $region26: #{_lambda_.3} parent=11 // pred_check_branch
          %335 = sbr.rel (%p333) target = $region28
        $region27: #{_lambda_.3} parent=11 // pred_region
          _
        $region28: #{_lambda_.3} parent=11 // pred_fallthru
          _
        // Predicated region
        $region29: #{_lambda_.3} parent=11 // pred_check
          %p336 = pneg %p238
        $region30: #{_lambda_.3} parent=11 // pred_check_branch
          %338 = sbr.rel (%p336) target = $region32
        $region31: #{_lambda_.3} parent=11 // pred_region
          %340 = vsyncadd [#allocation5], 0
          %s341 = sshll.u32 %s7, 4
          %s342 = int_to_ptr.hbm [resolvable:$true] %s341
          %s343 = sshll.u32 [#allocation6], 4
          %s344 = int_to_ptr.vmem [resolvable:$true] %s343
          %349 = dma.hbm_to_vmem [thread:$0]  %s342, 1024, %s344, [#allocation5], 64, 64, 4
        $region32: #{_lambda_.3} parent=11 // pred_fallthru
          _
        // Predicated region
        $region33: #{_lambda_.3} parent=11 // pred_check
          %p350 = pneg %p259
        $region34: #{_lambda_.3} parent=11 // pred_check_branch
          %352 = sbr.rel (%p350) target = $region36
        $region35: #{_lambda_.3} parent=11 // pred_region
          _
        $region36: #{_lambda_.3} parent=11 // pred_fallthru
          _
      $region12: #{_lambda_.3} parent=5 // pred_fallthru
        _
      %p353 = scmp.lt.s32.totalorder %s17, 4
      // Predicated region
      $region37: #{_lambda_.3} parent=5 // pred_check
        %p354 = pneg %p353
      $region38: #{_lambda_.3} parent=5 // pred_check_branch
        %356 = sbr.rel (%p354) target = $region40
      $region39: #{_lambda_.3} parent=5 // pred_region
        // Predicated region
        $region41: #{_lambda_.3} parent=39 // pred_check
          %p357 = pneg %p63
        $region42: #{_lambda_.3} parent=39 // pred_check_branch
          %359 = sbr.rel (%p357) target = $region44
        $region43: #{_lambda_.3} parent=39 // pred_region
          %s360 = smul.u32 %s25, 2
          %s361 = ssub.s32 %s360, 1
          %p362 = scmp.gt.s32.totalorder %s361, 0
          %s363 = scalar_select %p362, %s361, 0
          %p364 = scmp.lt.s32.totalorder %s363, 3
          %s365 = scalar_select %p364, %s363, 3
          %s366 = smul.u32 2, %s365
          %p367 = scmp.lt.s32.totalorder %s24, 1
          %s368 = scalar_select %p367, %s24, 1
          %p369 = scmp.lt.s32.totalorder %s366, 7
          %s370 = scalar_select %p369, %s366, 7
          %s371 = smul.addr %s368, 8
          %s372 = sadd.s32 %s370, %s371
          %s373 = smul.addr %s372, 4
          %s374 = scalar_lea.vmem %s0, %s373
          %s375 = smul.u32 %s25, 2
          %s376 = ssub.s32 %s375, 1
          %p377 = scmp.gt.s32.totalorder %s376, 0
          %s378 = scalar_select %p377, %s376, 0
          %p379 = scmp.lt.s32.totalorder %s378, 3
          %s380 = scalar_select %p379, %s378, 3
          %s381 = smul.u32 2, %s380
        $region44: #{_lambda_.3} parent=39 // pred_fallthru
          _
        // Predicated region
        $region45: #{_lambda_.3} parent=39 // pred_check
          %p382 = pneg %p91
        $region46: #{_lambda_.3} parent=39 // pred_check_branch
          %384 = sbr.rel (%p382) target = $region48
        $region47: #{_lambda_.3} parent=39 // pred_region
          %s385 = smul.u32 4, %s25
          %p386 = scmp.lt.s32.totalorder %s24, 1
          %s387 = scalar_select %p386, %s24, 1
          %p388 = scmp.lt.s32.totalorder %s385, 7
          %s389 = scalar_select %p388, %s385, 7
          %s390 = smul.addr %s387, 8
          %s391 = sadd.s32 %s389, %s390
          %s392 = smul.addr %s391, 4
          %s393 = scalar_lea.vmem %s1, %s392
          %s394 = smul.u32 4, %s25
        $region48: #{_lambda_.3} parent=39 // pred_fallthru
          _
        // Predicated region
        $region49: #{_lambda_.3} parent=39 // pred_check
          %p395 = pneg %p127
        $region50: #{_lambda_.3} parent=39 // pred_check_branch
          %397 = sbr.rel (%p395) target = $region52
        $region51: #{_lambda_.3} parent=39 // pred_region
          %s398 = sadd.s32 %s25, 1
          %s399 = smul.u32 %s398, 2
          %p400 = scmp.lt.s32.totalorder %s399, 3
          %s401 = scalar_select %p400, %s399, 3
          %s402 = smul.u32 2, %s401
          %p403 = scmp.lt.s32.totalorder %s24, 1
          %s404 = scalar_select %p403, %s24, 1
          %p405 = scmp.lt.s32.totalorder %s402, 7
          %s406 = scalar_select %p405, %s402, 7
          %s407 = smul.addr %s404, 8
          %s408 = sadd.s32 %s406, %s407
          %s409 = smul.addr %s408, 4
          %s410 = scalar_lea.vmem %s2, %s409
          %s411 = sadd.s32 %s25, 1
          %s412 = smul.u32 %s411, 2
          %p413 = scmp.lt.s32.totalorder %s412, 3
          %s414 = scalar_select %p413, %s412, 3
          %s415 = smul.u32 2, %s414
        $region52: #{_lambda_.3} parent=39 // pred_fallthru
          _
      $region40: #{_lambda_.3} parent=5 // pred_fallthru
        _
      %p416 = scmp.le.s32.totalorder 1, %s17
      %p417 = scmp.lt.s32.totalorder %s17, 5
      %p418 = pnand %p416, %p417
      %p419 = pneg %p418
      // Predicated region
      $region53: #{_lambda_.3} parent=5 // pred_check
        _
      $region54: #{_lambda_.3} parent=5 // pred_check_branch
        %421 = sbr.rel (%p418) target = $region56
      $region55: #{_lambda_.3} parent=5 // pred_region
        %s422 = ssub.s32 %s17, 1
        // Predicated region
        $region57: #{_lambda_.3} parent=55 // pred_check
          %p423 = pneg %p154
        $region58: #{_lambda_.3} parent=55 // pred_check_branch
          %425 = sbr.rel (%p423) target = $region60
        $region59: #{_lambda_.3} parent=55 // pred_region
          %427 = dma.done [#allocation3], 3072
        $region60: #{_lambda_.3} parent=55 // pred_fallthru
          _
        // Predicated region
        $region61: #{_lambda_.3} parent=55 // pred_check
          %p428 = pneg %p196
        $region62: #{_lambda_.3} parent=55 // pred_check_branch
          %430 = sbr.rel (%p428) target = $region64
        $region63: #{_lambda_.3} parent=55 // pred_region
          %432 = dma.done [#allocation5], 3072
        $region64: #{_lambda_.3} parent=55 // pred_fallthru
          _
        // Predicated region
        $region65: #{_lambda_.3} parent=55 // pred_check
          %p433 = pneg %p238
        $region66: #{_lambda_.3} parent=55 // pred_check_branch
          %435 = sbr.rel (%p433) target = $region68
        $region67: #{_lambda_.3} parent=55 // pred_region
          %437 = dma.done [#allocation5], 1024
        $region68: #{_lambda_.3} parent=55 // pred_fallthru
          _
        %s438 = smul.u32 %s27, 2
        %s439 = ssub.s32 %s438, 1
        %p440 = scmp.gt.s32.totalorder %s439, 0
        %s441 = scalar_select %p440, %s439, 0
        %p442 = scmp.lt.s32.totalorder %s441, 3
        %s443 = scalar_select %p442, %s441, 3
        %s444 = smul.u32 2, %s443
        %p445 = scmp.lt.s32.totalorder %s26, 1
        %s446 = scalar_select %p445, %s26, 1
        %p447 = scmp.lt.s32.totalorder %s444, 7
        %s448 = scalar_select %p447, %s444, 7
        %s449 = smul.addr %s446, 8
        %s450 = sadd.s32 %s448, %s449
        %s451 = smul.addr %s450, 4
        %s452 = scalar_lea.vmem %s0, %s451
        %p453 = pneg %p69
        %p454 = pneg %p66
        %s455 = smul.u32 4, %s27
        %p456 = scmp.lt.s32.totalorder %s26, 1
        %s457 = scalar_select %p456, %s26, 1
        %p458 = scmp.lt.s32.totalorder %s455, 7
        %s459 = scalar_select %p458, %s455, 7
        %s460 = smul.addr %s457, 8
        %s461 = sadd.s32 %s459, %s460
        %s462 = smul.addr %s461, 4
        %s463 = scalar_lea.vmem %s1, %s462
        %p464 = pneg %p97
        %p465 = pneg %p94
        %s466 = sadd.s32 %s27, 1
        %s467 = smul.u32 %s466, 2
        %p468 = scmp.lt.s32.totalorder %s467, 3
        %s469 = scalar_select %p468, %s467, 3
        %s470 = smul.u32 2, %s469
        %p471 = scmp.lt.s32.totalorder %s26, 1
        %s472 = scalar_select %p471, %s26, 1
        %p473 = scmp.lt.s32.totalorder %s470, 7
        %s474 = scalar_select %p473, %s470, 7
        %s475 = smul.addr %s472, 8
        %s476 = sadd.s32 %s474, %s475
        %s477 = smul.addr %s476, 4
        %s478 = scalar_lea.vmem %s2, %s477
        %p479 = pneg %p133
        %p480 = pneg %p130
        %p481 = pneg %p154
        %p482 = pneg %p151
        %p483 = pneg %p175
        %p484 = pneg %p172
        %p485 = pneg %p196
        %p486 = pneg %p193
        %p487 = pneg %p217
        %p488 = pneg %p214
        %p489 = pneg %p238
        %p490 = pneg %p235
        %p491 = pneg %p259
        %p492 = pneg %p256
        %p493 = pneg %p287
        %p494 = pneg %p284
        %s495 = smul.u32 4, %s27
        %p496 = scmp.lt.s32.totalorder %s26, 1
        %s497 = scalar_select %p496, %s26, 1
        %p498 = scmp.lt.s32.totalorder %s495, 7
        %s499 = scalar_select %p498, %s495, 7
        %s500 = smul.addr %s497, 8
        %s501 = sadd.s32 %s499, %s500
        %s502 = smul.addr %s501, 4
        %s503 = scalar_lea.vmem %s9, %s502
        %s504 = smul.u32 %s27, 2
        %s505 = ssub.s32 %s504, 1
        %p506 = scmp.gt.s32.totalorder %s505, 0
        %s507 = scalar_select %p506, %s505, 0
        %p508 = scmp.lt.s32.totalorder %s507, 3
        %s509 = scalar_select %p508, %s507, 3
        %s510 = smul.u32 2, %s509
        %p511 = scmp.lt.s32.totalorder %s26, 1
        %s512 = scalar_select %p511, %s26, 1
        %p513 = scmp.lt.s32.totalorder %s510, 7
        %s514 = scalar_select %p513, %s510, 7
        %s515 = smul.addr %s512, 8
        %s516 = sadd.s32 %s514, %s515
        %s517 = smul.addr %s516, 4
        %s518 = scalar_lea.vmem %s0, %s517
        %s519 = smul.u32 %s27, 2
        %s520 = ssub.s32 %s519, 1
        %p521 = scmp.gt.s32.totalorder %s520, 0
        %s522 = scalar_select %p521, %s520, 0
        %p523 = scmp.lt.s32.totalorder %s522, 3
        %s524 = scalar_select %p523, %s522, 3
        %s525 = smul.u32 2, %s524
        %s526 = smul.u32 4, %s27
        %p527 = scmp.lt.s32.totalorder %s26, 1
        %s528 = scalar_select %p527, %s26, 1
        %p529 = scmp.lt.s32.totalorder %s526, 7
        %s530 = scalar_select %p529, %s526, 7
        %s531 = smul.addr %s528, 8
        %s532 = sadd.s32 %s530, %s531
        %s533 = smul.addr %s532, 4
        %s534 = scalar_lea.vmem %s1, %s533
        %s535 = smul.u32 4, %s27
        %s536 = sadd.s32 %s27, 1
        %s537 = smul.u32 %s536, 2
        %p538 = scmp.lt.s32.totalorder %s537, 3
        %s539 = scalar_select %p538, %s537, 3
        %s540 = smul.u32 2, %s539
        %p541 = scmp.lt.s32.totalorder %s26, 1
        %s542 = scalar_select %p541, %s26, 1
        %p543 = scmp.lt.s32.totalorder %s540, 7
        %s544 = scalar_select %p543, %s540, 7
        %s545 = smul.addr %s542, 8
        %s546 = sadd.s32 %s544, %s545
        %s547 = smul.addr %s546, 4
        %s548 = scalar_lea.vmem %s2, %s547
        %s549 = sadd.s32 %s27, 1
        %s550 = smul.u32 %s549, 2
        %p551 = scmp.lt.s32.totalorder %s550, 3
        %s552 = scalar_select %p551, %s550, 3
        %s553 = smul.u32 2, %s552
        %s554 = smul.u32 4, %s27
        %p555 = scmp.lt.s32.totalorder %s26, 1
        %s556 = scalar_select %p555, %s26, 1
        %p557 = scmp.lt.s32.totalorder %s554, 7
        %s558 = scalar_select %p557, %s554, 7
        %s559 = smul.addr %s556, 8
        %s560 = sadd.s32 %s558, %s559
        %s561 = smul.addr %s560, 4
        %s562 = scalar_lea.vmem %s9, %s561
        %s563 = smul.u32 4, %s27
        %v564 = vld [vmem:[%s518] sm:$0xf]
        %v565 = vld [vmem:[%s518 + $0x4] sm:$0xf]
        %v566 = vld [vmem:[%s534] sm:$0xf]
        %v567 = vld [vmem:[%s534 + $0x4] sm:$0xf]
        %v568 = vld [vmem:[%s534 + $0x8] sm:$0xf]
        %v569 = vld [vmem:[%s534 + $0xc] sm:$0xf]
        %v570 = vld [vmem:[%s548] sm:$0xf]
        %v571 = vld [vmem:[%s548 + $0x4] sm:$0xf]
        %v574 = vunpack.c.l.b16 %v564
        %v575 = vunpack.c.l.b16 %v565
        %v576 = vpack.c.b16 %v575, %v574
        %v582 = vunpack.c.l.b16 %v566
        %v583 = vunpack.c.l.b16 %v567
        %v584 = vunpack.c.l.b16 %v568
        %v585 = vunpack.c.l.b16 %v569
        %v586 = vpack.c.b16 %v583, %v582
        %v587 = vpack.c.b16 %v585, %v584
        %v592 = vunpack.c.l.b16 %v570
        %v593 = vunpack.c.l.b16 %v571
        %v594 = vpack.c.b16 %v593, %v592
        %v596 = vld [vmem:[#allocation6] sm:$0xf]
        %v597 = vld [vmem:[#allocation6 + $0x4] sm:$0xf]
        %v598 = vld [vmem:[#allocation6 + $0x8] sm:$0xf]
        %v599 = vld [vmem:[#allocation6 + $0xc] sm:$0xf]
        %v600 = vld [vmem:[#allocation6 + $0x10] sm:$0xf]
        %v601 = vld [vmem:[#allocation6 + $0x14] sm:$0xf]
        %v602 = vld [vmem:[#allocation6 + $0x18] sm:$0xf]
        %v603 = vld [vmem:[#allocation6 + $0x1c] sm:$0xf]
        %v604 = vld [vmem:[#allocation6 + $0x20] sm:$0xf]
        %v605 = vld [vmem:[#allocation6 + $0x24] sm:$0xf]
        %v606 = vld [vmem:[#allocation6 + $0x28] sm:$0xf]
        %v607 = vld [vmem:[#allocation6 + $0x2c] sm:$0xf]
        %v608 = vld [vmem:[#allocation6 + $0x30] sm:$0xf]
        %v609 = vld [vmem:[#allocation6 + $0x34] sm:$0xf]
        %v610 = vld [vmem:[#allocation6 + $0x38] sm:$0xf]
        %v611 = vld [vmem:[#allocation6 + $0x3c] sm:$0xf]
        %v612 = vld [vmem:[%s8] sm:$0x1]
        %v614 = vperm.slane %v612, 0
        %v632 = vunpack.c.l.b16 %v596
        %v633 = vunpack.c.l.b16 %v597
        %v634 = vunpack.c.l.b16 %v598
        %v635 = vunpack.c.l.b16 %v599
        %v636 = vunpack.c.l.b16 %v600
        %v637 = vunpack.c.l.b16 %v601
        %v638 = vunpack.c.l.b16 %v602
        %v639 = vunpack.c.l.b16 %v603
        %v640 = vunpack.c.l.b16 %v604
        %v641 = vunpack.c.l.b16 %v605
        %v642 = vunpack.c.l.b16 %v606
        %v643 = vunpack.c.l.b16 %v607
        %v644 = vunpack.c.l.b16 %v608
        %v645 = vunpack.c.l.b16 %v609
        %v646 = vunpack.c.l.b16 %v610
        %v647 = vunpack.c.l.b16 %v611
        %v648 = vpack.c.b16 %v633, %v632
        %v649 = vpack.c.b16 %v635, %v634
        %v650 = vpack.c.b16 %v637, %v636
        %v651 = vpack.c.b16 %v639, %v638
        %v652 = vpack.c.b16 %v641, %v640
        %v653 = vpack.c.b16 %v643, %v642
        %v654 = vpack.c.b16 %v645, %v644
        %v655 = vpack.c.b16 %v647, %v646
        %664 = vmatpush.bf16.msra.mxu0 %v655
        %665 = vmatpush.bf16.msra.mxu0 %v654
        %666 = vmatpush.bf16.msra.mxu0 %v653
        %667 = vmatpush.bf16.msra.mxu0 %v652
        %668 = vmatpush.bf16.msra.mxu0 %v651
        %669 = vmatpush.bf16.msra.mxu0 %v650
        %670 = vmatpush.bf16.msra.mxu0 %v649
        %671 = vmatpush.bf16.msra.mxu0 %v648
        %672 = vmatmul.bf16.gmra.mxu0 %v586
        %v673 = vpop.f32.mrf.mxu0
        %v674 = vadd.f32 %v614, %v673
        %v675 = vpop.f32.mrf.mxu0
        %v676 = vadd.f32 %v614, %v675
        %677 = vmatmul.bf16.gmra.mxu0 %v587
        %v678 = vpop.f32.mrf.mxu0
        %v679 = vadd.f32 %v614, %v678
        %v680 = vpop.f32.mrf.mxu0
        %v681 = vadd.f32 %v614, %v680
        %682 = vdwg.mxu0
        %v683 = vlaneseq
        %v684 = vshrl.u32 %v683, 7
        %v685 = vadd.s32 %v684, 8
        %v686 = vadd.s32 %v684, 16
        %v687 = vadd.s32 %v684, 24
        %v688 = vadd.s32 %v684, 32
        %v689 = vadd.s32 %v684, 40
        %v690 = vadd.s32 %v684, 48
        %s691 = smul.u32 %s27, 32
        %s692 = ssub.s32 %s691, 16
        %v693 = vstv %s692
        %v694 = vadd.s32 %v685, %v693
        %v695 = vadd.s32 %v686, %v693
        %v696 = vadd.s32 %v687, %v693
        %v697 = vadd.s32 %v688, %v693
        %v698 = vadd.s32 %v689, %v693
        %v699 = vadd.s32 %v690, %v693
        %vm700 = vcmp.ge.s32.totalorder %v694, 0
        %vm701 = vcmp.ge.s32.totalorder %v695, 0
        %vm702 = vcmp.ge.s32.totalorder %v696, 0
        %vm703 = vcmp.ge.s32.totalorder %v697, 0
        %vm704 = vcmp.ge.s32.totalorder %v698, 0
        %vm705 = vcmp.ge.s32.totalorder %v699, 0
        %vm706 = vcmp.lt.s32.totalorder %v694, 64
        %vm707 = vcmp.lt.s32.totalorder %v695, 64
        %vm708 = vcmp.lt.s32.totalorder %v696, 64
        %vm709 = vcmp.lt.s32.totalorder %v697, 64
        %vm710 = vcmp.lt.s32.totalorder %v698, 64
        %vm711 = vcmp.lt.s32.totalorder %v699, 64
        %vm712 = vmand %vm700, %vm706
        %vm713 = vmand %vm701, %vm707
        %vm714 = vmand %vm702, %vm708
        %vm715 = vmand %vm703, %vm709
        %vm716 = vmand %vm704, %vm710
        %vm717 = vmand %vm705, %vm711
        %v718 = vunpack.c.h.bf16 %v576
        %v719 = vunpack.c.l.bf16 %v586
        %v720 = vunpack.c.h.bf16 %v586
        %v721 = vunpack.c.l.bf16 %v587
        %v722 = vunpack.c.h.bf16 %v587
        %v723 = vunpack.c.l.bf16 %v594
        %v724 = vmul.f32 %v718, 0.5
        %v725 = vmul.f32 %v719, 0.5
        %v726 = vmul.f32 %v720, 0.5
        %v727 = vmul.f32 %v721, 0.5
        %v728 = vmul.f32 %v722, 0.5
        %v729 = vmul.f32 %v723, 0.5
        %v730 = vmul.f32 %v718, 0.70710677
        %v731 = vmul.f32 %v719, 0.70710677
        %v732 = vmul.f32 %v720, 0.70710677
        %v733 = vmul.f32 %v721, 0.70710677
        %v734 = vmul.f32 %v722, 0.70710677
        %v735 = vmul.f32 %v723, 0.70710677
        %v736 = vmul.f32 %v730, %v730
        %v737 = vmin.f32 16.0, %v736
        %v738 = vmul.f32 %v737, 2.1237322e-06
        %v739 = vadd.f32 %v738, 0.00028619796
        %v740 = vmul.f32 %v737, %v739
        %v741 = vadd.f32 %v740, 0.0036580483
        %v742 = vmul.f32 %v737, %v741
        %v743 = vadd.f32 %v742, 0.05243302
        %v744 = vmul.f32 %v737, %v743
        %v745 = vadd.f32 %v744, 0.18741608
        %v746 = vmul.f32 %v737, %v745
        %v747 = vadd.f32 %v746, 1.1283791
        %v748 = vmul.f32 %v730, %v747
        %v749 = vmul.f32 %v737, 3.8918573e-05
        %v750 = vadd.f32 %v749, 0.001143296
        %v751 = vmul.f32 %v737, %v750
        %v752 = vadd.f32 %v751, 0.014752088
        %v753 = vmul.f32 %v737, %v752
        %v754 = vadd.f32 %v753, 0.112945676
        %v755 = vmul.f32 %v737, %v754
        %v756 = vadd.f32 %v755, 0.4994258
        %v757 = vmul.f32 %v737, %v756
        %v758 = vadd.f32 %v757, 1.0
        %v759 = vrcp.pop %v758
        %v760 = vmul.f32 %v758, %v759
        %v761 = vsub.f32 1.0, %v760
        %v762 = vmul.f32 %v759, %v761
        %v763 = vadd.f32 %v759, %v762
        %vm764 = vweird.f32 %v758
        %vm765 = vweird.f32 %v759
        %vm766 = vmor %vm764, %vm765
        %v767 = vsel %vm766, %v759, %v763
        %v768 = vand.u32 2147483647, %v758
        %vm769 = vcmp.eq.f32.partialorder %v768, 8.507059e+37
        %v770 = vand.u32 %v758, 2147483648
        %v771 = vor.u32 1.1754944e-38, %v770
        %v772 = vsel %vm769, %v771, %v767
        %v773 = vmul.f32 %v748, %v772
        %v774 = vmin.f32 %v773, 1.0
        %v775 = vmax.f32 %v774, -1.0
        %v776 = vmul.f32 %v731, %v731
        %v777 = vmin.f32 16.0, %v776
        %v778 = vmul.f32 %v777, 2.1237322e-06
        %v779 = vadd.f32 %v778, 0.00028619796
        %v780 = vmul.f32 %v777, %v779
        %v781 = vadd.f32 %v780, 0.0036580483
        %v782 = vmul.f32 %v777, %v781
        %v783 = vadd.f32 %v782, 0.05243302
        %v784 = vmul.f32 %v777, %v783
        %v785 = vadd.f32 %v784, 0.18741608
        %v786 = vmul.f32 %v777, %v785
        %v787 = vadd.f32 %v786, 1.1283791
        %v788 = vmul.f32 %v731, %v787
        %v789 = vmul.f32 %v777, 3.8918573e-05
        %v790 = vadd.f32 %v789, 0.001143296
        %v791 = vmul.f32 %v777, %v790
        %v792 = vadd.f32 %v791, 0.014752088
        %v793 = vmul.f32 %v777, %v792
        %v794 = vadd.f32 %v793, 0.112945676
        %v795 = vmul.f32 %v777, %v794
        %v796 = vadd.f32 %v795, 0.4994258
        %v797 = vmul.f32 %v777, %v796
        %v798 = vadd.f32 %v797, 1.0
        %v799 = vrcp.pop %v798
        %v800 = vmul.f32 %v798, %v799
        %v801 = vsub.f32 1.0, %v800
        %v802 = vmul.f32 %v799, %v801
        %v803 = vadd.f32 %v799, %v802
        %vm804 = vweird.f32 %v798
        %vm805 = vweird.f32 %v799
        %vm806 = vmor %vm804, %vm805
        %v807 = vsel %vm806, %v799, %v803
        %v808 = vand.u32 2147483647, %v798
        %vm809 = vcmp.eq.f32.partialorder %v808, 8.507059e+37
        %v810 = vand.u32 %v798, 2147483648
        %v811 = vor.u32 1.1754944e-38, %v810
        %v812 = vsel %vm809, %v811, %v807
        %v813 = vmul.f32 %v788, %v812
        %v814 = vmin.f32 %v813, 1.0
        %v815 = vmax.f32 %v814, -1.0
        %v816 = vmul.f32 %v732, %v732
        %v817 = vmin.f32 16.0, %v816
        %v818 = vmul.f32 %v817, 2.1237322e-06
        %v819 = vadd.f32 %v818, 0.00028619796
        %v820 = vmul.f32 %v817, %v819
        %v821 = vadd.f32 %v820, 0.0036580483
        %v822 = vmul.f32 %v817, %v821
        %v823 = vadd.f32 %v822, 0.05243302
        %v824 = vmul.f32 %v817, %v823
        %v825 = vadd.f32 %v824, 0.18741608
        %v826 = vmul.f32 %v817, %v825
        %v827 = vadd.f32 %v826, 1.1283791
        %v828 = vmul.f32 %v732, %v827
        %v829 = vmul.f32 %v817, 3.8918573e-05
        %v830 = vadd.f32 %v829, 0.001143296
        %v831 = vmul.f32 %v817, %v830
        %v832 = vadd.f32 %v831, 0.014752088
        %v833 = vmul.f32 %v817, %v832
        %v834 = vadd.f32 %v833, 0.112945676
        %v835 = vmul.f32 %v817, %v834
        %v836 = vadd.f32 %v835, 0.4994258
        %v837 = vmul.f32 %v817, %v836
        %v838 = vadd.f32 %v837, 1.0
        %v839 = vrcp.pop %v838
        %v840 = vmul.f32 %v838, %v839
        %v841 = vsub.f32 1.0, %v840
        %v842 = vmul.f32 %v839, %v841
        %v843 = vadd.f32 %v839, %v842
        %vm844 = vweird.f32 %v838
        %vm845 = vweird.f32 %v839
        %vm846 = vmor %vm844, %vm845
        %v847 = vsel %vm846, %v839, %v843
        %v848 = vand.u32 2147483647, %v838
        %vm849 = vcmp.eq.f32.partialorder %v848, 8.507059e+37
        %v850 = vand.u32 %v838, 2147483648
        %v851 = vor.u32 1.1754944e-38, %v850
        %v852 = vsel %vm849, %v851, %v847
        %v853 = vmul.f32 %v828, %v852
        %v854 = vmin.f32 %v853, 1.0
        %v855 = vmax.f32 %v854, -1.0
        %v856 = vmul.f32 %v733, %v733
        %v857 = vmin.f32 16.0, %v856
        %v858 = vmul.f32 %v857, 2.1237322e-06
        %v859 = vadd.f32 %v858, 0.00028619796
        %v860 = vmul.f32 %v857, %v859
        %v861 = vadd.f32 %v860, 0.0036580483
        %v862 = vmul.f32 %v857, %v861
        %v863 = vadd.f32 %v862, 0.05243302
        %v864 = vmul.f32 %v857, %v863
        %v865 = vadd.f32 %v864, 0.18741608
        %v866 = vmul.f32 %v857, %v865
        %v867 = vadd.f32 %v866, 1.1283791
        %v868 = vmul.f32 %v733, %v867
        %v869 = vmul.f32 %v857, 3.8918573e-05
        %v870 = vadd.f32 %v869, 0.001143296
        %v871 = vmul.f32 %v857, %v870
        %v872 = vadd.f32 %v871, 0.014752088
        %v873 = vmul.f32 %v857, %v872
        %v874 = vadd.f32 %v873, 0.112945676
        %v875 = vmul.f32 %v857, %v874
        %v876 = vadd.f32 %v875, 0.4994258
        %v877 = vmul.f32 %v857, %v876
        %v878 = vadd.f32 %v877, 1.0
        %v879 = vrcp.pop %v878
        %v880 = vmul.f32 %v878, %v879
        %v881 = vsub.f32 1.0, %v880
        %v882 = vmul.f32 %v879, %v881
        %v883 = vadd.f32 %v879, %v882
        %vm884 = vweird.f32 %v878
        %vm885 = vweird.f32 %v879
        %vm886 = vmor %vm884, %vm885
        %v887 = vsel %vm886, %v879, %v883
        %v888 = vand.u32 2147483647, %v878
        %vm889 = vcmp.eq.f32.partialorder %v888, 8.507059e+37
        %v890 = vand.u32 %v878, 2147483648
        %v891 = vor.u32 1.1754944e-38, %v890
        %v892 = vsel %vm889, %v891, %v887
        %v893 = vmul.f32 %v868, %v892
        %v894 = vmin.f32 %v893, 1.0
        %v895 = vmax.f32 %v894, -1.0
        %v896 = vmul.f32 %v734, %v734
        %v897 = vmin.f32 16.0, %v896
        %v898 = vmul.f32 %v897, 2.1237322e-06
        %v899 = vadd.f32 %v898, 0.00028619796
        %v900 = vmul.f32 %v897, %v899
        %v901 = vadd.f32 %v900, 0.0036580483
        %v902 = vmul.f32 %v897, %v901
        %v903 = vadd.f32 %v902, 0.05243302
        %v904 = vmul.f32 %v897, %v903
        %v905 = vadd.f32 %v904, 0.18741608
        %v906 = vmul.f32 %v897, %v905
        %v907 = vadd.f32 %v906, 1.1283791
        %v908 = vmul.f32 %v734, %v907
        %v909 = vmul.f32 %v897, 3.8918573e-05
        %v910 = vadd.f32 %v909, 0.001143296
        %v911 = vmul.f32 %v897, %v910
        %v912 = vadd.f32 %v911, 0.014752088
        %v913 = vmul.f32 %v897, %v912
        %v914 = vadd.f32 %v913, 0.112945676
        %v915 = vmul.f32 %v897, %v914
        %v916 = vadd.f32 %v915, 0.4994258
        %v917 = vmul.f32 %v897, %v916
        %v918 = vadd.f32 %v917, 1.0
        %v919 = vrcp.pop %v918
        %v920 = vmul.f32 %v918, %v919
        %v921 = vsub.f32 1.0, %v920
        %v922 = vmul.f32 %v919, %v921
        %v923 = vadd.f32 %v919, %v922
        %vm924 = vweird.f32 %v918
        %vm925 = vweird.f32 %v919
        %vm926 = vmor %vm924, %vm925
        %v927 = vsel %vm926, %v919, %v923
        %v928 = vand.u32 2147483647, %v918
        %vm929 = vcmp.eq.f32.partialorder %v928, 8.507059e+37
        %v930 = vand.u32 %v918, 2147483648
        %v931 = vor.u32 1.1754944e-38, %v930
        %v932 = vsel %vm929, %v931, %v927
        %v933 = vmul.f32 %v908, %v932
        %v934 = vmin.f32 %v933, 1.0
        %v935 = vmax.f32 %v934, -1.0
        %v936 = vmul.f32 %v735, %v735
        %v937 = vmin.f32 16.0, %v936
        %v938 = vmul.f32 %v937, 2.1237322e-06
        %v939 = vadd.f32 %v938, 0.00028619796
        %v940 = vmul.f32 %v937, %v939
        %v941 = vadd.f32 %v940, 0.0036580483
        %v942 = vmul.f32 %v937, %v941
        %v943 = vadd.f32 %v942, 0.05243302
        %v944 = vmul.f32 %v937, %v943
        %v945 = vadd.f32 %v944, 0.18741608
        %v946 = vmul.f32 %v937, %v945
        %v947 = vadd.f32 %v946, 1.1283791
        %v948 = vmul.f32 %v735, %v947
        %v949 = vmul.f32 %v937, 3.8918573e-05
        %v950 = vadd.f32 %v949, 0.001143296
        %v951 = vmul.f32 %v937, %v950
        %v952 = vadd.f32 %v951, 0.014752088
        %v953 = vmul.f32 %v937, %v952
        %v954 = vadd.f32 %v953, 0.112945676
        %v955 = vmul.f32 %v937, %v954
        %v956 = vadd.f32 %v955, 0.4994258
        %v957 = vmul.f32 %v937, %v956
        %v958 = vadd.f32 %v957, 1.0
        %v959 = vrcp.pop %v958
        %v960 = vmul.f32 %v958, %v959
        %v961 = vsub.f32 1.0, %v960
        %v962 = vmul.f32 %v959, %v961
        %v963 = vadd.f32 %v959, %v962
        %vm964 = vweird.f32 %v958
        %vm965 = vweird.f32 %v959
        %vm966 = vmor %vm964, %vm965
        %v967 = vsel %vm966, %v959, %v963
        %v968 = vand.u32 2147483647, %v958
        %vm969 = vcmp.eq.f32.partialorder %v968, 8.507059e+37
        %v970 = vand.u32 %v958, 2147483648
        %v971 = vor.u32 1.1754944e-38, %v970
        %v972 = vsel %vm969, %v971, %v967
        %v973 = vmul.f32 %v948, %v972
        %v974 = vmin.f32 %v973, 1.0
        %v975 = vmax.f32 %v974, -1.0
        %v976 = vadd.f32 %v775, 1.0
        %v977 = vadd.f32 %v815, 1.0
        %v978 = vadd.f32 %v855, 1.0
        %v979 = vadd.f32 %v895, 1.0
        %v980 = vadd.f32 %v935, 1.0
        %v981 = vadd.f32 %v975, 1.0
        %v982 = vmul.f32 %v724, %v976
        %v983 = vmul.f32 %v725, %v977
        %v984 = vmul.f32 %v726, %v978
        %v985 = vmul.f32 %v727, %v979
        %v986 = vmul.f32 %v728, %v980
        %v987 = vmul.f32 %v729, %v981
        %v988 = vsel %vm712, 1, 0
        %v989 = vsel %vm713, 1, 0
        %v990 = vsel %vm714, 1, 0
        %v991 = vsel %vm715, 1, 0
        %v992 = vsel %vm716, 1, 0
        %v993 = vsel %vm717, 1, 0
        %vm994 = vcmp.eq.s32.totalorder %v988, 1
        %vm995 = vcmp.eq.s32.totalorder %v989, 1
        %vm996 = vcmp.eq.s32.totalorder %v990, 1
        %vm997 = vcmp.eq.s32.totalorder %v991, 1
        %vm998 = vcmp.eq.s32.totalorder %v992, 1
        %vm999 = vcmp.eq.s32.totalorder %v993, 1
        %v1000 = vsel %vm994, %v982, 0.0
        %v1001 = vsel %vm995, %v983, 0.0
        %v1002 = vsel %vm996, %v984, 0.0
        %v1003 = vsel %vm997, %v985, 0.0
        %v1004 = vsel %vm998, %v986, 0.0
        %v1005 = vsel %vm999, %v987, 0.0
        %v1006 = vpack.c.bf16 %v1000, %v1000
        %v1007 = vpack.c.bf16 %v1001, %v1001
        %v1008 = vpack.c.bf16 %v1002, %v1002
        %v1009 = vpack.c.bf16 %v1003, %v1003
        %v1010 = vpack.c.bf16 %v1004, %v1004
        %v1011 = vpack.c.bf16 %v1005, %v1005
        %v1012 = vld [vmem:[#allocation2] sm:$0xf]
        %v1013 = vld [vmem:[#allocation2 + $0x4] sm:$0xf]
        %v1014 = vld [vmem:[#allocation2 + $0x8] sm:$0xf]
        %v1015 = vld [vmem:[#allocation2 + $0xc] sm:$0xf]
        %v1016 = vld [vmem:[#allocation2 + $0x10] sm:$0xf]
        %v1017 = vld [vmem:[#allocation2 + $0x14] sm:$0xf]
        %v1018 = vld [vmem:[#allocation2 + $0x18] sm:$0xf]
        %v1019 = vld [vmem:[#allocation2 + $0x1c] sm:$0xf]
        %v1020 = vld [vmem:[#allocation2 + $0x20] sm:$0xf]
        %v1021 = vld [vmem:[#allocation2 + $0x24] sm:$0xf]
        %v1022 = vld [vmem:[#allocation2 + $0x28] sm:$0xf]
        %v1023 = vld [vmem:[#allocation2 + $0x2c] sm:$0xf]
        %v1024 = vld [vmem:[#allocation2 + $0x30] sm:$0xf]
        %v1025 = vld [vmem:[#allocation2 + $0x34] sm:$0xf]
        %v1026 = vld [vmem:[#allocation2 + $0x38] sm:$0xf]
        %v1027 = vld [vmem:[#allocation2 + $0x3c] sm:$0xf]
        %s1028 = scalar_lea.vmem [#allocation2], 64
        %v1029 = vld [vmem:[%s1028] sm:$0xf]
        %v1030 = vld [vmem:[%s1028 + $0x4] sm:$0xf]
        %v1031 = vld [vmem:[%s1028 + $0x8] sm:$0xf]
        %v1032 = vld [vmem:[%s1028 + $0xc] sm:$0xf]
        %v1033 = vld [vmem:[%s1028 + $0x10] sm:$0xf]
        %v1034 = vld [vmem:[%s1028 + $0x14] sm:$0xf]
        %v1035 = vld [vmem:[%s1028 + $0x18] sm:$0xf]
        %v1036 = vld [vmem:[%s1028 + $0x1c] sm:$0xf]
        %v1037 = vld [vmem:[%s1028 + $0x20] sm:$0xf]
        %v1038 = vld [vmem:[%s1028 + $0x24] sm:$0xf]
        %v1039 = vld [vmem:[%s1028 + $0x28] sm:$0xf]
        %v1040 = vld [vmem:[%s1028 + $0x2c] sm:$0xf]
        %v1041 = vld [vmem:[%s1028 + $0x30] sm:$0xf]
        %v1042 = vld [vmem:[%s1028 + $0x34] sm:$0xf]
        %v1043 = vld [vmem:[%s1028 + $0x38] sm:$0xf]
        %v1044 = vld [vmem:[%s1028 + $0x3c] sm:$0xf]
        %v1051 = vunpack.c.l.b16 %v1006
        %v1052 = vunpack.c.l.b16 %v1007
        %v1053 = vunpack.c.l.b16 %v1008
        %v1054 = vunpack.c.l.b16 %v1009
        %v1055 = vunpack.c.l.b16 %v1010
        %v1056 = vunpack.c.l.b16 %v1011
        %v1057 = vpack.c.b16 %v1052, %v1051
        %v1058 = vpack.c.b16 %v1054, %v1053
        %v1059 = vpack.c.b16 %v1056, %v1055
        %vm1060 = vsmask.f32 4352
        %v1062 = vshrl.u32 %v1057, 16
        %v1064 = vrot.slane %v1062, 3
        %v1065 = vshll.u32 %v1057, 16
        %v1067 = vrot.slane %v1065, 4
        %v1068 = vor.u32 %v1064, %v1067
        %v1070 = vshrl.u32 %v1058, 16
        %v1072 = vrot.slane %v1070, 3
        %v1073 = vshll.u32 %v1058, 16
        %v1075 = vrot.slane %v1073, 4
        %v1076 = vor.u32 %v1072, %v1075
        %v1077 = vsel %vm1060, %v1068, %v1076
        %v1079 = vshrl.u32 %v1059, 16
        %v1081 = vrot.slane %v1079, 3
        %v1082 = vshll.u32 %v1059, 16
        %v1084 = vrot.slane %v1082, 4
        %v1085 = vor.u32 %v1081, %v1084
        %v1086 = vsel %vm1060, %v1076, %v1085
        %v1106 = vunpack.c.l.b16 %v1029
        %v1107 = vunpack.c.l.b16 %v1030
        %v1108 = vunpack.c.l.b16 %v1031
        %v1109 = vunpack.c.l.b16 %v1032
        %v1110 = vunpack.c.l.b16 %v1033
        %v1111 = vunpack.c.l.b16 %v1034
        %v1112 = vunpack.c.l.b16 %v1035
        %v1113 = vunpack.c.l.b16 %v1036
        %v1114 = vunpack.c.l.b16 %v1037
        %v1115 = vunpack.c.l.b16 %v1038
        %v1116 = vunpack.c.l.b16 %v1039
        %v1117 = vunpack.c.l.b16 %v1040
        %v1118 = vunpack.c.l.b16 %v1041
        %v1119 = vunpack.c.l.b16 %v1042
        %v1120 = vunpack.c.l.b16 %v1043
        %v1121 = vunpack.c.l.b16 %v1044
        %v1122 = vpack.c.b16 %v1107, %v1106
        %v1123 = vpack.c.b16 %v1109, %v1108
        %v1124 = vpack.c.b16 %v1111, %v1110
        %v1125 = vpack.c.b16 %v1113, %v1112
        %v1126 = vpack.c.b16 %v1115, %v1114
        %v1127 = vpack.c.b16 %v1117, %v1116
        %v1128 = vpack.c.b16 %v1119, %v1118
        %v1129 = vpack.c.b16 %v1121, %v1120
        %1138 = vmatpush.bf16.msra.mxu0 %v1129
        %1139 = vmatpush.bf16.msra.mxu0 %v1128
        %1140 = vmatpush.bf16.msra.mxu0 %v1127
        %1141 = vmatpush.bf16.msra.mxu0 %v1126
        %1142 = vmatpush.bf16.msra.mxu0 %v1125
        %1143 = vmatpush.bf16.msra.mxu0 %v1124
        %1144 = vmatpush.bf16.msra.mxu0 %v1123
        %1145 = vmatpush.bf16.msra.mxu0 %v1122
        %1146 = vmatmul.bf16.gmra.mxu0 %v1077
        %v1147 = vpop.f32.mrf.mxu0
        %v1148 = vadd.f32 0.0, %v1147
        %v1149 = vpop.f32.mrf.mxu0
        %v1150 = vadd.f32 0.0, %v1149
        %1151 = vmatmul.bf16.gmra.mxu0 %v1086
        %v1152 = vpop.f32.mrf.mxu0
        %v1153 = vadd.f32 0.0, %v1152
        %v1154 = vpop.f32.mrf.mxu0
        %v1155 = vadd.f32 0.0, %v1154
        %1156 = vmatmul.bf16.gmra.mxu0 %v1085
        %v1157 = vpop.f32.mrf.mxu0
        %v1158 = vadd.f32 0.0, %v1157
        %v1159 = vpop.f32.mrf.mxu0
        %1160 = vdwg.mxu0
        %v1161 = vpack.c.b16 %v1055, %v1055
        %vm1162 = vcmask 1044480
        %v1163 = vrot.slane %v1057, 3
        %v1164 = vrot.slane %v1058, 3
        %v1165 = vsel %vm1162, %v1163, %v1164
        %v1166 = vrot.slane %v1161, 3
        %v1167 = vsel %vm1162, %v1164, %v1166
        %v1187 = vunpack.c.l.b16 %v1012
        %v1188 = vunpack.c.l.b16 %v1013
        %v1189 = vunpack.c.l.b16 %v1014
        %v1190 = vunpack.c.l.b16 %v1015
        %v1191 = vunpack.c.l.b16 %v1016
        %v1192 = vunpack.c.l.b16 %v1017
        %v1193 = vunpack.c.l.b16 %v1018
        %v1194 = vunpack.c.l.b16 %v1019
        %v1195 = vunpack.c.l.b16 %v1020
        %v1196 = vunpack.c.l.b16 %v1021
        %v1197 = vunpack.c.l.b16 %v1022
        %v1198 = vunpack.c.l.b16 %v1023
        %v1199 = vunpack.c.l.b16 %v1024
        %v1200 = vunpack.c.l.b16 %v1025
        %v1201 = vunpack.c.l.b16 %v1026
        %v1202 = vunpack.c.l.b16 %v1027
        %v1203 = vpack.c.b16 %v1188, %v1187
        %v1204 = vpack.c.b16 %v1190, %v1189
        %v1205 = vpack.c.b16 %v1192, %v1191
        %v1206 = vpack.c.b16 %v1194, %v1193
        %v1207 = vpack.c.b16 %v1196, %v1195
        %v1208 = vpack.c.b16 %v1198, %v1197
        %v1209 = vpack.c.b16 %v1200, %v1199
        %v1210 = vpack.c.b16 %v1202, %v1201
        %1219 = vmatpush.bf16.msra.mxu0 %v1210
        %1220 = vmatpush.bf16.msra.mxu0 %v1209
        %1221 = vmatpush.bf16.msra.mxu0 %v1208
        %1222 = vmatpush.bf16.msra.mxu0 %v1207
        %1223 = vmatpush.bf16.msra.mxu0 %v1206
        %1224 = vmatpush.bf16.msra.mxu0 %v1205
        %1225 = vmatpush.bf16.msra.mxu0 %v1204
        %1226 = vmatpush.bf16.msra.mxu0 %v1203
        %1227 = vmatmul.bf16.gmra.mxu0 %v1165
        %v1228 = vpop.f32.mrf.mxu0
        %v1229 = vadd.f32 %v1148, %v1228
        %v1230 = vpop.f32.mrf.mxu0
        %v1231 = vadd.f32 %v1150, %v1230
        %1232 = vmatmul.bf16.gmra.mxu0 %v1167
        %v1233 = vpop.f32.mrf.mxu0
        %v1234 = vadd.f32 %v1153, %v1233
        %v1235 = vpop.f32.mrf.mxu0
        %v1236 = vadd.f32 %v1155, %v1235
        %1237 = vmatmul.bf16.gmra.mxu0 %v1166
        %v1238 = vpop.f32.mrf.mxu0
        %v1239 = vadd.f32 %v1158, %v1238
        %v1240 = vpop.f32.mrf.mxu0
        %1241 = vdwg.mxu0
        %s1242 = scalar_lea.vmem [#allocation2], 128
        %v1243 = vld [vmem:[%s1242] sm:$0xf]
        %v1244 = vld [vmem:[%s1242 + $0x4] sm:$0xf]
        %v1245 = vld [vmem:[%s1242 + $0x8] sm:$0xf]
        %v1246 = vld [vmem:[%s1242 + $0xc] sm:$0xf]
        %v1247 = vld [vmem:[%s1242 + $0x10] sm:$0xf]
        %v1248 = vld [vmem:[%s1242 + $0x14] sm:$0xf]
        %v1249 = vld [vmem:[%s1242 + $0x18] sm:$0xf]
        %v1250 = vld [vmem:[%s1242 + $0x1c] sm:$0xf]
        %v1251 = vld [vmem:[%s1242 + $0x20] sm:$0xf]
        %v1252 = vld [vmem:[%s1242 + $0x24] sm:$0xf]
        %v1253 = vld [vmem:[%s1242 + $0x28] sm:$0xf]
        %v1254 = vld [vmem:[%s1242 + $0x2c] sm:$0xf]
        %v1255 = vld [vmem:[%s1242 + $0x30] sm:$0xf]
        %v1256 = vld [vmem:[%s1242 + $0x34] sm:$0xf]
        %v1257 = vld [vmem:[%s1242 + $0x38] sm:$0xf]
        %v1258 = vld [vmem:[%s1242 + $0x3c] sm:$0xf]
        %v1259 = vpack.c.b16 %v1053, %v1052
        %v1260 = vpack.c.b16 %v1055, %v1054
        %v1261 = vpack.c.b16 %v1056, %v1056
        %v1281 = vunpack.c.l.b16 %v1243
        %v1282 = vunpack.c.l.b16 %v1244
        %v1283 = vunpack.c.l.b16 %v1245
        %v1284 = vunpack.c.l.b16 %v1246
        %v1285 = vunpack.c.l.b16 %v1247
        %v1286 = vunpack.c.l.b16 %v1248
        %v1287 = vunpack.c.l.b16 %v1249
        %v1288 = vunpack.c.l.b16 %v1250
        %v1289 = vunpack.c.l.b16 %v1251
        %v1290 = vunpack.c.l.b16 %v1252
        %v1291 = vunpack.c.l.b16 %v1253
        %v1292 = vunpack.c.l.b16 %v1254
        %v1293 = vunpack.c.l.b16 %v1255
        %v1294 = vunpack.c.l.b16 %v1256
        %v1295 = vunpack.c.l.b16 %v1257
        %v1296 = vunpack.c.l.b16 %v1258
        %v1297 = vpack.c.b16 %v1282, %v1281
        %v1298 = vpack.c.b16 %v1284, %v1283
        %v1299 = vpack.c.b16 %v1286, %v1285
        %v1300 = vpack.c.b16 %v1288, %v1287
        %v1301 = vpack.c.b16 %v1290, %v1289
        %v1302 = vpack.c.b16 %v1292, %v1291
        %v1303 = vpack.c.b16 %v1294, %v1293
        %v1304 = vpack.c.b16 %v1296, %v1295
        %1313 = vmatpush.bf16.msra.mxu0 %v1304
        %1314 = vmatpush.bf16.msra.mxu0 %v1303
        %1315 = vmatpush.bf16.msra.mxu0 %v1302
        %1316 = vmatpush.bf16.msra.mxu0 %v1301
        %1317 = vmatpush.bf16.msra.mxu0 %v1300
        %1318 = vmatpush.bf16.msra.mxu0 %v1299
        %1319 = vmatpush.bf16.msra.mxu0 %v1298
        %1320 = vmatpush.bf16.msra.mxu0 %v1297
        %1321 = vmatmul.bf16.gmra.mxu0 %v1259
        %v1322 = vpop.f32.mrf.mxu0
        %v1323 = vadd.f32 0.0, %v1322
        %v1324 = vpop.f32.mrf.mxu0
        %v1325 = vadd.f32 0.0, %v1324
        %1326 = vmatmul.bf16.gmra.mxu0 %v1260
        %v1327 = vpop.f32.mrf.mxu0
        %v1328 = vadd.f32 0.0, %v1327
        %v1329 = vpop.f32.mrf.mxu0
        %v1330 = vadd.f32 0.0, %v1329
        %1331 = vmatmul.bf16.gmra.mxu0 %v1261
        %v1332 = vpop.f32.mrf.mxu0
        %v1333 = vadd.f32 0.0, %v1332
        %v1334 = vpop.f32.mrf.mxu0
        %1335 = vdwg.mxu0
        %v1336 = vadd.f32 %v1229, %v1323
        %v1337 = vadd.f32 %v1231, %v1325
        %v1338 = vadd.f32 %v1234, %v1328
        %v1339 = vadd.f32 %v1236, %v1330
        %v1340 = vadd.f32 %v1239, %v1333
        %v1341 = vld [vmem:[%s4] sm:$0x1]
        %v1343 = vperm.slane %v1341, 0
        %v1345 = vadd.f32 %v1336, %v1343
        %v1346 = vadd.f32 %v1337, %v1343
        %v1347 = vadd.f32 %v1338, %v1343
        %v1348 = vadd.f32 %v1339, %v1343
        %v1349 = vadd.f32 %v1340, %v1343
        %s1350 = ssub.s32 %s691, 1
        %v1351 = vstv %s1350
        %v1352 = vadd.s32 %v684, %v1351
        %v1353 = vadd.s32 %v685, %v1351
        %v1354 = vadd.s32 %v686, %v1351
        %v1355 = vadd.s32 %v687, %v1351
        %v1356 = vadd.s32 %v688, %v1351
        %vm1357 = vcmp.ge.s32.totalorder %v1352, 0
        %vm1358 = vcmp.ge.s32.totalorder %v1353, 0
        %vm1359 = vcmp.ge.s32.totalorder %v1354, 0
        %vm1360 = vcmp.ge.s32.totalorder %v1355, 0
        %vm1361 = vcmp.ge.s32.totalorder %v1356, 0
        %vm1362 = vcmp.lt.s32.totalorder %v1352, 64
        %vm1363 = vcmp.lt.s32.totalorder %v1353, 64
        %vm1364 = vcmp.lt.s32.totalorder %v1354, 64
        %vm1365 = vcmp.lt.s32.totalorder %v1355, 64
        %vm1366 = vcmp.lt.s32.totalorder %v1356, 64
        %vm1367 = vmand %vm1357, %vm1362
        %vm1368 = vmand %vm1358, %vm1363
        %vm1369 = vmand %vm1359, %vm1364
        %vm1370 = vmand %vm1360, %vm1365
        %vm1371 = vmand %vm1361, %vm1366
        %v1372 = vmul.f32 %v1345, 0.5
        %v1373 = vmul.f32 %v1346, 0.5
        %v1374 = vmul.f32 %v1347, 0.5
        %v1375 = vmul.f32 %v1348, 0.5
        %v1376 = vmul.f32 %v1349, 0.5
        %v1377 = vmul.f32 %v1345, 0.70710677
        %v1378 = vmul.f32 %v1346, 0.70710677
        %v1379 = vmul.f32 %v1347, 0.70710677
        %v1380 = vmul.f32 %v1348, 0.70710677
        %v1381 = vmul.f32 %v1349, 0.70710677
        %v1382 = vmul.f32 %v1377, %v1377
        %v1383 = vmin.f32 16.0, %v1382
        %v1384 = vmul.f32 %v1383, 2.1237322e-06
        %v1385 = vadd.f32 %v1384, 0.00028619796
        %v1386 = vmul.f32 %v1383, %v1385
        %v1387 = vadd.f32 %v1386, 0.0036580483
        %v1388 = vmul.f32 %v1383, %v1387
        %v1389 = vadd.f32 %v1388, 0.05243302
        %v1390 = vmul.f32 %v1383, %v1389
        %v1391 = vadd.f32 %v1390, 0.18741608
        %v1392 = vmul.f32 %v1383, %v1391
        %v1393 = vadd.f32 %v1392, 1.1283791
        %v1394 = vmul.f32 %v1377, %v1393
        %v1395 = vmul.f32 %v1383, 3.8918573e-05
        %v1396 = vadd.f32 %v1395, 0.001143296
        %v1397 = vmul.f32 %v1383, %v1396
        %v1398 = vadd.f32 %v1397, 0.014752088
        %v1399 = vmul.f32 %v1383, %v1398
        %v1400 = vadd.f32 %v1399, 0.112945676
        %v1401 = vmul.f32 %v1383, %v1400
        %v1402 = vadd.f32 %v1401, 0.4994258
        %v1403 = vmul.f32 %v1383, %v1402
        %v1404 = vadd.f32 %v1403, 1.0
        %v1405 = vrcp.pop %v1404
        %v1406 = vmul.f32 %v1404, %v1405
        %v1407 = vsub.f32 1.0, %v1406
        %v1408 = vmul.f32 %v1405, %v1407
        %v1409 = vadd.f32 %v1405, %v1408
        %vm1410 = vweird.f32 %v1404
        %vm1411 = vweird.f32 %v1405
        %vm1412 = vmor %vm1410, %vm1411
        %v1413 = vsel %vm1412, %v1405, %v1409
        %v1414 = vand.u32 2147483647, %v1404
        %vm1415 = vcmp.eq.f32.partialorder %v1414, 8.507059e+37
        %v1416 = vand.u32 %v1404, 2147483648
        %v1417 = vor.u32 1.1754944e-38, %v1416
        %v1418 = vsel %vm1415, %v1417, %v1413
        %v1419 = vmul.f32 %v1394, %v1418
        %v1420 = vmin.f32 %v1419, 1.0
        %v1421 = vmax.f32 %v1420, -1.0
        %v1422 = vmul.f32 %v1378, %v1378
        %v1423 = vmin.f32 16.0, %v1422
        %v1424 = vmul.f32 %v1423, 2.1237322e-06
        %v1425 = vadd.f32 %v1424, 0.00028619796
        %v1426 = vmul.f32 %v1423, %v1425
        %v1427 = vadd.f32 %v1426, 0.0036580483
        %v1428 = vmul.f32 %v1423, %v1427
        %v1429 = vadd.f32 %v1428, 0.05243302
        %v1430 = vmul.f32 %v1423, %v1429
        %v1431 = vadd.f32 %v1430, 0.18741608
        %v1432 = vmul.f32 %v1423, %v1431
        %v1433 = vadd.f32 %v1432, 1.1283791
        %v1434 = vmul.f32 %v1378, %v1433
        %v1435 = vmul.f32 %v1423, 3.8918573e-05
        %v1436 = vadd.f32 %v1435, 0.001143296
        %v1437 = vmul.f32 %v1423, %v1436
        %v1438 = vadd.f32 %v1437, 0.014752088
        %v1439 = vmul.f32 %v1423, %v1438
        %v1440 = vadd.f32 %v1439, 0.112945676
        %v1441 = vmul.f32 %v1423, %v1440
        %v1442 = vadd.f32 %v1441, 0.4994258
        %v1443 = vmul.f32 %v1423, %v1442
        %v1444 = vadd.f32 %v1443, 1.0
        %v1445 = vrcp.pop %v1444
        %v1446 = vmul.f32 %v1444, %v1445
        %v1447 = vsub.f32 1.0, %v1446
        %v1448 = vmul.f32 %v1445, %v1447
        %v1449 = vadd.f32 %v1445, %v1448
        %vm1450 = vweird.f32 %v1444
        %vm1451 = vweird.f32 %v1445
        %vm1452 = vmor %vm1450, %vm1451
        %v1453 = vsel %vm1452, %v1445, %v1449
        %v1454 = vand.u32 2147483647, %v1444
        %vm1455 = vcmp.eq.f32.partialorder %v1454, 8.507059e+37
        %v1456 = vand.u32 %v1444, 2147483648
        %v1457 = vor.u32 1.1754944e-38, %v1456
        %v1458 = vsel %vm1455, %v1457, %v1453
        %v1459 = vmul.f32 %v1434, %v1458
        %v1460 = vmin.f32 %v1459, 1.0
        %v1461 = vmax.f32 %v1460, -1.0
        %v1462 = vmul.f32 %v1379, %v1379
        %v1463 = vmin.f32 16.0, %v1462
        %v1464 = vmul.f32 %v1463, 2.1237322e-06
        %v1465 = vadd.f32 %v1464, 0.00028619796
        %v1466 = vmul.f32 %v1463, %v1465
        %v1467 = vadd.f32 %v1466, 0.0036580483
        %v1468 = vmul.f32 %v1463, %v1467
        %v1469 = vadd.f32 %v1468, 0.05243302
        %v1470 = vmul.f32 %v1463, %v1469
        %v1471 = vadd.f32 %v1470, 0.18741608
        %v1472 = vmul.f32 %v1463, %v1471
        %v1473 = vadd.f32 %v1472, 1.1283791
        %v1474 = vmul.f32 %v1379, %v1473
        %v1475 = vmul.f32 %v1463, 3.8918573e-05
        %v1476 = vadd.f32 %v1475, 0.001143296
        %v1477 = vmul.f32 %v1463, %v1476
        %v1478 = vadd.f32 %v1477, 0.014752088
        %v1479 = vmul.f32 %v1463, %v1478
        %v1480 = vadd.f32 %v1479, 0.112945676
        %v1481 = vmul.f32 %v1463, %v1480
        %v1482 = vadd.f32 %v1481, 0.4994258
        %v1483 = vmul.f32 %v1463, %v1482
        %v1484 = vadd.f32 %v1483, 1.0
        %v1485 = vrcp.pop %v1484
        %v1486 = vmul.f32 %v1484, %v1485
        %v1487 = vsub.f32 1.0, %v1486
        %v1488 = vmul.f32 %v1485, %v1487
        %v1489 = vadd.f32 %v1485, %v1488
        %vm1490 = vweird.f32 %v1484
        %vm1491 = vweird.f32 %v1485
        %vm1492 = vmor %vm1490, %vm1491
        %v1493 = vsel %vm1492, %v1485, %v1489
        %v1494 = vand.u32 2147483647, %v1484
        %vm1495 = vcmp.eq.f32.partialorder %v1494, 8.507059e+37
        %v1496 = vand.u32 %v1484, 2147483648
        %v1497 = vor.u32 1.1754944e-38, %v1496
        %v1498 = vsel %vm1495, %v1497, %v1493
        %v1499 = vmul.f32 %v1474, %v1498
        %v1500 = vmin.f32 %v1499, 1.0
        %v1501 = vmax.f32 %v1500, -1.0
        %v1502 = vmul.f32 %v1380, %v1380
        %v1503 = vmin.f32 16.0, %v1502
        %v1504 = vmul.f32 %v1503, 2.1237322e-06
        %v1505 = vadd.f32 %v1504, 0.00028619796
        %v1506 = vmul.f32 %v1503, %v1505
        %v1507 = vadd.f32 %v1506, 0.0036580483
        %v1508 = vmul.f32 %v1503, %v1507
        %v1509 = vadd.f32 %v1508, 0.05243302
        %v1510 = vmul.f32 %v1503, %v1509
        %v1511 = vadd.f32 %v1510, 0.18741608
        %v1512 = vmul.f32 %v1503, %v1511
        %v1513 = vadd.f32 %v1512, 1.1283791
        %v1514 = vmul.f32 %v1380, %v1513
        %v1515 = vmul.f32 %v1503, 3.8918573e-05
        %v1516 = vadd.f32 %v1515, 0.001143296
        %v1517 = vmul.f32 %v1503, %v1516
        %v1518 = vadd.f32 %v1517, 0.014752088
        %v1519 = vmul.f32 %v1503, %v1518
        %v1520 = vadd.f32 %v1519, 0.112945676
        %v1521 = vmul.f32 %v1503, %v1520
        %v1522 = vadd.f32 %v1521, 0.4994258
        %v1523 = vmul.f32 %v1503, %v1522
        %v1524 = vadd.f32 %v1523, 1.0
        %v1525 = vrcp.pop %v1524
        %v1526 = vmul.f32 %v1524, %v1525
        %v1527 = vsub.f32 1.0, %v1526
        %v1528 = vmul.f32 %v1525, %v1527
        %v1529 = vadd.f32 %v1525, %v1528
        %vm1530 = vweird.f32 %v1524
        %vm1531 = vweird.f32 %v1525
        %vm1532 = vmor %vm1530, %vm1531
        %v1533 = vsel %vm1532, %v1525, %v1529
        %v1534 = vand.u32 2147483647, %v1524
        %vm1535 = vcmp.eq.f32.partialorder %v1534, 8.507059e+37
        %v1536 = vand.u32 %v1524, 2147483648
        %v1537 = vor.u32 1.1754944e-38, %v1536
        %v1538 = vsel %vm1535, %v1537, %v1533
        %v1539 = vmul.f32 %v1514, %v1538
        %v1540 = vmin.f32 %v1539, 1.0
        %v1541 = vmax.f32 %v1540, -1.0
        %v1542 = vmul.f32 %v1381, %v1381
        %v1543 = vmin.f32 16.0, %v1542
        %v1544 = vmul.f32 %v1543, 2.1237322e-06
        %v1545 = vadd.f32 %v1544, 0.00028619796
        %v1546 = vmul.f32 %v1543, %v1545
        %v1547 = vadd.f32 %v1546, 0.0036580483
        %v1548 = vmul.f32 %v1543, %v1547
        %v1549 = vadd.f32 %v1548, 0.05243302
        %v1550 = vmul.f32 %v1543, %v1549
        %v1551 = vadd.f32 %v1550, 0.18741608
        %v1552 = vmul.f32 %v1543, %v1551
        %v1553 = vadd.f32 %v1552, 1.1283791
        %v1554 = vmul.f32 %v1381, %v1553
        %v1555 = vmul.f32 %v1543, 3.8918573e-05
        %v1556 = vadd.f32 %v1555, 0.001143296
        %v1557 = vmul.f32 %v1543, %v1556
        %v1558 = vadd.f32 %v1557, 0.014752088
        %v1559 = vmul.f32 %v1543, %v1558
        %v1560 = vadd.f32 %v1559, 0.112945676
        %v1561 = vmul.f32 %v1543, %v1560
        %v1562 = vadd.f32 %v1561, 0.4994258
        %v1563 = vmul.f32 %v1543, %v1562
        %v1564 = vadd.f32 %v1563, 1.0
        %v1565 = vrcp.pop %v1564
        %v1566 = vmul.f32 %v1564, %v1565
        %v1567 = vsub.f32 1.0, %v1566
        %v1568 = vmul.f32 %v1565, %v1567
        %v1569 = vadd.f32 %v1565, %v1568
        %vm1570 = vweird.f32 %v1564
        %vm1571 = vweird.f32 %v1565
        %vm1572 = vmor %vm1570, %vm1571
        %v1573 = vsel %vm1572, %v1565, %v1569
        %v1574 = vand.u32 2147483647, %v1564
        %vm1575 = vcmp.eq.f32.partialorder %v1574, 8.507059e+37
        %v1576 = vand.u32 %v1564, 2147483648
        %v1577 = vor.u32 1.1754944e-38, %v1576
        %v1578 = vsel %vm1575, %v1577, %v1573
        %v1579 = vmul.f32 %v1554, %v1578
        %v1580 = vmin.f32 %v1579, 1.0
        %v1581 = vmax.f32 %v1580, -1.0
        %v1582 = vadd.f32 %v1421, 1.0
        %v1583 = vadd.f32 %v1461, 1.0
        %v1584 = vadd.f32 %v1501, 1.0
        %v1585 = vadd.f32 %v1541, 1.0
        %v1586 = vadd.f32 %v1581, 1.0
        %v1587 = vmul.f32 %v1372, %v1582
        %v1588 = vmul.f32 %v1373, %v1583
        %v1589 = vmul.f32 %v1374, %v1584
        %v1590 = vmul.f32 %v1375, %v1585
        %v1591 = vmul.f32 %v1376, %v1586
        %v1592 = vsel %vm1367, 1, 0
        %v1593 = vsel %vm1368, 1, 0
        %v1594 = vsel %vm1369, 1, 0
        %v1595 = vsel %vm1370, 1, 0
        %v1596 = vsel %vm1371, 1, 0
        %vm1597 = vcmp.eq.s32.totalorder %v1592, 1
        %vm1598 = vcmp.eq.s32.totalorder %v1593, 1
        %vm1599 = vcmp.eq.s32.totalorder %v1594, 1
        %vm1600 = vcmp.eq.s32.totalorder %v1595, 1
        %vm1601 = vcmp.eq.s32.totalorder %v1596, 1
        %v1602 = vsel %vm1597, %v1587, 0.0
        %v1603 = vsel %vm1598, %v1588, 0.0
        %v1604 = vsel %vm1599, %v1589, 0.0
        %v1605 = vsel %vm1600, %v1590, 0.0
        %v1606 = vsel %vm1601, %v1591, 0.0
        %v1607 = vpack.c.bf16 %v1602, %v1602
        %v1608 = vpack.c.bf16 %v1603, %v1603
        %v1609 = vpack.c.bf16 %v1604, %v1604
        %v1610 = vpack.c.bf16 %v1605, %v1605
        %v1611 = vpack.c.bf16 %v1606, %v1606
        %v1612 = vld [vmem:[%s6] sm:$0x1]
        %v1614 = vperm.slane %v1612, 0
        %v1616 = vadd.f32 %v674, %v1614
        %v1617 = vadd.f32 %v676, %v1614
        %v1618 = vadd.f32 %v679, %v1614
        %v1619 = vadd.f32 %v681, %v1614
        %v1620 = vld [vmem:[#allocation4] sm:$0xf]
        %v1621 = vld [vmem:[#allocation4 + $0x4] sm:$0xf]
        %v1622 = vld [vmem:[#allocation4 + $0x8] sm:$0xf]
        %v1623 = vld [vmem:[#allocation4 + $0xc] sm:$0xf]
        %v1624 = vld [vmem:[#allocation4 + $0x10] sm:$0xf]
        %v1625 = vld [vmem:[#allocation4 + $0x14] sm:$0xf]
        %v1626 = vld [vmem:[#allocation4 + $0x18] sm:$0xf]
        %v1627 = vld [vmem:[#allocation4 + $0x1c] sm:$0xf]
        %v1628 = vld [vmem:[#allocation4 + $0x20] sm:$0xf]
        %v1629 = vld [vmem:[#allocation4 + $0x24] sm:$0xf]
        %v1630 = vld [vmem:[#allocation4 + $0x28] sm:$0xf]
        %v1631 = vld [vmem:[#allocation4 + $0x2c] sm:$0xf]
        %v1632 = vld [vmem:[#allocation4 + $0x30] sm:$0xf]
        %v1633 = vld [vmem:[#allocation4 + $0x34] sm:$0xf]
        %v1634 = vld [vmem:[#allocation4 + $0x38] sm:$0xf]
        %v1635 = vld [vmem:[#allocation4 + $0x3c] sm:$0xf]
        %v1640 = vunpack.c.l.b16 %v1607
        %v1641 = vunpack.c.l.b16 %v1608
        %v1642 = vunpack.c.l.b16 %v1609
        %v1643 = vunpack.c.l.b16 %v1610
        %v1644 = vpack.c.b16 %v1641, %v1640
        %v1645 = vpack.c.b16 %v1643, %v1642
        %v1664 = vunpack.c.l.b16 %v1620
        %v1665 = vunpack.c.l.b16 %v1621
        %v1666 = vunpack.c.l.b16 %v1622
        %v1667 = vunpack.c.l.b16 %v1623
        %v1668 = vunpack.c.l.b16 %v1624
        %v1669 = vunpack.c.l.b16 %v1625
        %v1670 = vunpack.c.l.b16 %v1626
        %v1671 = vunpack.c.l.b16 %v1627
        %v1672 = vunpack.c.l.b16 %v1628
        %v1673 = vunpack.c.l.b16 %v1629
        %v1674 = vunpack.c.l.b16 %v1630
        %v1675 = vunpack.c.l.b16 %v1631
        %v1676 = vunpack.c.l.b16 %v1632
        %v1677 = vunpack.c.l.b16 %v1633
        %v1678 = vunpack.c.l.b16 %v1634
        %v1679 = vunpack.c.l.b16 %v1635
        %v1680 = vpack.c.b16 %v1665, %v1664
        %v1681 = vpack.c.b16 %v1667, %v1666
        %v1682 = vpack.c.b16 %v1669, %v1668
        %v1683 = vpack.c.b16 %v1671, %v1670
        %v1684 = vpack.c.b16 %v1673, %v1672
        %v1685 = vpack.c.b16 %v1675, %v1674
        %v1686 = vpack.c.b16 %v1677, %v1676
        %v1687 = vpack.c.b16 %v1679, %v1678
        %1696 = vmatpush.bf16.msra.mxu0 %v1687
        %1697 = vmatpush.bf16.msra.mxu0 %v1686
        %1698 = vmatpush.bf16.msra.mxu0 %v1685
        %1699 = vmatpush.bf16.msra.mxu0 %v1684
        %1700 = vmatpush.bf16.msra.mxu0 %v1683
        %1701 = vmatpush.bf16.msra.mxu0 %v1682
        %1702 = vmatpush.bf16.msra.mxu0 %v1681
        %1703 = vmatpush.bf16.msra.mxu0 %v1680
        %1704 = vmatmul.bf16.gmra.mxu0 %v1644
        %v1705 = vpop.f32.mrf.mxu0
        %v1706 = vadd.f32 0.0, %v1705
        %v1707 = vpop.f32.mrf.mxu0
        %v1708 = vadd.f32 0.0, %v1707
        %1709 = vmatmul.bf16.gmra.mxu0 %v1645
        %v1710 = vpop.f32.mrf.mxu0
        %v1711 = vadd.f32 0.0, %v1710
        %v1712 = vpop.f32.mrf.mxu0
        %v1713 = vadd.f32 0.0, %v1712
        %1714 = vdwg.mxu0
        %v1715 = vadd.f32 %v1616, %v1706
        %v1716 = vadd.f32 %v1617, %v1708
        %v1717 = vadd.f32 %v1618, %v1711
        %v1718 = vadd.f32 %v1619, %v1713
        %s1719 = scalar_lea.vmem [#allocation4], 64
        %v1720 = vld [vmem:[%s1719] sm:$0xf]
        %v1721 = vld [vmem:[%s1719 + $0x4] sm:$0xf]
        %v1722 = vld [vmem:[%s1719 + $0x8] sm:$0xf]
        %v1723 = vld [vmem:[%s1719 + $0xc] sm:$0xf]
        %v1724 = vld [vmem:[%s1719 + $0x10] sm:$0xf]
        %v1725 = vld [vmem:[%s1719 + $0x14] sm:$0xf]
        %v1726 = vld [vmem:[%s1719 + $0x18] sm:$0xf]
        %v1727 = vld [vmem:[%s1719 + $0x1c] sm:$0xf]
        %v1728 = vld [vmem:[%s1719 + $0x20] sm:$0xf]
        %v1729 = vld [vmem:[%s1719 + $0x24] sm:$0xf]
        %v1730 = vld [vmem:[%s1719 + $0x28] sm:$0xf]
        %v1731 = vld [vmem:[%s1719 + $0x2c] sm:$0xf]
        %v1732 = vld [vmem:[%s1719 + $0x30] sm:$0xf]
        %v1733 = vld [vmem:[%s1719 + $0x34] sm:$0xf]
        %v1734 = vld [vmem:[%s1719 + $0x38] sm:$0xf]
        %v1735 = vld [vmem:[%s1719 + $0x3c] sm:$0xf]
        %v1737 = vunpack.c.l.b16 %v1611
        %v1738 = vpack.c.b16 %v1737, %v1737
        %vm1739 = vsmask.f32 7424
        %v1741 = vshrl.u32 %v1644, 16
        %v1743 = vshll.u32 %v1644, 16
        %v1745 = vrot.slane %v1743, 1
        %v1746 = vor.u32 %v1741, %v1745
        %v1748 = vshll.u32 %v1645, 16
        %v1750 = vrot.slane %v1748, 1
        %v1751 = vsel %vm1739, %v1746, %v1750
        %v1752 = vshrl.u32 %v1645, 16
        %v1754 = vor.u32 %v1752, %v1750
        %v1756 = vshll.u32 %v1738, 16
        %v1758 = vrot.slane %v1756, 1
        %v1759 = vsel %vm1739, %v1754, %v1758
        %v1778 = vunpack.c.l.b16 %v1720
        %v1779 = vunpack.c.l.b16 %v1721
        %v1780 = vunpack.c.l.b16 %v1722
        %v1781 = vunpack.c.l.b16 %v1723
        %v1782 = vunpack.c.l.b16 %v1724
        %v1783 = vunpack.c.l.b16 %v1725
        %v1784 = vunpack.c.l.b16 %v1726
        %v1785 = vunpack.c.l.b16 %v1727
        %v1786 = vunpack.c.l.b16 %v1728
        %v1787 = vunpack.c.l.b16 %v1729
        %v1788 = vunpack.c.l.b16 %v1730
        %v1789 = vunpack.c.l.b16 %v1731
        %v1790 = vunpack.c.l.b16 %v1732
        %v1791 = vunpack.c.l.b16 %v1733
        %v1792 = vunpack.c.l.b16 %v1734
        %v1793 = vunpack.c.l.b16 %v1735
        %v1794 = vpack.c.b16 %v1779, %v1778
        %v1795 = vpack.c.b16 %v1781, %v1780
        %v1796 = vpack.c.b16 %v1783, %v1782
        %v1797 = vpack.c.b16 %v1785, %v1784
        %v1798 = vpack.c.b16 %v1787, %v1786
        %v1799 = vpack.c.b16 %v1789, %v1788
        %v1800 = vpack.c.b16 %v1791, %v1790
        %v1801 = vpack.c.b16 %v1793, %v1792
        %1810 = vmatpush.bf16.msra.mxu0 %v1801
        %1811 = vmatpush.bf16.msra.mxu0 %v1800
        %1812 = vmatpush.bf16.msra.mxu0 %v1799
        %1813 = vmatpush.bf16.msra.mxu0 %v1798
        %1814 = vmatpush.bf16.msra.mxu0 %v1797
        %1815 = vmatpush.bf16.msra.mxu0 %v1796
        %1816 = vmatpush.bf16.msra.mxu0 %v1795
        %1817 = vmatpush.bf16.msra.mxu0 %v1794
        %1818 = vmatmul.bf16.gmra.mxu0 %v1751
        %v1819 = vpop.f32.mrf.mxu0
        %v1820 = vadd.f32 0.0, %v1819
        %v1821 = vpop.f32.mrf.mxu0
        %v1822 = vadd.f32 0.0, %v1821
        %1823 = vmatmul.bf16.gmra.mxu0 %v1759
        %v1824 = vpop.f32.mrf.mxu0
        %v1825 = vadd.f32 0.0, %v1824
        %v1826 = vpop.f32.mrf.mxu0
        %v1827 = vadd.f32 0.0, %v1826
        %1828 = vdwg.mxu0
        %v1829 = vadd.f32 %v1715, %v1820
        %v1830 = vadd.f32 %v1716, %v1822
        %v1831 = vadd.f32 %v1717, %v1825
        %v1832 = vadd.f32 %v1718, %v1827
        %s1833 = scalar_lea.vmem [#allocation4], 128
        %v1834 = vld [vmem:[%s1833] sm:$0xf]
        %v1835 = vld [vmem:[%s1833 + $0x4] sm:$0xf]
        %v1836 = vld [vmem:[%s1833 + $0x8] sm:$0xf]
        %v1837 = vld [vmem:[%s1833 + $0xc] sm:$0xf]
        %v1838 = vld [vmem:[%s1833 + $0x10] sm:$0xf]
        %v1839 = vld [vmem:[%s1833 + $0x14] sm:$0xf]
        %v1840 = vld [vmem:[%s1833 + $0x18] sm:$0xf]
        %v1841 = vld [vmem:[%s1833 + $0x1c] sm:$0xf]
        %v1842 = vld [vmem:[%s1833 + $0x20] sm:$0xf]
        %v1843 = vld [vmem:[%s1833 + $0x24] sm:$0xf]
        %v1844 = vld [vmem:[%s1833 + $0x28] sm:$0xf]
        %v1845 = vld [vmem:[%s1833 + $0x2c] sm:$0xf]
        %v1846 = vld [vmem:[%s1833 + $0x30] sm:$0xf]
        %v1847 = vld [vmem:[%s1833 + $0x34] sm:$0xf]
        %v1848 = vld [vmem:[%s1833 + $0x38] sm:$0xf]
        %v1849 = vld [vmem:[%s1833 + $0x3c] sm:$0xf]
        %vm1850 = vcmask 1046528
        %v1851 = vrot.slane %v1644, 1
        %v1852 = vrot.slane %v1645, 1
        %v1853 = vsel %vm1850, %v1851, %v1852
        %v1854 = vrot.slane %v1738, 1
        %v1855 = vsel %vm1850, %v1852, %v1854
        %v1874 = vunpack.c.l.b16 %v1834
        %v1875 = vunpack.c.l.b16 %v1835
        %v1876 = vunpack.c.l.b16 %v1836
        %v1877 = vunpack.c.l.b16 %v1837
        %v1878 = vunpack.c.l.b16 %v1838
        %v1879 = vunpack.c.l.b16 %v1839
        %v1880 = vunpack.c.l.b16 %v1840
        %v1881 = vunpack.c.l.b16 %v1841
        %v1882 = vunpack.c.l.b16 %v1842
        %v1883 = vunpack.c.l.b16 %v1843
        %v1884 = vunpack.c.l.b16 %v1844
        %v1885 = vunpack.c.l.b16 %v1845
        %v1886 = vunpack.c.l.b16 %v1846
        %v1887 = vunpack.c.l.b16 %v1847
        %v1888 = vunpack.c.l.b16 %v1848
        %v1889 = vunpack.c.l.b16 %v1849
        %v1890 = vpack.c.b16 %v1875, %v1874
        %v1891 = vpack.c.b16 %v1877, %v1876
        %v1892 = vpack.c.b16 %v1879, %v1878
        %v1893 = vpack.c.b16 %v1881, %v1880
        %v1894 = vpack.c.b16 %v1883, %v1882
        %v1895 = vpack.c.b16 %v1885, %v1884
        %v1896 = vpack.c.b16 %v1887, %v1886
        %v1897 = vpack.c.b16 %v1889, %v1888
        %1906 = vmatpush.bf16.msra.mxu0 %v1897
        %1907 = vmatpush.bf16.msra.mxu0 %v1896
        %1908 = vmatpush.bf16.msra.mxu0 %v1895
        %1909 = vmatpush.bf16.msra.mxu0 %v1894
        %1910 = vmatpush.bf16.msra.mxu0 %v1893
        %1911 = vmatpush.bf16.msra.mxu0 %v1892
        %1912 = vmatpush.bf16.msra.mxu0 %v1891
        %1913 = vmatpush.bf16.msra.mxu0 %v1890
        %1914 = vmatmul.bf16.gmra.mxu0 %v1853
        %v1915 = vpop.f32.mrf.mxu0
        %v1916 = vadd.f32 0.0, %v1915
        %v1917 = vpop.f32.mrf.mxu0
        %v1918 = vadd.f32 0.0, %v1917
        %1919 = vmatmul.bf16.gmra.mxu0 %v1855
        %v1920 = vpop.f32.mrf.mxu0
        %v1921 = vadd.f32 0.0, %v1920
        %v1922 = vpop.f32.mrf.mxu0
        %v1923 = vadd.f32 0.0, %v1922
        %1924 = vdwg.mxu0
        %v1925 = vadd.f32 %v1829, %v1916
        %v1926 = vadd.f32 %v1830, %v1918
        %v1927 = vadd.f32 %v1831, %v1921
        %v1928 = vadd.f32 %v1832, %v1923
        %v1929 = vpack.c.bf16 %v1925, %v1925
        %v1930 = vpack.c.bf16 %v1926, %v1926
        %v1931 = vpack.c.bf16 %v1927, %v1927
        %v1932 = vpack.c.bf16 %v1928, %v1928
        %1933 = vst [vmem:[%s562] sm:$0xf] %v1929
        %1934 = vst [vmem:[%s562 + $0x4] sm:$0xf] %v1930
        %1935 = vst [vmem:[%s562 + $0x8] sm:$0xf] %v1931
        %1936 = vst [vmem:[%s562 + $0xc] sm:$0xf] %v1932
        %s1937 = smul.u32 4, %s27
        %p1938 = scmp.lt.s32.totalorder %s26, 1
        %s1939 = scalar_select %p1938, %s26, 1
        %p1940 = scmp.lt.s32.totalorder %s1937, 7
        %s1941 = scalar_select %p1940, %s1937, 7
        %s1942 = smul.addr %s1939, 8
        %s1943 = sadd.s32 %s1941, %s1942
        %s1944 = smul.addr %s1943, 4
        %s1945 = scalar_lea.vmem %s9, %s1944
        // Predicated region
        $region69: #{_lambda_.3} parent=55 // pred_check
          %p1946 = pneg %p284
        $region70: #{_lambda_.3} parent=55 // pred_check_branch
          %1948 = sbr.rel (%p1946) target = $region72
        $region71: #{_lambda_.3} parent=55 // pred_region
          %s1949 = smul.u32 4, %s27
        $region72: #{_lambda_.3} parent=55 // pred_fallthru
          _
      $region56: #{_lambda_.3} parent=5 // pred_fallthru
        _
      %p1950 = scmp.le.s32.totalorder 2, %s17
      // Predicated region
      $region73: #{_lambda_.3} parent=5 // pred_check
        %p1951 = pneg %p1950
      $region74: #{_lambda_.3} parent=5 // pred_check_branch
        %1953 = sbr.rel (%p1951) target = $region76
      $region75: #{_lambda_.3} parent=5 // pred_region
        %s1954 = ssub.s32 %s17, 2
        // Predicated region
        $region77: #{_lambda_.3} parent=75 // pred_check
          %p1955 = pneg %p290
        $region78: #{_lambda_.3} parent=75 // pred_check_branch
          %1957 = sbr.rel (%p1955) target = $region80
        $region79: #{_lambda_.3} parent=75 // pred_region
          %s1958 = smul.u32 4, %s29
          %p1959 = scmp.lt.s32.totalorder %s28, 1
          %s1960 = scalar_select %p1959, %s28, 1
          %p1961 = scmp.lt.s32.totalorder %s1958, 7
          %s1962 = scalar_select %p1961, %s1958, 7
          %s1963 = smul.addr %s1960, 8
          %s1964 = sadd.s32 %s1962, %s1963
          %s1965 = smul.addr %s1964, 4
          %s1966 = scalar_lea.vmem %s9, %s1965
        $region80: #{_lambda_.3} parent=75 // pred_fallthru
          _
      $region76: #{_lambda_.3} parent=5 // pred_fallthru
        _
    $region6: #{_lambda_.3} parent=1 // loop_footer
      %s21 = sadd.s32 1, %s17
    $region7: #{_lambda_.3} parent=1 // loop_footer_branch
      %16 = sbr.rel target = $region3
    $region8: #{_lambda_.3} parent=1 // loop_exit
      _
    %1967 = vsyncpa [#allocation3], 1
    %s1968 = scalar_lea.sflag [#allocation3], 1
    %1969 = vsyncpa %s1968, 1
    %1970 = vsyncpa [#allocation5], 1

// kernel: _lambda_.5
$region0: #{_lambda_.5}
  #allocation0 [shape = 'u32[]', space=smem, size = 0x4, offset = 0x4, fixed_abs, tag = 'smem constant byte address 0x4 - core index']
  #allocation1 [shape = 'u32[72,128]{1,0:T(1,128)}', space=vmem, size = 0x9000, scoped, tag = 'internal scratch']
  %s0 = inlined_call_operand.vmem [shape: bf16[2,64,128], index: 0, kind: input, shape index: {}, may-alias: {0,1,2}]
  %s1 = inlined_call_operand.vmem [shape: bf16[2,64,128], index: 1, kind: input, shape index: {}, may-alias: {0,1,2}]
  %s2 = inlined_call_operand.vmem [shape: bf16[2,64,128], index: 2, kind: input, shape index: {}, may-alias: {0,1,2}]
  %s3 = inlined_call_operand.hbm [shape: bf16[3,128,128], index: 3, kind: input, shape index: {}]
  %s4 = inlined_call_operand.vmem [shape: f32[1,128], index: 4, kind: input, shape index: {}]
  %s5 = inlined_call_operand.vmem [shape: bf16[3,128,128], index: 5, kind: input, shape index: {}]
  %s6 = inlined_call_operand.vmem [shape: f32[1,128], index: 6, kind: input, shape index: {}]
  %s7 = inlined_call_operand.hbm [shape: bf16[128,128], index: 7, kind: input, shape index: {}]
  %s8 = inlined_call_operand.vmem [shape: f32[1,128], index: 8, kind: input, shape index: {}]
  %s9 = inlined_call_operand.vmem [shape: bf16[2,64,128], index: 9, kind: output, shape index: {}]
  %s10 = sld [smem:[#allocation0]]
  $region77: #{_lambda_.5} parent=0
    _
  %s12 = ssub.s32 1, %s10
  %s13 = scalar_select 0, %s12, %s10
  $region1: #{_lambda_.5} parent=0
    #allocation2 [shape = 'u8[98304]{0}', space=vmem, size = 0x18000, scoped, tag = 'input window, operand 3, single buffered']
    #allocation3 [shape = 's32[2]{0}', space=sflag, size = 0x8, scoped, tag = 'scoped memory for _lambda_.5']
    #allocation4 [shape = 'u8[32768]{0}', space=vmem, size = 0x8000, scoped, tag = 'input window, operand 7, single buffered']
    #allocation5 [shape = 's32[1]{0}', space=sflag, size = 0x4, scoped, tag = 'scoped memory for _lambda_.5']
    %14 = vsyncpa [#allocation3], 0
    %15 = vsyncpa [#allocation5], 0
    loop: start=0, step=1, limit=6
    $region2: #{_lambda_.5} parent=1 // loop_pre_header
      _
    $region3: #{_lambda_.5} parent=1 // loop_header
      %s17 = sphi 0, %s21
      %p18 = scmp.ge.s32.totalorder %s17, 6
      %s24 = sphi 0, %s36
      %s25 = sphi 0, %s32
      %s26 = sphi 0, %s24
      %s27 = sphi 0, %s25
      %s28 = sphi 0, %s26
      %s29 = sphi 0, %s27
      %s53 = sphi 0, %s55
      %s56 = sphi 0, %s53
      %s57 = sphi 0, %s56
      %s73 = sphi 0, %s57
      %s81 = sphi 0, %s83
      %s84 = sphi 0, %s81
      %s85 = sphi 0, %s84
      %s101 = sphi 0, %s85
      %s117 = sphi 0, %s119
      %s120 = sphi 0, %s117
      %s121 = sphi 0, %s120
      %s137 = sphi 0, %s121
      %s141 = sphi 0, %s141
      %s143 = sphi 0, %s141
      %s144 = sphi 0, %s143
      %s158 = sphi 0, %s144
      %s162 = sphi 0, %s162
      %s164 = sphi 0, %s162
      %s165 = sphi 0, %s164
      %s179 = sphi 0, %s165
      %s183 = sphi 0, %s183
      %s185 = sphi 0, %s183
      %s186 = sphi 0, %s185
      %s200 = sphi 0, %s186
      %s204 = sphi 0, %s204
      %s206 = sphi 0, %s204
      %s207 = sphi 0, %s206
      %s221 = sphi 0, %s207
      %s225 = sphi 0, %s225
      %s227 = sphi 0, %s225
      %s228 = sphi 0, %s227
      %s242 = sphi 0, %s228
      %s246 = sphi 0, %s246
      %s248 = sphi 0, %s246
      %s249 = sphi 0, %s248
      %s263 = sphi 0, %s249
      %s271 = sphi 0, %s273
      %s274 = sphi 0, %s271
      %s275 = sphi 0, %s274
      %s291 = sphi 0, %s275
    $region4: #{_lambda_.5} parent=1 // loop_header_branch
      %20 = sbr.rel (%p18) target = $region8
    $region5: #{_lambda_.5} parent=1 // loop_body
      %s22 = ssub.s32 %s17, 1
      %s23 = ssub.s32 %s17, 2
      %s30 = sadd.s32 1, %s25
      %p31 = scmp.ge.s32.totalorder %s30, 2
      %s32 = scalar_select %p31, 0, %s30
      %s33 = sadd.s32 1, %s24
      %s34 = scalar_select %p31, %s33, %s24
      %p35 = scmp.ge.s32.totalorder %s34, 2
      %s36 = scalar_select %p35, 0, %s34
      %s37 = smul.u32 %s25, 2
      %s38 = ssub.s32 %s37, 1
      %p39 = scmp.gt.s32.totalorder %s38, 0
      %s40 = scalar_select %p39, %s38, 0
      %p41 = scmp.lt.s32.totalorder %s40, 3
      %s42 = scalar_select %p41, %s40, 3
      %s43 = smul.u32 %s32, 2
      %s44 = ssub.s32 %s43, 1
      %p45 = scmp.gt.s32.totalorder %s44, 0
      %s46 = scalar_select %p45, %s44, 0
      %p47 = scmp.lt.s32.totalorder %s46, 3
      %s48 = scalar_select %p47, %s46, 3
      %s49 = ssub.s32 %s24, %s36
      %s50 = ssub.s32 %s42, %s48
      %s51 = sor.u32 %s49, %s50
      %p52 = scmp.eq.s32.totalorder %s51, 0
      %s54 = sadd.s32 %s53, 1
      %s55 = scalar_select %p52, %s53, %s54
      %p58 = pneg %p52
      %p59 = scmp.eq.s32.totalorder %s17, 3
      %p60 = por %p58, %p59
      %p61 = scmp.ne.s32.totalorder %s53, %s56
      %p62 = scmp.eq.s32.totalorder %s17, 0
      %p63 = por %p61, %p62
      %p64 = scmp.ne.s32.totalorder %s53, %s56
      %p65 = scmp.eq.s32.totalorder %s22, 3
      %p66 = por %p64, %p65
      %p67 = scmp.ne.s32.totalorder %s56, %s57
      %p68 = scmp.eq.s32.totalorder %s22, 0
      %p69 = por %p67, %p68
      %p70 = scmp.ne.s32.totalorder %s56, %s57
      %p71 = scmp.eq.s32.totalorder %s23, 3
      %p72 = por %p70, %p71
      %p74 = scmp.ne.s32.totalorder %s57, %s73
      %p75 = scmp.eq.s32.totalorder %s23, 0
      %p76 = por %p74, %p75
      %s77 = ssub.s32 %s24, %s36
      %s78 = ssub.s32 %s25, %s32
      %s79 = sor.u32 %s77, %s78
      %p80 = scmp.eq.s32.totalorder %s79, 0
      %s82 = sadd.s32 %s81, 1
      %s83 = scalar_select %p80, %s81, %s82
      %p86 = pneg %p80
      %p87 = scmp.eq.s32.totalorder %s17, 3
      %p88 = por %p86, %p87
      %p89 = scmp.ne.s32.totalorder %s81, %s84
      %p90 = scmp.eq.s32.totalorder %s17, 0
      %p91 = por %p89, %p90
      %p92 = scmp.ne.s32.totalorder %s81, %s84
      %p93 = scmp.eq.s32.totalorder %s22, 3
      %p94 = por %p92, %p93
      %p95 = scmp.ne.s32.totalorder %s84, %s85
      %p96 = scmp.eq.s32.totalorder %s22, 0
      %p97 = por %p95, %p96
      %p98 = scmp.ne.s32.totalorder %s84, %s85
      %p99 = scmp.eq.s32.totalorder %s23, 3
      %p100 = por %p98, %p99
      %p102 = scmp.ne.s32.totalorder %s85, %s101
      %p103 = scmp.eq.s32.totalorder %s23, 0
      %p104 = por %p102, %p103
      %s105 = sadd.s32 %s25, 1
      %s106 = smul.u32 %s105, 2
      %p107 = scmp.lt.s32.totalorder %s106, 3
      %s108 = scalar_select %p107, %s106, 3
      %s109 = sadd.s32 %s32, 1
      %s110 = smul.u32 %s109, 2
      %p111 = scmp.lt.s32.totalorder %s110, 3
      %s112 = scalar_select %p111, %s110, 3
      %s113 = ssub.s32 %s24, %s36
      %s114 = ssub.s32 %s108, %s112
      %s115 = sor.u32 %s113, %s114
      %p116 = scmp.eq.s32.totalorder %s115, 0
      %s118 = sadd.s32 %s117, 1
      %s119 = scalar_select %p116, %s117, %s118
      %p122 = pneg %p116
      %p123 = scmp.eq.s32.totalorder %s17, 3
      %p124 = por %p122, %p123
      %p125 = scmp.ne.s32.totalorder %s117, %s120
      %p126 = scmp.eq.s32.totalorder %s17, 0
      %p127 = por %p125, %p126
      %p128 = scmp.ne.s32.totalorder %s117, %s120
      %p129 = scmp.eq.s32.totalorder %s22, 3
      %p130 = por %p128, %p129
      %p131 = scmp.ne.s32.totalorder %s120, %s121
      %p132 = scmp.eq.s32.totalorder %s22, 0
      %p133 = por %p131, %p132
      %p134 = scmp.ne.s32.totalorder %s120, %s121
      %p135 = scmp.eq.s32.totalorder %s23, 3
      %p136 = por %p134, %p135
      %p138 = scmp.ne.s32.totalorder %s121, %s137
      %p139 = scmp.eq.s32.totalorder %s23, 0
      %p140 = por %p138, %p139
      %s142 = sadd.s32 %s141, 1
      %p145 = scmp.eq.s32.totalorder %s17, 3
      %p146 = scmp.ne.s32.totalorder %s141, %s143
      %p147 = scmp.eq.s32.totalorder %s17, 0
      %p148 = por %p146, %p147
      %p149 = scmp.ne.s32.totalorder %s141, %s143
      %p150 = scmp.eq.s32.totalorder %s22, 3
      %p151 = por %p149, %p150
      %p152 = scmp.ne.s32.totalorder %s143, %s144
      %p153 = scmp.eq.s32.totalorder %s22, 0
      %p154 = por %p152, %p153
      %p155 = scmp.ne.s32.totalorder %s143, %s144
      %p156 = scmp.eq.s32.totalorder %s23, 3
      %p157 = por %p155, %p156
      %p159 = scmp.ne.s32.totalorder %s144, %s158
      %p160 = scmp.eq.s32.totalorder %s23, 0
      %p161 = por %p159, %p160
      %s163 = sadd.s32 %s162, 1
      %p166 = scmp.eq.s32.totalorder %s17, 3
      %p167 = scmp.ne.s32.totalorder %s162, %s164
      %p168 = scmp.eq.s32.totalorder %s17, 0
      %p169 = por %p167, %p168
      %p170 = scmp.ne.s32.totalorder %s162, %s164
      %p171 = scmp.eq.s32.totalorder %s22, 3
      %p172 = por %p170, %p171
      %p173 = scmp.ne.s32.totalorder %s164, %s165
      %p174 = scmp.eq.s32.totalorder %s22, 0
      %p175 = por %p173, %p174
      %p176 = scmp.ne.s32.totalorder %s164, %s165
      %p177 = scmp.eq.s32.totalorder %s23, 3
      %p178 = por %p176, %p177
      %p180 = scmp.ne.s32.totalorder %s165, %s179
      %p181 = scmp.eq.s32.totalorder %s23, 0
      %p182 = por %p180, %p181
      %s184 = sadd.s32 %s183, 1
      %p187 = scmp.eq.s32.totalorder %s17, 3
      %p188 = scmp.ne.s32.totalorder %s183, %s185
      %p189 = scmp.eq.s32.totalorder %s17, 0
      %p190 = por %p188, %p189
      %p191 = scmp.ne.s32.totalorder %s183, %s185
      %p192 = scmp.eq.s32.totalorder %s22, 3
      %p193 = por %p191, %p192
      %p194 = scmp.ne.s32.totalorder %s185, %s186
      %p195 = scmp.eq.s32.totalorder %s22, 0
      %p196 = por %p194, %p195
      %p197 = scmp.ne.s32.totalorder %s185, %s186
      %p198 = scmp.eq.s32.totalorder %s23, 3
      %p199 = por %p197, %p198
      %p201 = scmp.ne.s32.totalorder %s186, %s200
      %p202 = scmp.eq.s32.totalorder %s23, 0
      %p203 = por %p201, %p202
      %s205 = sadd.s32 %s204, 1
      %p208 = scmp.eq.s32.totalorder %s17, 3
      %p209 = scmp.ne.s32.totalorder %s204, %s206
      %p210 = scmp.eq.s32.totalorder %s17, 0
      %p211 = por %p209, %p210
      %p212 = scmp.ne.s32.totalorder %s204, %s206
      %p213 = scmp.eq.s32.totalorder %s22, 3
      %p214 = por %p212, %p213
      %p215 = scmp.ne.s32.totalorder %s206, %s207
      %p216 = scmp.eq.s32.totalorder %s22, 0
      %p217 = por %p215, %p216
      %p218 = scmp.ne.s32.totalorder %s206, %s207
      %p219 = scmp.eq.s32.totalorder %s23, 3
      %p220 = por %p218, %p219
      %p222 = scmp.ne.s32.totalorder %s207, %s221
      %p223 = scmp.eq.s32.totalorder %s23, 0
      %p224 = por %p222, %p223
      %s226 = sadd.s32 %s225, 1
      %p229 = scmp.eq.s32.totalorder %s17, 3
      %p230 = scmp.ne.s32.totalorder %s225, %s227
      %p231 = scmp.eq.s32.totalorder %s17, 0
      %p232 = por %p230, %p231
      %p233 = scmp.ne.s32.totalorder %s225, %s227
      %p234 = scmp.eq.s32.totalorder %s22, 3
      %p235 = por %p233, %p234
      %p236 = scmp.ne.s32.totalorder %s227, %s228
      %p237 = scmp.eq.s32.totalorder %s22, 0
      %p238 = por %p236, %p237
      %p239 = scmp.ne.s32.totalorder %s227, %s228
      %p240 = scmp.eq.s32.totalorder %s23, 3
      %p241 = por %p239, %p240
      %p243 = scmp.ne.s32.totalorder %s228, %s242
      %p244 = scmp.eq.s32.totalorder %s23, 0
      %p245 = por %p243, %p244
      %s247 = sadd.s32 %s246, 1
      %p250 = scmp.eq.s32.totalorder %s17, 3
      %p251 = scmp.ne.s32.totalorder %s246, %s248
      %p252 = scmp.eq.s32.totalorder %s17, 0
      %p253 = por %p251, %p252
      %p254 = scmp.ne.s32.totalorder %s246, %s248
      %p255 = scmp.eq.s32.totalorder %s22, 3
      %p256 = por %p254, %p255
      %p257 = scmp.ne.s32.totalorder %s248, %s249
      %p258 = scmp.eq.s32.totalorder %s22, 0
      %p259 = por %p257, %p258
      %p260 = scmp.ne.s32.totalorder %s248, %s249
      %p261 = scmp.eq.s32.totalorder %s23, 3
      %p262 = por %p260, %p261
      %p264 = scmp.ne.s32.totalorder %s249, %s263
      %p265 = scmp.eq.s32.totalorder %s23, 0
      %p266 = por %p264, %p265
      %s267 = ssub.s32 %s24, %s36
      %s268 = ssub.s32 %s25, %s32
      %s269 = sor.u32 %s267, %s268
      %p270 = scmp.eq.s32.totalorder %s269, 0
      %s272 = sadd.s32 %s271, 1
      %s273 = scalar_select %p270, %s271, %s272
      %p276 = pneg %p270
      %p277 = scmp.eq.s32.totalorder %s17, 3
      %p278 = por %p276, %p277
      %p279 = scmp.ne.s32.totalorder %s271, %s274
      %p280 = scmp.eq.s32.totalorder %s17, 0
      %p281 = por %p279, %p280
      %p282 = scmp.ne.s32.totalorder %s271, %s274
      %p283 = scmp.eq.s32.totalorder %s22, 3
      %p284 = por %p282, %p283
      %p285 = scmp.ne.s32.totalorder %s274, %s275
      %p286 = scmp.eq.s32.totalorder %s22, 0
      %p287 = por %p285, %p286
      %p288 = scmp.ne.s32.totalorder %s274, %s275
      %p289 = scmp.eq.s32.totalorder %s23, 3
      %p290 = por %p288, %p289
      %p292 = scmp.ne.s32.totalorder %s275, %s291
      %p293 = scmp.eq.s32.totalorder %s23, 0
      %p294 = por %p292, %p293
      %p295 = scmp.le.s32.totalorder 1, %s17
      %p296 = scmp.lt.s32.totalorder %s17, 5
      %p297 = pnand %p295, %p296
      %p298 = pneg %p297
      // Predicated region
      $region9: #{_lambda_.5} parent=5 // pred_check
        _
      $region10: #{_lambda_.5} parent=5 // pred_check_branch
        %300 = sbr.rel (%p297) target = $region12
      $region11: #{_lambda_.5} parent=5 // pred_region
        %s301 = ssub.s32 %s17, 1
        // Predicated region
        $region13: #{_lambda_.5} parent=11 // pred_check
          %p302 = pneg %p154
        $region14: #{_lambda_.5} parent=11 // pred_check_branch
          %304 = sbr.rel (%p302) target = $region16
        $region15: #{_lambda_.5} parent=11 // pred_region
          %306 = vsyncadd [#allocation3], 0
          %s307 = sshll.u32 %s3, 4
          %s308 = int_to_ptr.hbm [resolvable:$true] %s307
          %s309 = sshll.u32 [#allocation2], 4
          %s310 = int_to_ptr.vmem [resolvable:$true] %s309
          %315 = dma.hbm_to_vmem [thread:$0]  %s308, 3072, %s310, [#allocation3], 64, 64, 4
        $region16: #{_lambda_.5} parent=11 // pred_fallthru
          _
        // Predicated region
        $region17: #{_lambda_.5} parent=11 // pred_check
          %p316 = pneg %p175
        $region18: #{_lambda_.5} parent=11 // pred_check_branch
          %318 = sbr.rel (%p316) target = $region20
        $region19: #{_lambda_.5} parent=11 // pred_region
          _
        $region20: #{_lambda_.5} parent=11 // pred_fallthru
          _
        // Predicated region
        $region21: #{_lambda_.5} parent=11 // pred_check
          %p319 = pneg %p196
        $region22: #{_lambda_.5} parent=11 // pred_check_branch
          %321 = sbr.rel (%p319) target = $region24
        $region23: #{_lambda_.5} parent=11 // pred_region
          _
        $region24: #{_lambda_.5} parent=11 // pred_fallthru
          _
        // Predicated region
        $region25: #{_lambda_.5} parent=11 // pred_check
          %p322 = pneg %p217
        $region26: #{_lambda_.5} parent=11 // pred_check_branch
          %324 = sbr.rel (%p322) target = $region28
        $region27: #{_lambda_.5} parent=11 // pred_region
          _
        $region28: #{_lambda_.5} parent=11 // pred_fallthru
          _
        // Predicated region
        $region29: #{_lambda_.5} parent=11 // pred_check
          %p325 = pneg %p238
        $region30: #{_lambda_.5} parent=11 // pred_check_branch
          %327 = sbr.rel (%p325) target = $region32
        $region31: #{_lambda_.5} parent=11 // pred_region
          %329 = vsyncadd [#allocation5], 0
          %s330 = sshll.u32 %s7, 4
          %s331 = int_to_ptr.hbm [resolvable:$true] %s330
          %s332 = sshll.u32 [#allocation4], 4
          %s333 = int_to_ptr.vmem [resolvable:$true] %s332
          %338 = dma.hbm_to_vmem [thread:$0]  %s331, 1024, %s333, [#allocation5], 64, 64, 4
        $region32: #{_lambda_.5} parent=11 // pred_fallthru
          _
        // Predicated region
        $region33: #{_lambda_.5} parent=11 // pred_check
          %p339 = pneg %p259
        $region34: #{_lambda_.5} parent=11 // pred_check_branch
          %341 = sbr.rel (%p339) target = $region36
        $region35: #{_lambda_.5} parent=11 // pred_region
          _
        $region36: #{_lambda_.5} parent=11 // pred_fallthru
          _
      $region12: #{_lambda_.5} parent=5 // pred_fallthru
        _
      %p342 = scmp.lt.s32.totalorder %s17, 4
      // Predicated region
      $region37: #{_lambda_.5} parent=5 // pred_check
        %p343 = pneg %p342
      $region38: #{_lambda_.5} parent=5 // pred_check_branch
        %345 = sbr.rel (%p343) target = $region40
      $region39: #{_lambda_.5} parent=5 // pred_region
        // Predicated region
        $region41: #{_lambda_.5} parent=39 // pred_check
          %p346 = pneg %p63
        $region42: #{_lambda_.5} parent=39 // pred_check_branch
          %348 = sbr.rel (%p346) target = $region44
        $region43: #{_lambda_.5} parent=39 // pred_region
          %s349 = smul.u32 %s25, 2
          %s350 = ssub.s32 %s349, 1
          %p351 = scmp.gt.s32.totalorder %s350, 0
          %s352 = scalar_select %p351, %s350, 0
          %p353 = scmp.lt.s32.totalorder %s352, 3
          %s354 = scalar_select %p353, %s352, 3
          %s355 = smul.u32 2, %s354
          %p356 = scmp.lt.s32.totalorder %s24, 1
          %s357 = scalar_select %p356, %s24, 1
          %p358 = scmp.lt.s32.totalorder %s355, 7
          %s359 = scalar_select %p358, %s355, 7
          %s360 = smul.addr %s357, 8
          %s361 = sadd.s32 %s359, %s360
          %s362 = smul.addr %s361, 4
          %s363 = scalar_lea.vmem %s0, %s362
          %s364 = smul.u32 %s25, 2
          %s365 = ssub.s32 %s364, 1
          %p366 = scmp.gt.s32.totalorder %s365, 0
          %s367 = scalar_select %p366, %s365, 0
          %p368 = scmp.lt.s32.totalorder %s367, 3
          %s369 = scalar_select %p368, %s367, 3
          %s370 = smul.u32 2, %s369
        $region44: #{_lambda_.5} parent=39 // pred_fallthru
          _
        // Predicated region
        $region45: #{_lambda_.5} parent=39 // pred_check
          %p371 = pneg %p91
        $region46: #{_lambda_.5} parent=39 // pred_check_branch
          %373 = sbr.rel (%p371) target = $region48
        $region47: #{_lambda_.5} parent=39 // pred_region
          %s374 = smul.u32 4, %s25
          %p375 = scmp.lt.s32.totalorder %s24, 1
          %s376 = scalar_select %p375, %s24, 1
          %p377 = scmp.lt.s32.totalorder %s374, 7
          %s378 = scalar_select %p377, %s374, 7
          %s379 = smul.addr %s376, 8
          %s380 = sadd.s32 %s378, %s379
          %s381 = smul.addr %s380, 4
          %s382 = scalar_lea.vmem %s1, %s381
          %s383 = smul.u32 4, %s25
        $region48: #{_lambda_.5} parent=39 // pred_fallthru
          _
        // Predicated region
        $region49: #{_lambda_.5} parent=39 // pred_check
          %p384 = pneg %p127
        $region50: #{_lambda_.5} parent=39 // pred_check_branch
          %386 = sbr.rel (%p384) target = $region52
        $region51: #{_lambda_.5} parent=39 // pred_region
          %s387 = sadd.s32 %s25, 1
          %s388 = smul.u32 %s387, 2
          %p389 = scmp.lt.s32.totalorder %s388, 3
          %s390 = scalar_select %p389, %s388, 3
          %s391 = smul.u32 2, %s390
          %p392 = scmp.lt.s32.totalorder %s24, 1
          %s393 = scalar_select %p392, %s24, 1
          %p394 = scmp.lt.s32.totalorder %s391, 7
          %s395 = scalar_select %p394, %s391, 7
          %s396 = smul.addr %s393, 8
          %s397 = sadd.s32 %s395, %s396
          %s398 = smul.addr %s397, 4
          %s399 = scalar_lea.vmem %s2, %s398
          %s400 = sadd.s32 %s25, 1
          %s401 = smul.u32 %s400, 2
          %p402 = scmp.lt.s32.totalorder %s401, 3
          %s403 = scalar_select %p402, %s401, 3
          %s404 = smul.u32 2, %s403
        $region52: #{_lambda_.5} parent=39 // pred_fallthru
          _
      $region40: #{_lambda_.5} parent=5 // pred_fallthru
        _
      %p405 = scmp.le.s32.totalorder 1, %s17
      %p406 = scmp.lt.s32.totalorder %s17, 5
      %p407 = pnand %p405, %p406
      %p408 = pneg %p407
      // Predicated region
      $region53: #{_lambda_.5} parent=5 // pred_check
        _
      $region54: #{_lambda_.5} parent=5 // pred_check_branch
        %410 = sbr.rel (%p407) target = $region56
      $region55: #{_lambda_.5} parent=5 // pred_region
        %s411 = ssub.s32 %s17, 1
        // Predicated region
        $region57: #{_lambda_.5} parent=55 // pred_check
          %p412 = pneg %p154
        $region58: #{_lambda_.5} parent=55 // pred_check_branch
          %414 = sbr.rel (%p412) target = $region60
        $region59: #{_lambda_.5} parent=55 // pred_region
          %416 = dma.done [#allocation3], 3072
        $region60: #{_lambda_.5} parent=55 // pred_fallthru
          _
        // Predicated region
        $region61: #{_lambda_.5} parent=55 // pred_check
          %p417 = pneg %p238
        $region62: #{_lambda_.5} parent=55 // pred_check_branch
          %419 = sbr.rel (%p417) target = $region64
        $region63: #{_lambda_.5} parent=55 // pred_region
          %421 = dma.done [#allocation5], 1024
        $region64: #{_lambda_.5} parent=55 // pred_fallthru
          _
        %s422 = smul.u32 %s27, 2
        %s423 = ssub.s32 %s422, 1
        %p424 = scmp.gt.s32.totalorder %s423, 0
        %s425 = scalar_select %p424, %s423, 0
        %p426 = scmp.lt.s32.totalorder %s425, 3
        %s427 = scalar_select %p426, %s425, 3
        %s428 = smul.u32 2, %s427
        %p429 = scmp.lt.s32.totalorder %s26, 1
        %s430 = scalar_select %p429, %s26, 1
        %p431 = scmp.lt.s32.totalorder %s428, 7
        %s432 = scalar_select %p431, %s428, 7
        %s433 = smul.addr %s430, 8
        %s434 = sadd.s32 %s432, %s433
        %s435 = smul.addr %s434, 4
        %s436 = scalar_lea.vmem %s0, %s435
        %p437 = pneg %p69
        %p438 = pneg %p66
        %s439 = smul.u32 4, %s27
        %p440 = scmp.lt.s32.totalorder %s26, 1
        %s441 = scalar_select %p440, %s26, 1
        %p442 = scmp.lt.s32.totalorder %s439, 7
        %s443 = scalar_select %p442, %s439, 7
        %s444 = smul.addr %s441, 8
        %s445 = sadd.s32 %s443, %s444
        %s446 = smul.addr %s445, 4
        %s447 = scalar_lea.vmem %s1, %s446
        %p448 = pneg %p97
        %p449 = pneg %p94
        %s450 = sadd.s32 %s27, 1
        %s451 = smul.u32 %s450, 2
        %p452 = scmp.lt.s32.totalorder %s451, 3
        %s453 = scalar_select %p452, %s451, 3
        %s454 = smul.u32 2, %s453
        %p455 = scmp.lt.s32.totalorder %s26, 1
        %s456 = scalar_select %p455, %s26, 1
        %p457 = scmp.lt.s32.totalorder %s454, 7
        %s458 = scalar_select %p457, %s454, 7
        %s459 = smul.addr %s456, 8
        %s460 = sadd.s32 %s458, %s459
        %s461 = smul.addr %s460, 4
        %s462 = scalar_lea.vmem %s2, %s461
        %p463 = pneg %p133
        %p464 = pneg %p130
        %p465 = pneg %p154
        %p466 = pneg %p151
        %p467 = pneg %p175
        %p468 = pneg %p172
        %p469 = pneg %p196
        %p470 = pneg %p193
        %p471 = pneg %p217
        %p472 = pneg %p214
        %p473 = pneg %p238
        %p474 = pneg %p235
        %p475 = pneg %p259
        %p476 = pneg %p256
        %p477 = pneg %p287
        %p478 = pneg %p284
        %s479 = smul.u32 4, %s27
        %p480 = scmp.lt.s32.totalorder %s26, 1
        %s481 = scalar_select %p480, %s26, 1
        %p482 = scmp.lt.s32.totalorder %s479, 7
        %s483 = scalar_select %p482, %s479, 7
        %s484 = smul.addr %s481, 8
        %s485 = sadd.s32 %s483, %s484
        %s486 = smul.addr %s485, 4
        %s487 = scalar_lea.vmem %s9, %s486
        %s488 = smul.u32 %s27, 2
        %s489 = ssub.s32 %s488, 1
        %p490 = scmp.gt.s32.totalorder %s489, 0
        %s491 = scalar_select %p490, %s489, 0
        %p492 = scmp.lt.s32.totalorder %s491, 3
        %s493 = scalar_select %p492, %s491, 3
        %s494 = smul.u32 2, %s493
        %p495 = scmp.lt.s32.totalorder %s26, 1
        %s496 = scalar_select %p495, %s26, 1
        %p497 = scmp.lt.s32.totalorder %s494, 7
        %s498 = scalar_select %p497, %s494, 7
        %s499 = smul.addr %s496, 8
        %s500 = sadd.s32 %s498, %s499
        %s501 = smul.addr %s500, 4
        %s502 = scalar_lea.vmem %s0, %s501
        %s503 = smul.u32 %s27, 2
        %s504 = ssub.s32 %s503, 1
        %p505 = scmp.gt.s32.totalorder %s504, 0
        %s506 = scalar_select %p505, %s504, 0
        %p507 = scmp.lt.s32.totalorder %s506, 3
        %s508 = scalar_select %p507, %s506, 3
        %s509 = smul.u32 2, %s508
        %s510 = smul.u32 4, %s27
        %p511 = scmp.lt.s32.totalorder %s26, 1
        %s512 = scalar_select %p511, %s26, 1
        %p513 = scmp.lt.s32.totalorder %s510, 7
        %s514 = scalar_select %p513, %s510, 7
        %s515 = smul.addr %s512, 8
        %s516 = sadd.s32 %s514, %s515
        %s517 = smul.addr %s516, 4
        %s518 = scalar_lea.vmem %s1, %s517
        %s519 = smul.u32 4, %s27
        %s520 = sadd.s32 %s27, 1
        %s521 = smul.u32 %s520, 2
        %p522 = scmp.lt.s32.totalorder %s521, 3
        %s523 = scalar_select %p522, %s521, 3
        %s524 = smul.u32 2, %s523
        %p525 = scmp.lt.s32.totalorder %s26, 1
        %s526 = scalar_select %p525, %s26, 1
        %p527 = scmp.lt.s32.totalorder %s524, 7
        %s528 = scalar_select %p527, %s524, 7
        %s529 = smul.addr %s526, 8
        %s530 = sadd.s32 %s528, %s529
        %s531 = smul.addr %s530, 4
        %s532 = scalar_lea.vmem %s2, %s531
        %s533 = sadd.s32 %s27, 1
        %s534 = smul.u32 %s533, 2
        %p535 = scmp.lt.s32.totalorder %s534, 3
        %s536 = scalar_select %p535, %s534, 3
        %s537 = smul.u32 2, %s536
        %s538 = smul.u32 4, %s27
        %p539 = scmp.lt.s32.totalorder %s26, 1
        %s540 = scalar_select %p539, %s26, 1
        %p541 = scmp.lt.s32.totalorder %s538, 7
        %s542 = scalar_select %p541, %s538, 7
        %s543 = smul.addr %s540, 8
        %s544 = sadd.s32 %s542, %s543
        %s545 = smul.addr %s544, 4
        %s546 = scalar_lea.vmem %s9, %s545
        %s547 = smul.u32 4, %s27
        %v548 = vld [vmem:[%s502] sm:$0xf]
        %v549 = vld [vmem:[%s502 + $0x4] sm:$0xf]
        %v550 = vld [vmem:[%s518] sm:$0xf]
        %v551 = vld [vmem:[%s518 + $0x4] sm:$0xf]
        %v552 = vld [vmem:[%s518 + $0x8] sm:$0xf]
        %v553 = vld [vmem:[%s518 + $0xc] sm:$0xf]
        %v554 = vld [vmem:[%s532] sm:$0xf]
        %v555 = vld [vmem:[%s532 + $0x4] sm:$0xf]
        %v558 = vunpack.c.l.b16 %v548
        %v559 = vunpack.c.l.b16 %v549
        %v560 = vpack.c.b16 %v559, %v558
        %v566 = vunpack.c.l.b16 %v550
        %v567 = vunpack.c.l.b16 %v551
        %v568 = vunpack.c.l.b16 %v552
        %v569 = vunpack.c.l.b16 %v553
        %v570 = vpack.c.b16 %v567, %v566
        %v571 = vpack.c.b16 %v569, %v568
        %v576 = vunpack.c.l.b16 %v554
        %v577 = vunpack.c.l.b16 %v555
        %v578 = vpack.c.b16 %v577, %v576
        %v580 = vld [vmem:[#allocation4] sm:$0xf]
        %v581 = vld [vmem:[#allocation4 + $0x4] sm:$0xf]
        %v582 = vld [vmem:[#allocation4 + $0x8] sm:$0xf]
        %v583 = vld [vmem:[#allocation4 + $0xc] sm:$0xf]
        %v584 = vld [vmem:[#allocation4 + $0x10] sm:$0xf]
        %v585 = vld [vmem:[#allocation4 + $0x14] sm:$0xf]
        %v586 = vld [vmem:[#allocation4 + $0x18] sm:$0xf]
        %v587 = vld [vmem:[#allocation4 + $0x1c] sm:$0xf]
        %v588 = vld [vmem:[#allocation4 + $0x20] sm:$0xf]
        %v589 = vld [vmem:[#allocation4 + $0x24] sm:$0xf]
        %v590 = vld [vmem:[#allocation4 + $0x28] sm:$0xf]
        %v591 = vld [vmem:[#allocation4 + $0x2c] sm:$0xf]
        %v592 = vld [vmem:[#allocation4 + $0x30] sm:$0xf]
        %v593 = vld [vmem:[#allocation4 + $0x34] sm:$0xf]
        %v594 = vld [vmem:[#allocation4 + $0x38] sm:$0xf]
        %v595 = vld [vmem:[#allocation4 + $0x3c] sm:$0xf]
        %v596 = vld [vmem:[%s8] sm:$0x1]
        %v598 = vperm.slane %v596, 0
        %v616 = vunpack.c.l.b16 %v580
        %v617 = vunpack.c.l.b16 %v581
        %v618 = vunpack.c.l.b16 %v582
        %v619 = vunpack.c.l.b16 %v583
        %v620 = vunpack.c.l.b16 %v584
        %v621 = vunpack.c.l.b16 %v585
        %v622 = vunpack.c.l.b16 %v586
        %v623 = vunpack.c.l.b16 %v587
        %v624 = vunpack.c.l.b16 %v588
        %v625 = vunpack.c.l.b16 %v589
        %v626 = vunpack.c.l.b16 %v590
        %v627 = vunpack.c.l.b16 %v591
        %v628 = vunpack.c.l.b16 %v592
        %v629 = vunpack.c.l.b16 %v593
        %v630 = vunpack.c.l.b16 %v594
        %v631 = vunpack.c.l.b16 %v595
        %v632 = vpack.c.b16 %v617, %v616
        %v633 = vpack.c.b16 %v619, %v618
        %v634 = vpack.c.b16 %v621, %v620
        %v635 = vpack.c.b16 %v623, %v622
        %v636 = vpack.c.b16 %v625, %v624
        %v637 = vpack.c.b16 %v627, %v626
        %v638 = vpack.c.b16 %v629, %v628
        %v639 = vpack.c.b16 %v631, %v630
        %648 = vmatpush.bf16.msra.mxu0 %v639
        %649 = vmatpush.bf16.msra.mxu0 %v638
        %650 = vmatpush.bf16.msra.mxu0 %v637
        %651 = vmatpush.bf16.msra.mxu0 %v636
        %652 = vmatpush.bf16.msra.mxu0 %v635
        %653 = vmatpush.bf16.msra.mxu0 %v634
        %654 = vmatpush.bf16.msra.mxu0 %v633
        %655 = vmatpush.bf16.msra.mxu0 %v632
        %656 = vmatmul.bf16.gmra.mxu0 %v570
        %v657 = vpop.f32.mrf.mxu0
        %v658 = vadd.f32 %v598, %v657
        %v659 = vpop.f32.mrf.mxu0
        %v660 = vadd.f32 %v598, %v659
        %661 = vmatmul.bf16.gmra.mxu0 %v571
        %v662 = vpop.f32.mrf.mxu0
        %v663 = vadd.f32 %v598, %v662
        %v664 = vpop.f32.mrf.mxu0
        %v665 = vadd.f32 %v598, %v664
        %666 = vdwg.mxu0
        %v667 = vlaneseq
        %v668 = vshrl.u32 %v667, 7
        %v669 = vadd.s32 %v668, 8
        %v670 = vadd.s32 %v668, 16
        %v671 = vadd.s32 %v668, 24
        %v672 = vadd.s32 %v668, 32
        %v673 = vadd.s32 %v668, 40
        %v674 = vadd.s32 %v668, 48
        %s675 = smul.u32 %s27, 32
        %s676 = ssub.s32 %s675, 16
        %v677 = vstv %s676
        %v678 = vadd.s32 %v669, %v677
        %v679 = vadd.s32 %v670, %v677
        %v680 = vadd.s32 %v671, %v677
        %v681 = vadd.s32 %v672, %v677
        %v682 = vadd.s32 %v673, %v677
        %v683 = vadd.s32 %v674, %v677
        %vm684 = vcmp.ge.s32.totalorder %v678, 0
        %vm685 = vcmp.ge.s32.totalorder %v679, 0
        %vm686 = vcmp.ge.s32.totalorder %v680, 0
        %vm687 = vcmp.ge.s32.totalorder %v681, 0
        %vm688 = vcmp.ge.s32.totalorder %v682, 0
        %vm689 = vcmp.ge.s32.totalorder %v683, 0
        %vm690 = vcmp.lt.s32.totalorder %v678, 64
        %vm691 = vcmp.lt.s32.totalorder %v679, 64
        %vm692 = vcmp.lt.s32.totalorder %v680, 64
        %vm693 = vcmp.lt.s32.totalorder %v681, 64
        %vm694 = vcmp.lt.s32.totalorder %v682, 64
        %vm695 = vcmp.lt.s32.totalorder %v683, 64
        %vm696 = vmand %vm684, %vm690
        %vm697 = vmand %vm685, %vm691
        %vm698 = vmand %vm686, %vm692
        %vm699 = vmand %vm687, %vm693
        %vm700 = vmand %vm688, %vm694
        %vm701 = vmand %vm689, %vm695
        %v702 = vunpack.c.h.bf16 %v560
        %v703 = vunpack.c.l.bf16 %v570
        %v704 = vunpack.c.h.bf16 %v570
        %v705 = vunpack.c.l.bf16 %v571
        %v706 = vunpack.c.h.bf16 %v571
        %v707 = vunpack.c.l.bf16 %v578
        %v708 = vmul.f32 %v702, 0.5
        %v709 = vmul.f32 %v703, 0.5
        %v710 = vmul.f32 %v704, 0.5
        %v711 = vmul.f32 %v705, 0.5
        %v712 = vmul.f32 %v706, 0.5
        %v713 = vmul.f32 %v707, 0.5
        %v714 = vmul.f32 %v702, 0.70710677
        %v715 = vmul.f32 %v703, 0.70710677
        %v716 = vmul.f32 %v704, 0.70710677
        %v717 = vmul.f32 %v705, 0.70710677
        %v718 = vmul.f32 %v706, 0.70710677
        %v719 = vmul.f32 %v707, 0.70710677
        %v720 = vmul.f32 %v714, %v714
        %v721 = vmin.f32 16.0, %v720
        %v722 = vmul.f32 %v721, 2.1237322e-06
        %v723 = vadd.f32 %v722, 0.00028619796
        %v724 = vmul.f32 %v721, %v723
        %v725 = vadd.f32 %v724, 0.0036580483
        %v726 = vmul.f32 %v721, %v725
        %v727 = vadd.f32 %v726, 0.05243302
        %v728 = vmul.f32 %v721, %v727
        %v729 = vadd.f32 %v728, 0.18741608
        %v730 = vmul.f32 %v721, %v729
        %v731 = vadd.f32 %v730, 1.1283791
        %v732 = vmul.f32 %v714, %v731
        %v733 = vmul.f32 %v721, 3.8918573e-05
        %v734 = vadd.f32 %v733, 0.001143296
        %v735 = vmul.f32 %v721, %v734
        %v736 = vadd.f32 %v735, 0.014752088
        %v737 = vmul.f32 %v721, %v736
        %v738 = vadd.f32 %v737, 0.112945676
        %v739 = vmul.f32 %v721, %v738
        %v740 = vadd.f32 %v739, 0.4994258
        %v741 = vmul.f32 %v721, %v740
        %v742 = vadd.f32 %v741, 1.0
        %v743 = vrcp.pop %v742
        %v744 = vmul.f32 %v742, %v743
        %v745 = vsub.f32 1.0, %v744
        %v746 = vmul.f32 %v743, %v745
        %v747 = vadd.f32 %v743, %v746
        %vm748 = vweird.f32 %v742
        %vm749 = vweird.f32 %v743
        %vm750 = vmor %vm748, %vm749
        %v751 = vsel %vm750, %v743, %v747
        %v752 = vand.u32 2147483647, %v742
        %vm753 = vcmp.eq.f32.partialorder %v752, 8.507059e+37
        %v754 = vand.u32 %v742, 2147483648
        %v755 = vor.u32 1.1754944e-38, %v754
        %v756 = vsel %vm753, %v755, %v751
        %v757 = vmul.f32 %v732, %v756
        %v758 = vmin.f32 %v757, 1.0
        %v759 = vmax.f32 %v758, -1.0
        %v760 = vmul.f32 %v715, %v715
        %v761 = vmin.f32 16.0, %v760
        %v762 = vmul.f32 %v761, 2.1237322e-06
        %v763 = vadd.f32 %v762, 0.00028619796
        %v764 = vmul.f32 %v761, %v763
        %v765 = vadd.f32 %v764, 0.0036580483
        %v766 = vmul.f32 %v761, %v765
        %v767 = vadd.f32 %v766, 0.05243302
        %v768 = vmul.f32 %v761, %v767
        %v769 = vadd.f32 %v768, 0.18741608
        %v770 = vmul.f32 %v761, %v769
        %v771 = vadd.f32 %v770, 1.1283791
        %v772 = vmul.f32 %v715, %v771
        %v773 = vmul.f32 %v761, 3.8918573e-05
        %v774 = vadd.f32 %v773, 0.001143296
        %v775 = vmul.f32 %v761, %v774
        %v776 = vadd.f32 %v775, 0.014752088
        %v777 = vmul.f32 %v761, %v776
        %v778 = vadd.f32 %v777, 0.112945676
        %v779 = vmul.f32 %v761, %v778
        %v780 = vadd.f32 %v779, 0.4994258
        %v781 = vmul.f32 %v761, %v780
        %v782 = vadd.f32 %v781, 1.0
        %v783 = vrcp.pop %v782
        %v784 = vmul.f32 %v782, %v783
        %v785 = vsub.f32 1.0, %v784
        %v786 = vmul.f32 %v783, %v785
        %v787 = vadd.f32 %v783, %v786
        %vm788 = vweird.f32 %v782
        %vm789 = vweird.f32 %v783
        %vm790 = vmor %vm788, %vm789
        %v791 = vsel %vm790, %v783, %v787
        %v792 = vand.u32 2147483647, %v782
        %vm793 = vcmp.eq.f32.partialorder %v792, 8.507059e+37
        %v794 = vand.u32 %v782, 2147483648
        %v795 = vor.u32 1.1754944e-38, %v794
        %v796 = vsel %vm793, %v795, %v791
        %v797 = vmul.f32 %v772, %v796
        %v798 = vmin.f32 %v797, 1.0
        %v799 = vmax.f32 %v798, -1.0
        %v800 = vmul.f32 %v716, %v716
        %v801 = vmin.f32 16.0, %v800
        %v802 = vmul.f32 %v801, 2.1237322e-06
        %v803 = vadd.f32 %v802, 0.00028619796
        %v804 = vmul.f32 %v801, %v803
        %v805 = vadd.f32 %v804, 0.0036580483
        %v806 = vmul.f32 %v801, %v805
        %v807 = vadd.f32 %v806, 0.05243302
        %v808 = vmul.f32 %v801, %v807
        %v809 = vadd.f32 %v808, 0.18741608
        %v810 = vmul.f32 %v801, %v809
        %v811 = vadd.f32 %v810, 1.1283791
        %v812 = vmul.f32 %v716, %v811
        %v813 = vmul.f32 %v801, 3.8918573e-05
        %v814 = vadd.f32 %v813, 0.001143296
        %v815 = vmul.f32 %v801, %v814
        %v816 = vadd.f32 %v815, 0.014752088
        %v817 = vmul.f32 %v801, %v816
        %v818 = vadd.f32 %v817, 0.112945676
        %v819 = vmul.f32 %v801, %v818
        %v820 = vadd.f32 %v819, 0.4994258
        %v821 = vmul.f32 %v801, %v820
        %v822 = vadd.f32 %v821, 1.0
        %v823 = vrcp.pop %v822
        %v824 = vmul.f32 %v822, %v823
        %v825 = vsub.f32 1.0, %v824
        %v826 = vmul.f32 %v823, %v825
        %v827 = vadd.f32 %v823, %v826
        %vm828 = vweird.f32 %v822
        %vm829 = vweird.f32 %v823
        %vm830 = vmor %vm828, %vm829
        %v831 = vsel %vm830, %v823, %v827
        %v832 = vand.u32 2147483647, %v822
        %vm833 = vcmp.eq.f32.partialorder %v832, 8.507059e+37
        %v834 = vand.u32 %v822, 2147483648
        %v835 = vor.u32 1.1754944e-38, %v834
        %v836 = vsel %vm833, %v835, %v831
        %v837 = vmul.f32 %v812, %v836
        %v838 = vmin.f32 %v837, 1.0
        %v839 = vmax.f32 %v838, -1.0
        %v840 = vmul.f32 %v717, %v717
        %v841 = vmin.f32 16.0, %v840
        %v842 = vmul.f32 %v841, 2.1237322e-06
        %v843 = vadd.f32 %v842, 0.00028619796
        %v844 = vmul.f32 %v841, %v843
        %v845 = vadd.f32 %v844, 0.0036580483
        %v846 = vmul.f32 %v841, %v845
        %v847 = vadd.f32 %v846, 0.05243302
        %v848 = vmul.f32 %v841, %v847
        %v849 = vadd.f32 %v848, 0.18741608
        %v850 = vmul.f32 %v841, %v849
        %v851 = vadd.f32 %v850, 1.1283791
        %v852 = vmul.f32 %v717, %v851
        %v853 = vmul.f32 %v841, 3.8918573e-05
        %v854 = vadd.f32 %v853, 0.001143296
        %v855 = vmul.f32 %v841, %v854
        %v856 = vadd.f32 %v855, 0.014752088
        %v857 = vmul.f32 %v841, %v856
        %v858 = vadd.f32 %v857, 0.112945676
        %v859 = vmul.f32 %v841, %v858
        %v860 = vadd.f32 %v859, 0.4994258
        %v861 = vmul.f32 %v841, %v860
        %v862 = vadd.f32 %v861, 1.0
        %v863 = vrcp.pop %v862
        %v864 = vmul.f32 %v862, %v863
        %v865 = vsub.f32 1.0, %v864
        %v866 = vmul.f32 %v863, %v865
        %v867 = vadd.f32 %v863, %v866
        %vm868 = vweird.f32 %v862
        %vm869 = vweird.f32 %v863
        %vm870 = vmor %vm868, %vm869
        %v871 = vsel %vm870, %v863, %v867
        %v872 = vand.u32 2147483647, %v862
        %vm873 = vcmp.eq.f32.partialorder %v872, 8.507059e+37
        %v874 = vand.u32 %v862, 2147483648
        %v875 = vor.u32 1.1754944e-38, %v874
        %v876 = vsel %vm873, %v875, %v871
        %v877 = vmul.f32 %v852, %v876
        %v878 = vmin.f32 %v877, 1.0
        %v879 = vmax.f32 %v878, -1.0
        %v880 = vmul.f32 %v718, %v718
        %v881 = vmin.f32 16.0, %v880
        %v882 = vmul.f32 %v881, 2.1237322e-06
        %v883 = vadd.f32 %v882, 0.00028619796
        %v884 = vmul.f32 %v881, %v883
        %v885 = vadd.f32 %v884, 0.0036580483
        %v886 = vmul.f32 %v881, %v885
        %v887 = vadd.f32 %v886, 0.05243302
        %v888 = vmul.f32 %v881, %v887
        %v889 = vadd.f32 %v888, 0.18741608
        %v890 = vmul.f32 %v881, %v889
        %v891 = vadd.f32 %v890, 1.1283791
        %v892 = vmul.f32 %v718, %v891
        %v893 = vmul.f32 %v881, 3.8918573e-05
        %v894 = vadd.f32 %v893, 0.001143296
        %v895 = vmul.f32 %v881, %v894
        %v896 = vadd.f32 %v895, 0.014752088
        %v897 = vmul.f32 %v881, %v896
        %v898 = vadd.f32 %v897, 0.112945676
        %v899 = vmul.f32 %v881, %v898
        %v900 = vadd.f32 %v899, 0.4994258
        %v901 = vmul.f32 %v881, %v900
        %v902 = vadd.f32 %v901, 1.0
        %v903 = vrcp.pop %v902
        %v904 = vmul.f32 %v902, %v903
        %v905 = vsub.f32 1.0, %v904
        %v906 = vmul.f32 %v903, %v905
        %v907 = vadd.f32 %v903, %v906
        %vm908 = vweird.f32 %v902
        %vm909 = vweird.f32 %v903
        %vm910 = vmor %vm908, %vm909
        %v911 = vsel %vm910, %v903, %v907
        %v912 = vand.u32 2147483647, %v902
        %vm913 = vcmp.eq.f32.partialorder %v912, 8.507059e+37
        %v914 = vand.u32 %v902, 2147483648
        %v915 = vor.u32 1.1754944e-38, %v914
        %v916 = vsel %vm913, %v915, %v911
        %v917 = vmul.f32 %v892, %v916
        %v918 = vmin.f32 %v917, 1.0
        %v919 = vmax.f32 %v918, -1.0
        %v920 = vmul.f32 %v719, %v719
        %v921 = vmin.f32 16.0, %v920
        %v922 = vmul.f32 %v921, 2.1237322e-06
        %v923 = vadd.f32 %v922, 0.00028619796
        %v924 = vmul.f32 %v921, %v923
        %v925 = vadd.f32 %v924, 0.0036580483
        %v926 = vmul.f32 %v921, %v925
        %v927 = vadd.f32 %v926, 0.05243302
        %v928 = vmul.f32 %v921, %v927
        %v929 = vadd.f32 %v928, 0.18741608
        %v930 = vmul.f32 %v921, %v929
        %v931 = vadd.f32 %v930, 1.1283791
        %v932 = vmul.f32 %v719, %v931
        %v933 = vmul.f32 %v921, 3.8918573e-05
        %v934 = vadd.f32 %v933, 0.001143296
        %v935 = vmul.f32 %v921, %v934
        %v936 = vadd.f32 %v935, 0.014752088
        %v937 = vmul.f32 %v921, %v936
        %v938 = vadd.f32 %v937, 0.112945676
        %v939 = vmul.f32 %v921, %v938
        %v940 = vadd.f32 %v939, 0.4994258
        %v941 = vmul.f32 %v921, %v940
        %v942 = vadd.f32 %v941, 1.0
        %v943 = vrcp.pop %v942
        %v944 = vmul.f32 %v942, %v943
        %v945 = vsub.f32 1.0, %v944
        %v946 = vmul.f32 %v943, %v945
        %v947 = vadd.f32 %v943, %v946
        %vm948 = vweird.f32 %v942
        %vm949 = vweird.f32 %v943
        %vm950 = vmor %vm948, %vm949
        %v951 = vsel %vm950, %v943, %v947
        %v952 = vand.u32 2147483647, %v942
        %vm953 = vcmp.eq.f32.partialorder %v952, 8.507059e+37
        %v954 = vand.u32 %v942, 2147483648
        %v955 = vor.u32 1.1754944e-38, %v954
        %v956 = vsel %vm953, %v955, %v951
        %v957 = vmul.f32 %v932, %v956
        %v958 = vmin.f32 %v957, 1.0
        %v959 = vmax.f32 %v958, -1.0
        %v960 = vadd.f32 %v759, 1.0
        %v961 = vadd.f32 %v799, 1.0
        %v962 = vadd.f32 %v839, 1.0
        %v963 = vadd.f32 %v879, 1.0
        %v964 = vadd.f32 %v919, 1.0
        %v965 = vadd.f32 %v959, 1.0
        %v966 = vmul.f32 %v708, %v960
        %v967 = vmul.f32 %v709, %v961
        %v968 = vmul.f32 %v710, %v962
        %v969 = vmul.f32 %v711, %v963
        %v970 = vmul.f32 %v712, %v964
        %v971 = vmul.f32 %v713, %v965
        %v972 = vsel %vm696, 1, 0
        %v973 = vsel %vm697, 1, 0
        %v974 = vsel %vm698, 1, 0
        %v975 = vsel %vm699, 1, 0
        %v976 = vsel %vm700, 1, 0
        %v977 = vsel %vm701, 1, 0
        %vm978 = vcmp.eq.s32.totalorder %v972, 1
        %vm979 = vcmp.eq.s32.totalorder %v973, 1
        %vm980 = vcmp.eq.s32.totalorder %v974, 1
        %vm981 = vcmp.eq.s32.totalorder %v975, 1
        %vm982 = vcmp.eq.s32.totalorder %v976, 1
        %vm983 = vcmp.eq.s32.totalorder %v977, 1
        %v984 = vsel %vm978, %v966, 0.0
        %v985 = vsel %vm979, %v967, 0.0
        %v986 = vsel %vm980, %v968, 0.0
        %v987 = vsel %vm981, %v969, 0.0
        %v988 = vsel %vm982, %v970, 0.0
        %v989 = vsel %vm983, %v971, 0.0
        %v990 = vpack.c.bf16 %v984, %v984
        %v991 = vpack.c.bf16 %v985, %v985
        %v992 = vpack.c.bf16 %v986, %v986
        %v993 = vpack.c.bf16 %v987, %v987
        %v994 = vpack.c.bf16 %v988, %v988
        %v995 = vpack.c.bf16 %v989, %v989
        %v996 = vld [vmem:[#allocation2] sm:$0xf]
        %v997 = vld [vmem:[#allocation2 + $0x4] sm:$0xf]
        %v998 = vld [vmem:[#allocation2 + $0x8] sm:$0xf]
        %v999 = vld [vmem:[#allocation2 + $0xc] sm:$0xf]
        %v1000 = vld [vmem:[#allocation2 + $0x10] sm:$0xf]
        %v1001 = vld [vmem:[#allocation2 + $0x14] sm:$0xf]
        %v1002 = vld [vmem:[#allocation2 + $0x18] sm:$0xf]
        %v1003 = vld [vmem:[#allocation2 + $0x1c] sm:$0xf]
        %v1004 = vld [vmem:[#allocation2 + $0x20] sm:$0xf]
        %v1005 = vld [vmem:[#allocation2 + $0x24] sm:$0xf]
        %v1006 = vld [vmem:[#allocation2 + $0x28] sm:$0xf]
        %v1007 = vld [vmem:[#allocation2 + $0x2c] sm:$0xf]
        %v1008 = vld [vmem:[#allocation2 + $0x30] sm:$0xf]
        %v1009 = vld [vmem:[#allocation2 + $0x34] sm:$0xf]
        %v1010 = vld [vmem:[#allocation2 + $0x38] sm:$0xf]
        %v1011 = vld [vmem:[#allocation2 + $0x3c] sm:$0xf]
        %s1012 = scalar_lea.vmem [#allocation2], 64
        %v1013 = vld [vmem:[%s1012] sm:$0xf]
        %v1014 = vld [vmem:[%s1012 + $0x4] sm:$0xf]
        %v1015 = vld [vmem:[%s1012 + $0x8] sm:$0xf]
        %v1016 = vld [vmem:[%s1012 + $0xc] sm:$0xf]
        %v1017 = vld [vmem:[%s1012 + $0x10] sm:$0xf]
        %v1018 = vld [vmem:[%s1012 + $0x14] sm:$0xf]
        %v1019 = vld [vmem:[%s1012 + $0x18] sm:$0xf]
        %v1020 = vld [vmem:[%s1012 + $0x1c] sm:$0xf]
        %v1021 = vld [vmem:[%s1012 + $0x20] sm:$0xf]
        %v1022 = vld [vmem:[%s1012 + $0x24] sm:$0xf]
        %v1023 = vld [vmem:[%s1012 + $0x28] sm:$0xf]
        %v1024 = vld [vmem:[%s1012 + $0x2c] sm:$0xf]
        %v1025 = vld [vmem:[%s1012 + $0x30] sm:$0xf]
        %v1026 = vld [vmem:[%s1012 + $0x34] sm:$0xf]
        %v1027 = vld [vmem:[%s1012 + $0x38] sm:$0xf]
        %v1028 = vld [vmem:[%s1012 + $0x3c] sm:$0xf]
        %v1035 = vunpack.c.l.b16 %v990
        %v1036 = vunpack.c.l.b16 %v991
        %v1037 = vunpack.c.l.b16 %v992
        %v1038 = vunpack.c.l.b16 %v993
        %v1039 = vunpack.c.l.b16 %v994
        %v1040 = vunpack.c.l.b16 %v995
        %v1041 = vpack.c.b16 %v1036, %v1035
        %v1042 = vpack.c.b16 %v1038, %v1037
        %v1043 = vpack.c.b16 %v1040, %v1039
        %vm1044 = vcmask 1045504
        %v1045 = vrot.slane %v1041, 2
        %v1046 = vrot.slane %v1042, 2
        %v1047 = vsel %vm1044, %v1045, %v1046
        %v1048 = vrot.slane %v1043, 2
        %v1049 = vsel %vm1044, %v1046, %v1048
        %v1069 = vunpack.c.l.b16 %v1013
        %v1070 = vunpack.c.l.b16 %v1014
        %v1071 = vunpack.c.l.b16 %v1015
        %v1072 = vunpack.c.l.b16 %v1016
        %v1073 = vunpack.c.l.b16 %v1017
        %v1074 = vunpack.c.l.b16 %v1018
        %v1075 = vunpack.c.l.b16 %v1019
        %v1076 = vunpack.c.l.b16 %v1020
        %v1077 = vunpack.c.l.b16 %v1021
        %v1078 = vunpack.c.l.b16 %v1022
        %v1079 = vunpack.c.l.b16 %v1023
        %v1080 = vunpack.c.l.b16 %v1024
        %v1081 = vunpack.c.l.b16 %v1025
        %v1082 = vunpack.c.l.b16 %v1026
        %v1083 = vunpack.c.l.b16 %v1027
        %v1084 = vunpack.c.l.b16 %v1028
        %v1085 = vpack.c.b16 %v1070, %v1069
        %v1086 = vpack.c.b16 %v1072, %v1071
        %v1087 = vpack.c.b16 %v1074, %v1073
        %v1088 = vpack.c.b16 %v1076, %v1075
        %v1089 = vpack.c.b16 %v1078, %v1077
        %v1090 = vpack.c.b16 %v1080, %v1079
        %v1091 = vpack.c.b16 %v1082, %v1081
        %v1092 = vpack.c.b16 %v1084, %v1083
        %1101 = vmatpush.bf16.msra.mxu0 %v1092
        %1102 = vmatpush.bf16.msra.mxu0 %v1091
        %1103 = vmatpush.bf16.msra.mxu0 %v1090
        %1104 = vmatpush.bf16.msra.mxu0 %v1089
        %1105 = vmatpush.bf16.msra.mxu0 %v1088
        %1106 = vmatpush.bf16.msra.mxu0 %v1087
        %1107 = vmatpush.bf16.msra.mxu0 %v1086
        %1108 = vmatpush.bf16.msra.mxu0 %v1085
        %1109 = vmatmul.bf16.gmra.mxu0 %v1047
        %v1110 = vpop.f32.mrf.mxu0
        %v1111 = vadd.f32 0.0, %v1110
        %v1112 = vpop.f32.mrf.mxu0
        %v1113 = vadd.f32 0.0, %v1112
        %1114 = vmatmul.bf16.gmra.mxu0 %v1049
        %v1115 = vpop.f32.mrf.mxu0
        %v1116 = vadd.f32 0.0, %v1115
        %v1117 = vpop.f32.mrf.mxu0
        %v1118 = vadd.f32 0.0, %v1117
        %1119 = vmatmul.bf16.gmra.mxu0 %v1048
        %v1120 = vpop.f32.mrf.mxu0
        %v1121 = vadd.f32 0.0, %v1120
        %v1122 = vpop.f32.mrf.mxu0
        %1123 = vdwg.mxu0
        %v1124 = vpack.c.b16 %v1039, %v1039
        %v1144 = vunpack.c.l.b16 %v996
        %v1145 = vunpack.c.l.b16 %v997
        %v1146 = vunpack.c.l.b16 %v998
        %v1147 = vunpack.c.l.b16 %v999
        %v1148 = vunpack.c.l.b16 %v1000
        %v1149 = vunpack.c.l.b16 %v1001
        %v1150 = vunpack.c.l.b16 %v1002
        %v1151 = vunpack.c.l.b16 %v1003
        %v1152 = vunpack.c.l.b16 %v1004
        %v1153 = vunpack.c.l.b16 %v1005
        %v1154 = vunpack.c.l.b16 %v1006
        %v1155 = vunpack.c.l.b16 %v1007
        %v1156 = vunpack.c.l.b16 %v1008
        %v1157 = vunpack.c.l.b16 %v1009
        %v1158 = vunpack.c.l.b16 %v1010
        %v1159 = vunpack.c.l.b16 %v1011
        %v1160 = vpack.c.b16 %v1145, %v1144
        %v1161 = vpack.c.b16 %v1147, %v1146
        %v1162 = vpack.c.b16 %v1149, %v1148
        %v1163 = vpack.c.b16 %v1151, %v1150
        %v1164 = vpack.c.b16 %v1153, %v1152
        %v1165 = vpack.c.b16 %v1155, %v1154
        %v1166 = vpack.c.b16 %v1157, %v1156
        %v1167 = vpack.c.b16 %v1159, %v1158
        %1176 = vmatpush.bf16.msra.mxu0 %v1167
        %1177 = vmatpush.bf16.msra.mxu0 %v1166
        %1178 = vmatpush.bf16.msra.mxu0 %v1165
        %1179 = vmatpush.bf16.msra.mxu0 %v1164
        %1180 = vmatpush.bf16.msra.mxu0 %v1163
        %1181 = vmatpush.bf16.msra.mxu0 %v1162
        %1182 = vmatpush.bf16.msra.mxu0 %v1161
        %1183 = vmatpush.bf16.msra.mxu0 %v1160
        %1184 = vmatmul.bf16.gmra.mxu0 %v1041
        %v1185 = vpop.f32.mrf.mxu0
        %v1186 = vadd.f32 %v1111, %v1185
        %v1187 = vpop.f32.mrf.mxu0
        %v1188 = vadd.f32 %v1113, %v1187
        %1189 = vmatmul.bf16.gmra.mxu0 %v1042
        %v1190 = vpop.f32.mrf.mxu0
        %v1191 = vadd.f32 %v1116, %v1190
        %v1192 = vpop.f32.mrf.mxu0
        %v1193 = vadd.f32 %v1118, %v1192
        %1194 = vmatmul.bf16.gmra.mxu0 %v1124
        %v1195 = vpop.f32.mrf.mxu0
        %v1196 = vadd.f32 %v1121, %v1195
        %v1197 = vpop.f32.mrf.mxu0
        %1198 = vdwg.mxu0
        %s1199 = scalar_lea.vmem [#allocation2], 128
        %v1200 = vld [vmem:[%s1199] sm:$0xf]
        %v1201 = vld [vmem:[%s1199 + $0x4] sm:$0xf]
        %v1202 = vld [vmem:[%s1199 + $0x8] sm:$0xf]
        %v1203 = vld [vmem:[%s1199 + $0xc] sm:$0xf]
        %v1204 = vld [vmem:[%s1199 + $0x10] sm:$0xf]
        %v1205 = vld [vmem:[%s1199 + $0x14] sm:$0xf]
        %v1206 = vld [vmem:[%s1199 + $0x18] sm:$0xf]
        %v1207 = vld [vmem:[%s1199 + $0x1c] sm:$0xf]
        %v1208 = vld [vmem:[%s1199 + $0x20] sm:$0xf]
        %v1209 = vld [vmem:[%s1199 + $0x24] sm:$0xf]
        %v1210 = vld [vmem:[%s1199 + $0x28] sm:$0xf]
        %v1211 = vld [vmem:[%s1199 + $0x2c] sm:$0xf]
        %v1212 = vld [vmem:[%s1199 + $0x30] sm:$0xf]
        %v1213 = vld [vmem:[%s1199 + $0x34] sm:$0xf]
        %v1214 = vld [vmem:[%s1199 + $0x38] sm:$0xf]
        %v1215 = vld [vmem:[%s1199 + $0x3c] sm:$0xf]
        %v1216 = vpack.c.b16 %v1037, %v1036
        %v1217 = vpack.c.b16 %v1039, %v1038
        %v1218 = vpack.c.b16 %v1040, %v1040
        %v1238 = vunpack.c.l.b16 %v1200
        %v1239 = vunpack.c.l.b16 %v1201
        %v1240 = vunpack.c.l.b16 %v1202
        %v1241 = vunpack.c.l.b16 %v1203
        %v1242 = vunpack.c.l.b16 %v1204
        %v1243 = vunpack.c.l.b16 %v1205
        %v1244 = vunpack.c.l.b16 %v1206
        %v1245 = vunpack.c.l.b16 %v1207
        %v1246 = vunpack.c.l.b16 %v1208
        %v1247 = vunpack.c.l.b16 %v1209
        %v1248 = vunpack.c.l.b16 %v1210
        %v1249 = vunpack.c.l.b16 %v1211
        %v1250 = vunpack.c.l.b16 %v1212
        %v1251 = vunpack.c.l.b16 %v1213
        %v1252 = vunpack.c.l.b16 %v1214
        %v1253 = vunpack.c.l.b16 %v1215
        %v1254 = vpack.c.b16 %v1239, %v1238
        %v1255 = vpack.c.b16 %v1241, %v1240
        %v1256 = vpack.c.b16 %v1243, %v1242
        %v1257 = vpack.c.b16 %v1245, %v1244
        %v1258 = vpack.c.b16 %v1247, %v1246
        %v1259 = vpack.c.b16 %v1249, %v1248
        %v1260 = vpack.c.b16 %v1251, %v1250
        %v1261 = vpack.c.b16 %v1253, %v1252
        %1270 = vmatpush.bf16.msra.mxu0 %v1261
        %1271 = vmatpush.bf16.msra.mxu0 %v1260
        %1272 = vmatpush.bf16.msra.mxu0 %v1259
        %1273 = vmatpush.bf16.msra.mxu0 %v1258
        %1274 = vmatpush.bf16.msra.mxu0 %v1257
        %1275 = vmatpush.bf16.msra.mxu0 %v1256
        %1276 = vmatpush.bf16.msra.mxu0 %v1255
        %1277 = vmatpush.bf16.msra.mxu0 %v1254
        %1278 = vmatmul.bf16.gmra.mxu0 %v1216
        %v1279 = vpop.f32.mrf.mxu0
        %v1280 = vadd.f32 0.0, %v1279
        %v1281 = vpop.f32.mrf.mxu0
        %v1282 = vadd.f32 0.0, %v1281
        %1283 = vmatmul.bf16.gmra.mxu0 %v1217
        %v1284 = vpop.f32.mrf.mxu0
        %v1285 = vadd.f32 0.0, %v1284
        %v1286 = vpop.f32.mrf.mxu0
        %v1287 = vadd.f32 0.0, %v1286
        %1288 = vmatmul.bf16.gmra.mxu0 %v1218
        %v1289 = vpop.f32.mrf.mxu0
        %v1290 = vadd.f32 0.0, %v1289
        %v1291 = vpop.f32.mrf.mxu0
        %1292 = vdwg.mxu0
        %v1293 = vadd.f32 %v1186, %v1280
        %v1294 = vadd.f32 %v1188, %v1282
        %v1295 = vadd.f32 %v1191, %v1285
        %v1296 = vadd.f32 %v1193, %v1287
        %v1297 = vadd.f32 %v1196, %v1290
        %v1298 = vld [vmem:[%s4] sm:$0x1]
        %v1300 = vperm.slane %v1298, 0
        %v1302 = vadd.f32 %v1293, %v1300
        %v1303 = vadd.f32 %v1294, %v1300
        %v1304 = vadd.f32 %v1295, %v1300
        %v1305 = vadd.f32 %v1296, %v1300
        %v1306 = vadd.f32 %v1297, %v1300
        %s1307 = ssub.s32 %s675, 4
        %v1308 = vstv %s1307
        %v1309 = vadd.s32 %v668, %v1308
        %v1310 = vadd.s32 %v669, %v1308
        %v1311 = vadd.s32 %v670, %v1308
        %v1312 = vadd.s32 %v671, %v1308
        %v1313 = vadd.s32 %v672, %v1308
        %vm1314 = vcmp.ge.s32.totalorder %v1309, 0
        %vm1315 = vcmp.ge.s32.totalorder %v1310, 0
        %vm1316 = vcmp.ge.s32.totalorder %v1311, 0
        %vm1317 = vcmp.ge.s32.totalorder %v1312, 0
        %vm1318 = vcmp.ge.s32.totalorder %v1313, 0
        %vm1319 = vcmp.lt.s32.totalorder %v1309, 64
        %vm1320 = vcmp.lt.s32.totalorder %v1310, 64
        %vm1321 = vcmp.lt.s32.totalorder %v1311, 64
        %vm1322 = vcmp.lt.s32.totalorder %v1312, 64
        %vm1323 = vcmp.lt.s32.totalorder %v1313, 64
        %vm1324 = vmand %vm1314, %vm1319
        %vm1325 = vmand %vm1315, %vm1320
        %vm1326 = vmand %vm1316, %vm1321
        %vm1327 = vmand %vm1317, %vm1322
        %vm1328 = vmand %vm1318, %vm1323
        %v1329 = vmul.f32 %v1302, 0.5
        %v1330 = vmul.f32 %v1303, 0.5
        %v1331 = vmul.f32 %v1304, 0.5
        %v1332 = vmul.f32 %v1305, 0.5
        %v1333 = vmul.f32 %v1306, 0.5
        %v1334 = vmul.f32 %v1302, 0.70710677
        %v1335 = vmul.f32 %v1303, 0.70710677
        %v1336 = vmul.f32 %v1304, 0.70710677
        %v1337 = vmul.f32 %v1305, 0.70710677
        %v1338 = vmul.f32 %v1306, 0.70710677
        %v1339 = vmul.f32 %v1334, %v1334
        %v1340 = vmin.f32 16.0, %v1339
        %v1341 = vmul.f32 %v1340, 2.1237322e-06
        %v1342 = vadd.f32 %v1341, 0.00028619796
        %v1343 = vmul.f32 %v1340, %v1342
        %v1344 = vadd.f32 %v1343, 0.0036580483
        %v1345 = vmul.f32 %v1340, %v1344
        %v1346 = vadd.f32 %v1345, 0.05243302
        %v1347 = vmul.f32 %v1340, %v1346
        %v1348 = vadd.f32 %v1347, 0.18741608
        %v1349 = vmul.f32 %v1340, %v1348
        %v1350 = vadd.f32 %v1349, 1.1283791
        %v1351 = vmul.f32 %v1334, %v1350
        %v1352 = vmul.f32 %v1340, 3.8918573e-05
        %v1353 = vadd.f32 %v1352, 0.001143296
        %v1354 = vmul.f32 %v1340, %v1353
        %v1355 = vadd.f32 %v1354, 0.014752088
        %v1356 = vmul.f32 %v1340, %v1355
        %v1357 = vadd.f32 %v1356, 0.112945676
        %v1358 = vmul.f32 %v1340, %v1357
        %v1359 = vadd.f32 %v1358, 0.4994258
        %v1360 = vmul.f32 %v1340, %v1359
        %v1361 = vadd.f32 %v1360, 1.0
        %v1362 = vrcp.pop %v1361
        %v1363 = vmul.f32 %v1361, %v1362
        %v1364 = vsub.f32 1.0, %v1363
        %v1365 = vmul.f32 %v1362, %v1364
        %v1366 = vadd.f32 %v1362, %v1365
        %vm1367 = vweird.f32 %v1361
        %vm1368 = vweird.f32 %v1362
        %vm1369 = vmor %vm1367, %vm1368
        %v1370 = vsel %vm1369, %v1362, %v1366
        %v1371 = vand.u32 2147483647, %v1361
        %vm1372 = vcmp.eq.f32.partialorder %v1371, 8.507059e+37
        %v1373 = vand.u32 %v1361, 2147483648
        %v1374 = vor.u32 1.1754944e-38, %v1373
        %v1375 = vsel %vm1372, %v1374, %v1370
        %v1376 = vmul.f32 %v1351, %v1375
        %v1377 = vmin.f32 %v1376, 1.0
        %v1378 = vmax.f32 %v1377, -1.0
        %v1379 = vmul.f32 %v1335, %v1335
        %v1380 = vmin.f32 16.0, %v1379
        %v1381 = vmul.f32 %v1380, 2.1237322e-06
        %v1382 = vadd.f32 %v1381, 0.00028619796
        %v1383 = vmul.f32 %v1380, %v1382
        %v1384 = vadd.f32 %v1383, 0.0036580483
        %v1385 = vmul.f32 %v1380, %v1384
        %v1386 = vadd.f32 %v1385, 0.05243302
        %v1387 = vmul.f32 %v1380, %v1386
        %v1388 = vadd.f32 %v1387, 0.18741608
        %v1389 = vmul.f32 %v1380, %v1388
        %v1390 = vadd.f32 %v1389, 1.1283791
        %v1391 = vmul.f32 %v1335, %v1390
        %v1392 = vmul.f32 %v1380, 3.8918573e-05
        %v1393 = vadd.f32 %v1392, 0.001143296
        %v1394 = vmul.f32 %v1380, %v1393
        %v1395 = vadd.f32 %v1394, 0.014752088
        %v1396 = vmul.f32 %v1380, %v1395
        %v1397 = vadd.f32 %v1396, 0.112945676
        %v1398 = vmul.f32 %v1380, %v1397
        %v1399 = vadd.f32 %v1398, 0.4994258
        %v1400 = vmul.f32 %v1380, %v1399
        %v1401 = vadd.f32 %v1400, 1.0
        %v1402 = vrcp.pop %v1401
        %v1403 = vmul.f32 %v1401, %v1402
        %v1404 = vsub.f32 1.0, %v1403
        %v1405 = vmul.f32 %v1402, %v1404
        %v1406 = vadd.f32 %v1402, %v1405
        %vm1407 = vweird.f32 %v1401
        %vm1408 = vweird.f32 %v1402
        %vm1409 = vmor %vm1407, %vm1408
        %v1410 = vsel %vm1409, %v1402, %v1406
        %v1411 = vand.u32 2147483647, %v1401
        %vm1412 = vcmp.eq.f32.partialorder %v1411, 8.507059e+37
        %v1413 = vand.u32 %v1401, 2147483648
        %v1414 = vor.u32 1.1754944e-38, %v1413
        %v1415 = vsel %vm1412, %v1414, %v1410
        %v1416 = vmul.f32 %v1391, %v1415
        %v1417 = vmin.f32 %v1416, 1.0
        %v1418 = vmax.f32 %v1417, -1.0
        %v1419 = vmul.f32 %v1336, %v1336
        %v1420 = vmin.f32 16.0, %v1419
        %v1421 = vmul.f32 %v1420, 2.1237322e-06
        %v1422 = vadd.f32 %v1421, 0.00028619796
        %v1423 = vmul.f32 %v1420, %v1422
        %v1424 = vadd.f32 %v1423, 0.0036580483
        %v1425 = vmul.f32 %v1420, %v1424
        %v1426 = vadd.f32 %v1425, 0.05243302
        %v1427 = vmul.f32 %v1420, %v1426
        %v1428 = vadd.f32 %v1427, 0.18741608
        %v1429 = vmul.f32 %v1420, %v1428
        %v1430 = vadd.f32 %v1429, 1.1283791
        %v1431 = vmul.f32 %v1336, %v1430
        %v1432 = vmul.f32 %v1420, 3.8918573e-05
        %v1433 = vadd.f32 %v1432, 0.001143296
        %v1434 = vmul.f32 %v1420, %v1433
        %v1435 = vadd.f32 %v1434, 0.014752088
        %v1436 = vmul.f32 %v1420, %v1435
        %v1437 = vadd.f32 %v1436, 0.112945676
        %v1438 = vmul.f32 %v1420, %v1437
        %v1439 = vadd.f32 %v1438, 0.4994258
        %v1440 = vmul.f32 %v1420, %v1439
        %v1441 = vadd.f32 %v1440, 1.0
        %v1442 = vrcp.pop %v1441
        %v1443 = vmul.f32 %v1441, %v1442
        %v1444 = vsub.f32 1.0, %v1443
        %v1445 = vmul.f32 %v1442, %v1444
        %v1446 = vadd.f32 %v1442, %v1445
        %vm1447 = vweird.f32 %v1441
        %vm1448 = vweird.f32 %v1442
        %vm1449 = vmor %vm1447, %vm1448
        %v1450 = vsel %vm1449, %v1442, %v1446
        %v1451 = vand.u32 2147483647, %v1441
        %vm1452 = vcmp.eq.f32.partialorder %v1451, 8.507059e+37
        %v1453 = vand.u32 %v1441, 2147483648
        %v1454 = vor.u32 1.1754944e-38, %v1453
        %v1455 = vsel %vm1452, %v1454, %v1450
        %v1456 = vmul.f32 %v1431, %v1455
        %v1457 = vmin.f32 %v1456, 1.0
        %v1458 = vmax.f32 %v1457, -1.0
        %v1459 = vmul.f32 %v1337, %v1337
        %v1460 = vmin.f32 16.0, %v1459
        %v1461 = vmul.f32 %v1460, 2.1237322e-06
        %v1462 = vadd.f32 %v1461, 0.00028619796
        %v1463 = vmul.f32 %v1460, %v1462
        %v1464 = vadd.f32 %v1463, 0.0036580483
        %v1465 = vmul.f32 %v1460, %v1464
        %v1466 = vadd.f32 %v1465, 0.05243302
        %v1467 = vmul.f32 %v1460, %v1466
        %v1468 = vadd.f32 %v1467, 0.18741608
        %v1469 = vmul.f32 %v1460, %v1468
        %v1470 = vadd.f32 %v1469, 1.1283791
        %v1471 = vmul.f32 %v1337, %v1470
        %v1472 = vmul.f32 %v1460, 3.8918573e-05
        %v1473 = vadd.f32 %v1472, 0.001143296
        %v1474 = vmul.f32 %v1460, %v1473
        %v1475 = vadd.f32 %v1474, 0.014752088
        %v1476 = vmul.f32 %v1460, %v1475
        %v1477 = vadd.f32 %v1476, 0.112945676
        %v1478 = vmul.f32 %v1460, %v1477
        %v1479 = vadd.f32 %v1478, 0.4994258
        %v1480 = vmul.f32 %v1460, %v1479
        %v1481 = vadd.f32 %v1480, 1.0
        %v1482 = vrcp.pop %v1481
        %v1483 = vmul.f32 %v1481, %v1482
        %v1484 = vsub.f32 1.0, %v1483
        %v1485 = vmul.f32 %v1482, %v1484
        %v1486 = vadd.f32 %v1482, %v1485
        %vm1487 = vweird.f32 %v1481
        %vm1488 = vweird.f32 %v1482
        %vm1489 = vmor %vm1487, %vm1488
        %v1490 = vsel %vm1489, %v1482, %v1486
        %v1491 = vand.u32 2147483647, %v1481
        %vm1492 = vcmp.eq.f32.partialorder %v1491, 8.507059e+37
        %v1493 = vand.u32 %v1481, 2147483648
        %v1494 = vor.u32 1.1754944e-38, %v1493
        %v1495 = vsel %vm1492, %v1494, %v1490
        %v1496 = vmul.f32 %v1471, %v1495
        %v1497 = vmin.f32 %v1496, 1.0
        %v1498 = vmax.f32 %v1497, -1.0
        %v1499 = vmul.f32 %v1338, %v1338
        %v1500 = vmin.f32 16.0, %v1499
        %v1501 = vmul.f32 %v1500, 2.1237322e-06
        %v1502 = vadd.f32 %v1501, 0.00028619796
        %v1503 = vmul.f32 %v1500, %v1502
        %v1504 = vadd.f32 %v1503, 0.0036580483
        %v1505 = vmul.f32 %v1500, %v1504
        %v1506 = vadd.f32 %v1505, 0.05243302
        %v1507 = vmul.f32 %v1500, %v1506
        %v1508 = vadd.f32 %v1507, 0.18741608
        %v1509 = vmul.f32 %v1500, %v1508
        %v1510 = vadd.f32 %v1509, 1.1283791
        %v1511 = vmul.f32 %v1338, %v1510
        %v1512 = vmul.f32 %v1500, 3.8918573e-05
        %v1513 = vadd.f32 %v1512, 0.001143296
        %v1514 = vmul.f32 %v1500, %v1513
        %v1515 = vadd.f32 %v1514, 0.014752088
        %v1516 = vmul.f32 %v1500, %v1515
        %v1517 = vadd.f32 %v1516, 0.112945676
        %v1518 = vmul.f32 %v1500, %v1517
        %v1519 = vadd.f32 %v1518, 0.4994258
        %v1520 = vmul.f32 %v1500, %v1519
        %v1521 = vadd.f32 %v1520, 1.0
        %v1522 = vrcp.pop %v1521
        %v1523 = vmul.f32 %v1521, %v1522
        %v1524 = vsub.f32 1.0, %v1523
        %v1525 = vmul.f32 %v1522, %v1524
        %v1526 = vadd.f32 %v1522, %v1525
        %vm1527 = vweird.f32 %v1521
        %vm1528 = vweird.f32 %v1522
        %vm1529 = vmor %vm1527, %vm1528
        %v1530 = vsel %vm1529, %v1522, %v1526
        %v1531 = vand.u32 2147483647, %v1521
        %vm1532 = vcmp.eq.f32.partialorder %v1531, 8.507059e+37
        %v1533 = vand.u32 %v1521, 2147483648
        %v1534 = vor.u32 1.1754944e-38, %v1533
        %v1535 = vsel %vm1532, %v1534, %v1530
        %v1536 = vmul.f32 %v1511, %v1535
        %v1537 = vmin.f32 %v1536, 1.0
        %v1538 = vmax.f32 %v1537, -1.0
        %v1539 = vadd.f32 %v1378, 1.0
        %v1540 = vadd.f32 %v1418, 1.0
        %v1541 = vadd.f32 %v1458, 1.0
        %v1542 = vadd.f32 %v1498, 1.0
        %v1543 = vadd.f32 %v1538, 1.0
        %v1544 = vmul.f32 %v1329, %v1539
        %v1545 = vmul.f32 %v1330, %v1540
        %v1546 = vmul.f32 %v1331, %v1541
        %v1547 = vmul.f32 %v1332, %v1542
        %v1548 = vmul.f32 %v1333, %v1543
        %v1549 = vsel %vm1324, 1, 0
        %v1550 = vsel %vm1325, 1, 0
        %v1551 = vsel %vm1326, 1, 0
        %v1552 = vsel %vm1327, 1, 0
        %v1553 = vsel %vm1328, 1, 0
        %vm1554 = vcmp.eq.s32.totalorder %v1549, 1
        %vm1555 = vcmp.eq.s32.totalorder %v1550, 1
        %vm1556 = vcmp.eq.s32.totalorder %v1551, 1
        %vm1557 = vcmp.eq.s32.totalorder %v1552, 1
        %vm1558 = vcmp.eq.s32.totalorder %v1553, 1
        %v1559 = vsel %vm1554, %v1544, 0.0
        %v1560 = vsel %vm1555, %v1545, 0.0
        %v1561 = vsel %vm1556, %v1546, 0.0
        %v1562 = vsel %vm1557, %v1547, 0.0
        %v1563 = vsel %vm1558, %v1548, 0.0
        %v1564 = vpack.c.bf16 %v1559, %v1559
        %v1565 = vpack.c.bf16 %v1560, %v1560
        %v1566 = vpack.c.bf16 %v1561, %v1561
        %v1567 = vpack.c.bf16 %v1562, %v1562
        %v1568 = vpack.c.bf16 %v1563, %v1563
        %v1569 = vld [vmem:[%s6] sm:$0x1]
        %v1571 = vperm.slane %v1569, 0
        %v1573 = vadd.f32 %v658, %v1571
        %v1574 = vadd.f32 %v660, %v1571
        %v1575 = vadd.f32 %v663, %v1571
        %v1576 = vadd.f32 %v665, %v1571
        %v1577 = vld [vmem:[%s5] sm:$0xf]
        %v1578 = vld [vmem:[%s5 + $0x4] sm:$0xf]
        %v1579 = vld [vmem:[%s5 + $0x8] sm:$0xf]
        %v1580 = vld [vmem:[%s5 + $0xc] sm:$0xf]
        %v1581 = vld [vmem:[%s5 + $0x10] sm:$0xf]
        %v1582 = vld [vmem:[%s5 + $0x14] sm:$0xf]
        %v1583 = vld [vmem:[%s5 + $0x18] sm:$0xf]
        %v1584 = vld [vmem:[%s5 + $0x1c] sm:$0xf]
        %v1585 = vld [vmem:[%s5 + $0x20] sm:$0xf]
        %v1586 = vld [vmem:[%s5 + $0x24] sm:$0xf]
        %v1587 = vld [vmem:[%s5 + $0x28] sm:$0xf]
        %v1588 = vld [vmem:[%s5 + $0x2c] sm:$0xf]
        %v1589 = vld [vmem:[%s5 + $0x30] sm:$0xf]
        %v1590 = vld [vmem:[%s5 + $0x34] sm:$0xf]
        %v1591 = vld [vmem:[%s5 + $0x38] sm:$0xf]
        %v1592 = vld [vmem:[%s5 + $0x3c] sm:$0xf]
        %v1597 = vunpack.c.l.b16 %v1564
        %v1598 = vunpack.c.l.b16 %v1565
        %v1599 = vunpack.c.l.b16 %v1566
        %v1600 = vunpack.c.l.b16 %v1567
        %v1601 = vpack.c.b16 %v1598, %v1597
        %v1602 = vpack.c.b16 %v1600, %v1599
        %v1621 = vunpack.c.l.b16 %v1577
        %v1622 = vunpack.c.l.b16 %v1578
        %v1623 = vunpack.c.l.b16 %v1579
        %v1624 = vunpack.c.l.b16 %v1580
        %v1625 = vunpack.c.l.b16 %v1581
        %v1626 = vunpack.c.l.b16 %v1582
        %v1627 = vunpack.c.l.b16 %v1583
        %v1628 = vunpack.c.l.b16 %v1584
        %v1629 = vunpack.c.l.b16 %v1585
        %v1630 = vunpack.c.l.b16 %v1586
        %v1631 = vunpack.c.l.b16 %v1587
        %v1632 = vunpack.c.l.b16 %v1588
        %v1633 = vunpack.c.l.b16 %v1589
        %v1634 = vunpack.c.l.b16 %v1590
        %v1635 = vunpack.c.l.b16 %v1591
        %v1636 = vunpack.c.l.b16 %v1592
        %v1637 = vpack.c.b16 %v1622, %v1621
        %v1638 = vpack.c.b16 %v1624, %v1623
        %v1639 = vpack.c.b16 %v1626, %v1625
        %v1640 = vpack.c.b16 %v1628, %v1627
        %v1641 = vpack.c.b16 %v1630, %v1629
        %v1642 = vpack.c.b16 %v1632, %v1631
        %v1643 = vpack.c.b16 %v1634, %v1633
        %v1644 = vpack.c.b16 %v1636, %v1635
        %1653 = vmatpush.bf16.msra.mxu0 %v1644
        %1654 = vmatpush.bf16.msra.mxu0 %v1643
        %1655 = vmatpush.bf16.msra.mxu0 %v1642
        %1656 = vmatpush.bf16.msra.mxu0 %v1641
        %1657 = vmatpush.bf16.msra.mxu0 %v1640
        %1658 = vmatpush.bf16.msra.mxu0 %v1639
        %1659 = vmatpush.bf16.msra.mxu0 %v1638
        %1660 = vmatpush.bf16.msra.mxu0 %v1637
        %1661 = vmatmul.bf16.gmra.mxu0 %v1601
        %v1662 = vpop.f32.mrf.mxu0
        %v1663 = vadd.f32 0.0, %v1662
        %v1664 = vpop.f32.mrf.mxu0
        %v1665 = vadd.f32 0.0, %v1664
        %1666 = vmatmul.bf16.gmra.mxu0 %v1602
        %v1667 = vpop.f32.mrf.mxu0
        %v1668 = vadd.f32 0.0, %v1667
        %v1669 = vpop.f32.mrf.mxu0
        %v1670 = vadd.f32 0.0, %v1669
        %1671 = vdwg.mxu0
        %v1672 = vadd.f32 %v1573, %v1663
        %v1673 = vadd.f32 %v1574, %v1665
        %v1674 = vadd.f32 %v1575, %v1668
        %v1675 = vadd.f32 %v1576, %v1670
        %s1676 = scalar_lea.vmem %s5, 64
        %v1677 = vld [vmem:[%s1676] sm:$0xf]
        %v1678 = vld [vmem:[%s1676 + $0x4] sm:$0xf]
        %v1679 = vld [vmem:[%s1676 + $0x8] sm:$0xf]
        %v1680 = vld [vmem:[%s1676 + $0xc] sm:$0xf]
        %v1681 = vld [vmem:[%s1676 + $0x10] sm:$0xf]
        %v1682 = vld [vmem:[%s1676 + $0x14] sm:$0xf]
        %v1683 = vld [vmem:[%s1676 + $0x18] sm:$0xf]
        %v1684 = vld [vmem:[%s1676 + $0x1c] sm:$0xf]
        %v1685 = vld [vmem:[%s1676 + $0x20] sm:$0xf]
        %v1686 = vld [vmem:[%s1676 + $0x24] sm:$0xf]
        %v1687 = vld [vmem:[%s1676 + $0x28] sm:$0xf]
        %v1688 = vld [vmem:[%s1676 + $0x2c] sm:$0xf]
        %v1689 = vld [vmem:[%s1676 + $0x30] sm:$0xf]
        %v1690 = vld [vmem:[%s1676 + $0x34] sm:$0xf]
        %v1691 = vld [vmem:[%s1676 + $0x38] sm:$0xf]
        %v1692 = vld [vmem:[%s1676 + $0x3c] sm:$0xf]
        %v1694 = vunpack.c.l.b16 %v1568
        %v1695 = vpack.c.b16 %v1694, %v1694
        %v1696 = vrot.slane %v1601, 2
        %v1697 = vrot.slane %v1602, 2
        %v1698 = vsel %vm1044, %v1696, %v1697
        %v1699 = vrot.slane %v1695, 2
        %v1700 = vsel %vm1044, %v1697, %v1699
        %v1719 = vunpack.c.l.b16 %v1677
        %v1720 = vunpack.c.l.b16 %v1678
        %v1721 = vunpack.c.l.b16 %v1679
        %v1722 = vunpack.c.l.b16 %v1680
        %v1723 = vunpack.c.l.b16 %v1681
        %v1724 = vunpack.c.l.b16 %v1682
        %v1725 = vunpack.c.l.b16 %v1683
        %v1726 = vunpack.c.l.b16 %v1684
        %v1727 = vunpack.c.l.b16 %v1685
        %v1728 = vunpack.c.l.b16 %v1686
        %v1729 = vunpack.c.l.b16 %v1687
        %v1730 = vunpack.c.l.b16 %v1688
        %v1731 = vunpack.c.l.b16 %v1689
        %v1732 = vunpack.c.l.b16 %v1690
        %v1733 = vunpack.c.l.b16 %v1691
        %v1734 = vunpack.c.l.b16 %v1692
        %v1735 = vpack.c.b16 %v1720, %v1719
        %v1736 = vpack.c.b16 %v1722, %v1721
        %v1737 = vpack.c.b16 %v1724, %v1723
        %v1738 = vpack.c.b16 %v1726, %v1725
        %v1739 = vpack.c.b16 %v1728, %v1727
        %v1740 = vpack.c.b16 %v1730, %v1729
        %v1741 = vpack.c.b16 %v1732, %v1731
        %v1742 = vpack.c.b16 %v1734, %v1733
        %1751 = vmatpush.bf16.msra.mxu0 %v1742
        %1752 = vmatpush.bf16.msra.mxu0 %v1741
        %1753 = vmatpush.bf16.msra.mxu0 %v1740
        %1754 = vmatpush.bf16.msra.mxu0 %v1739
        %1755 = vmatpush.bf16.msra.mxu0 %v1738
        %1756 = vmatpush.bf16.msra.mxu0 %v1737
        %1757 = vmatpush.bf16.msra.mxu0 %v1736
        %1758 = vmatpush.bf16.msra.mxu0 %v1735
        %1759 = vmatmul.bf16.gmra.mxu0 %v1698
        %v1760 = vpop.f32.mrf.mxu0
        %v1761 = vadd.f32 0.0, %v1760
        %v1762 = vpop.f32.mrf.mxu0
        %v1763 = vadd.f32 0.0, %v1762
        %1764 = vmatmul.bf16.gmra.mxu0 %v1700
        %v1765 = vpop.f32.mrf.mxu0
        %v1766 = vadd.f32 0.0, %v1765
        %v1767 = vpop.f32.mrf.mxu0
        %v1768 = vadd.f32 0.0, %v1767
        %1769 = vdwg.mxu0
        %v1770 = vadd.f32 %v1672, %v1761
        %v1771 = vadd.f32 %v1673, %v1763
        %v1772 = vadd.f32 %v1674, %v1766
        %v1773 = vadd.f32 %v1675, %v1768
        %s1774 = scalar_lea.vmem %s5, 128
        %v1775 = vld [vmem:[%s1774] sm:$0xf]
        %v1776 = vld [vmem:[%s1774 + $0x4] sm:$0xf]
        %v1777 = vld [vmem:[%s1774 + $0x8] sm:$0xf]
        %v1778 = vld [vmem:[%s1774 + $0xc] sm:$0xf]
        %v1779 = vld [vmem:[%s1774 + $0x10] sm:$0xf]
        %v1780 = vld [vmem:[%s1774 + $0x14] sm:$0xf]
        %v1781 = vld [vmem:[%s1774 + $0x18] sm:$0xf]
        %v1782 = vld [vmem:[%s1774 + $0x1c] sm:$0xf]
        %v1783 = vld [vmem:[%s1774 + $0x20] sm:$0xf]
        %v1784 = vld [vmem:[%s1774 + $0x24] sm:$0xf]
        %v1785 = vld [vmem:[%s1774 + $0x28] sm:$0xf]
        %v1786 = vld [vmem:[%s1774 + $0x2c] sm:$0xf]
        %v1787 = vld [vmem:[%s1774 + $0x30] sm:$0xf]
        %v1788 = vld [vmem:[%s1774 + $0x34] sm:$0xf]
        %v1789 = vld [vmem:[%s1774 + $0x38] sm:$0xf]
        %v1790 = vld [vmem:[%s1774 + $0x3c] sm:$0xf]
        %v1791 = vpack.c.b16 %v1599, %v1598
        %v1792 = vpack.c.b16 %v1694, %v1600
        %v1811 = vunpack.c.l.b16 %v1775
        %v1812 = vunpack.c.l.b16 %v1776
        %v1813 = vunpack.c.l.b16 %v1777
        %v1814 = vunpack.c.l.b16 %v1778
        %v1815 = vunpack.c.l.b16 %v1779
        %v1816 = vunpack.c.l.b16 %v1780
        %v1817 = vunpack.c.l.b16 %v1781
        %v1818 = vunpack.c.l.b16 %v1782
        %v1819 = vunpack.c.l.b16 %v1783
        %v1820 = vunpack.c.l.b16 %v1784
        %v1821 = vunpack.c.l.b16 %v1785
        %v1822 = vunpack.c.l.b16 %v1786
        %v1823 = vunpack.c.l.b16 %v1787
        %v1824 = vunpack.c.l.b16 %v1788
        %v1825 = vunpack.c.l.b16 %v1789
        %v1826 = vunpack.c.l.b16 %v1790
        %v1827 = vpack.c.b16 %v1812, %v1811
        %v1828 = vpack.c.b16 %v1814, %v1813
        %v1829 = vpack.c.b16 %v1816, %v1815
        %v1830 = vpack.c.b16 %v1818, %v1817
        %v1831 = vpack.c.b16 %v1820, %v1819
        %v1832 = vpack.c.b16 %v1822, %v1821
        %v1833 = vpack.c.b16 %v1824, %v1823
        %v1834 = vpack.c.b16 %v1826, %v1825
        %1843 = vmatpush.bf16.msra.mxu0 %v1834
        %1844 = vmatpush.bf16.msra.mxu0 %v1833
        %1845 = vmatpush.bf16.msra.mxu0 %v1832
        %1846 = vmatpush.bf16.msra.mxu0 %v1831
        %1847 = vmatpush.bf16.msra.mxu0 %v1830
        %1848 = vmatpush.bf16.msra.mxu0 %v1829
        %1849 = vmatpush.bf16.msra.mxu0 %v1828
        %1850 = vmatpush.bf16.msra.mxu0 %v1827
        %1851 = vmatmul.bf16.gmra.mxu0 %v1791
        %v1852 = vpop.f32.mrf.mxu0
        %v1853 = vadd.f32 0.0, %v1852
        %v1854 = vpop.f32.mrf.mxu0
        %v1855 = vadd.f32 0.0, %v1854
        %1856 = vmatmul.bf16.gmra.mxu0 %v1792
        %v1857 = vpop.f32.mrf.mxu0
        %v1858 = vadd.f32 0.0, %v1857
        %v1859 = vpop.f32.mrf.mxu0
        %v1860 = vadd.f32 0.0, %v1859
        %1861 = vdwg.mxu0
        %v1862 = vadd.f32 %v1770, %v1853
        %v1863 = vadd.f32 %v1771, %v1855
        %v1864 = vadd.f32 %v1772, %v1858
        %v1865 = vadd.f32 %v1773, %v1860
        %v1866 = vpack.c.bf16 %v1862, %v1862
        %v1867 = vpack.c.bf16 %v1863, %v1863
        %v1868 = vpack.c.bf16 %v1864, %v1864
        %v1869 = vpack.c.bf16 %v1865, %v1865
        %1870 = vst [vmem:[%s546] sm:$0xf] %v1866
        %1871 = vst [vmem:[%s546 + $0x4] sm:$0xf] %v1867
        %1872 = vst [vmem:[%s546 + $0x8] sm:$0xf] %v1868
        %1873 = vst [vmem:[%s546 + $0xc] sm:$0xf] %v1869
        %s1874 = smul.u32 4, %s27
        %p1875 = scmp.lt.s32.totalorder %s26, 1
        %s1876 = scalar_select %p1875, %s26, 1
        %p1877 = scmp.lt.s32.totalorder %s1874, 7
        %s1878 = scalar_select %p1877, %s1874, 7
        %s1879 = smul.addr %s1876, 8
        %s1880 = sadd.s32 %s1878, %s1879
        %s1881 = smul.addr %s1880, 4
        %s1882 = scalar_lea.vmem %s9, %s1881
        // Predicated region
        $region65: #{_lambda_.5} parent=55 // pred_check
          %p1883 = pneg %p284
        $region66: #{_lambda_.5} parent=55 // pred_check_branch
          %1885 = sbr.rel (%p1883) target = $region68
        $region67: #{_lambda_.5} parent=55 // pred_region
          %s1886 = smul.u32 4, %s27
        $region68: #{_lambda_.5} parent=55 // pred_fallthru
          _
      $region56: #{_lambda_.5} parent=5 // pred_fallthru
        _
      %p1887 = scmp.le.s32.totalorder 2, %s17
      // Predicated region
      $region69: #{_lambda_.5} parent=5 // pred_check
        %p1888 = pneg %p1887
      $region70: #{_lambda_.5} parent=5 // pred_check_branch
        %1890 = sbr.rel (%p1888) target = $region72
      $region71: #{_lambda_.5} parent=5 // pred_region
        %s1891 = ssub.s32 %s17, 2
        // Predicated region
        $region73: #{_lambda_.5} parent=71 // pred_check
          %p1892 = pneg %p290
        $region74: #{_lambda_.5} parent=71 // pred_check_branch
          %1894 = sbr.rel (%p1892) target = $region76
        $region75: #{_lambda_.5} parent=71 // pred_region
          %s1895 = smul.u32 4, %s29
          %p1896 = scmp.lt.s32.totalorder %s28, 1
          %s1897 = scalar_select %p1896, %s28, 1
          %p1898 = scmp.lt.s32.totalorder %s1895, 7
          %s1899 = scalar_select %p1898, %s1895, 7
          %s1900 = smul.addr %s1897, 8
          %s1901 = sadd.s32 %s1899, %s1900
          %s1902 = smul.addr %s1901, 4
          %s1903 = scalar_lea.vmem %s9, %s1902
        $region76: #{_lambda_.5} parent=71 // pred_fallthru
          _
      $region72: #{_lambda_.5} parent=5 // pred_fallthru
        _
    $region6: #{_lambda_.5} parent=1 // loop_footer
      %s21 = sadd.s32 1, %s17
    $region7: #{_lambda_.5} parent=1 // loop_footer_branch
      %16 = sbr.rel target = $region3
    $region8: #{_lambda_.5} parent=1 // loop_exit
      _
    %1904 = vsyncpa [#allocation3], 1
    %s1905 = scalar_lea.sflag [#allocation3], 1
    %1906 = vsyncpa %s1905, 1
    %1907 = vsyncpa [#allocation5], 1

</llo_original>
